<compile_context>
chip_gen: v6e
topology: v6e:2x2x1
jax: 0.10.0
libtpu: 0.0.40
codegen_flags: <defaults>
</compile_context>

<pallas_src>
import functools

import jax
import jax.numpy as jnp
from jax import lax
from jax.experimental import pallas as pl
from jax.experimental.pallas import tpu as pltpu

LN_EPS = 1e-5  # nn.LayerNorm default


def _round_up(x, m):
    return ((x + m - 1) // m) * m


def _pad_to(a, shape):
    pads = [(0, t - s) for s, t in zip(a.shape, shape)]
    return jnp.pad(a, pads)


# ----------------------------- fused decoder kernel -----------------------------
def _decoder_kernel(n_head, d_model, n_layer, seq_len,
                    x_ref, mask_ref,
                    wqkv_ref, bqkv_ref, wo_ref, bo_ref,
                    g1_ref, be1_ref, w1_ref, bf1_ref,
                    w2_ref, bf2_ref, g2_ref, be2_ref,
                    o_ref, act_ref):
    l = pl.program_id(0)
    N, Dp = act_ref.shape                     # N = S*B rows, Dp = padded d_model
    S = seq_len
    B = N // S
    H = n_head
    hd = d_model // n_head
    scale = 1.0 / (hd ** 0.5)

    # Load the input slab once (layer 0); afterwards the activation lives in VMEM.
    @pl.when(l == 0)
    def _():
        act_ref[...] = x_ref[...]

    x = act_ref[...]                          # (N, Dp) f32, padded lanes are 0

    # Lane mask for LayerNorm statistics over the real d_model lanes only.
    lane = lax.broadcasted_iota(jnp.int32, (1, Dp), 1)
    lane_mask = lane < d_model
    inv_d = 1.0 / d_model

    def layer_norm(h, gamma, beta):
        # padded lanes of h are 0; mask (h - mu) so they don't pollute the variance.
        mu = jnp.sum(h, axis=-1, keepdims=True) * inv_d
        diff = jnp.where(lane_mask, h - mu, 0.0)
        var = jnp.sum(diff * diff, axis=-1, keepdims=True) * inv_d
        return diff * lax.rsqrt(var + LN_EPS) * gamma + beta

    # ---- self attention: fused QKV projection (single MXU matmul) ----
    # TODO(synk): at production scale cast matmul operands to bf16 (f32 accumulate)
    # for the v6e/v7x MXU, tile S flash-style for v7x's 64 MiB VMEM, and keep a
    # parallel batch-tile grid axis so both v7x TensorCores get work.
    qkv = jnp.dot(x, wqkv_ref[0], preferred_element_type=jnp.float32) + bqkv_ref[0]

    def split_heads(i):                       # -> (B*H, S, hd)
        t = qkv[:, i * Dp:i * Dp + d_model]   # real lanes of q / k / v
        t = t.reshape(S, B, H, hd)
        return jnp.transpose(t, (1, 2, 0, 3)).reshape(B * H, S, hd)

    q, k, v = split_heads(0), split_heads(1), split_heads(2)

    # Batched attention over all (batch, head) pairs — no per-head loop / concat.
    s = jnp.einsum("nqd,nkd->nqk", q, k, preferred_element_type=jnp.float32) * scale
    s = s + mask_ref[...]                     # (S,S) causal additive mask, broadcast
    s = s - jnp.max(s, axis=-1, keepdims=True)
    p = jnp.exp(s)
    denom = jnp.sum(p, axis=-1, keepdims=True)
    r = pl.reciprocal(denom, approx=True)     # EUP slot
    r = r * (2.0 - denom * r)                 # one Newton step -> ~f32 exact
    a = p * r
    ctx = jnp.einsum("nqk,nkd->nqd", a, v, preferred_element_type=jnp.float32)

    ctx = ctx.reshape(B, H, S, hd)
    ctx = jnp.transpose(ctx, (2, 0, 1, 3)).reshape(N, d_model)   # (N, D) head-merge

    attn = jnp.dot(ctx, wo_ref[0], preferred_element_type=jnp.float32) + bo_ref[0]

    # ---- residual + LayerNorm 1 (post-norm; dropout = identity) ----
    h1 = layer_norm(x + attn, g1_ref[0], be1_ref[0])

    # ---- feed-forward (relu) ----
    ff = jnp.dot(h1, w1_ref[0], preferred_element_type=jnp.float32) + bf1_ref[0]
    ff = jnp.maximum(ff, 0.0)
    ff = jnp.dot(ff, w2_ref[0], preferred_element_type=jnp.float32) + bf2_ref[0]

    # ---- residual + LayerNorm 2 ----
    h2 = layer_norm(h1 + ff, g2_ref[0], be2_ref[0])

    act_ref[...] = h2                         # carry to next layer (VMEM resident)

    @pl.when(l == n_layer - 1)
    def _():
        o_ref[...] = h2.astype(o_ref.dtype)   # lane-dense (N, 128k) store


# ----------------------------- wrapper -----------------------------
def _stack_padded_params(layer_params, d_model, d_ff):
    """Zero-pad feature dims to multiples of 128 and stack layers on a leading dim."""
    D = d_model
    Dp = _round_up(d_model, 128)
    Fp = _round_up(d_ff, 128)
    out = {}

    def pack(name, fn):
        out[name] = jnp.stack([fn(p) for p in layer_params])

    pack("wqkv", lambda p: jnp.concatenate(
        [_pad_to(p["wqkv"][:, i * D:(i + 1) * D], (Dp, Dp)) for i in range(3)], axis=1))
    pack("bqkv", lambda p: jnp.concatenate(
        [_pad_to(p["bqkv"][:, i * D:(i + 1) * D], (1, Dp)) for i in range(3)], axis=1))
    pack("wo", lambda p: _pad_to(p["wo"], (D, Dp)))
    pack("bo", lambda p: _pad_to(p["bo"], (1, Dp)))
    pack("g1", lambda p: _pad_to(p["g1"], (1, Dp)))    # gamma padded with 0 -> padded
    pack("be1", lambda p: _pad_to(p["be1"], (1, Dp)))  # lanes stay exactly 0
    pack("w1", lambda p: _pad_to(p["w1"], (Dp, Fp)))
    pack("bf1", lambda p: _pad_to(p["bf1"], (1, Fp)))
    pack("w2", lambda p: _pad_to(p["w2"], (Fp, Dp)))
    pack("bf2", lambda p: _pad_to(p["bf2"], (1, Dp)))
    pack("g2", lambda p: _pad_to(p["g2"], (1, Dp)))
    pack("be2", lambda p: _pad_to(p["be2"], (1, Dp)))
    return out, Dp, Fp


def plain_transformer_decoder(x_sbd, layer_params, n_head):
    """Matches PlainTransformerDecoder.forward: x is (S, B, d_model)."""
    S, B, D = x_sbd.shape
    n_layer = len(layer_params)
    d_ff = layer_params[0]["w1"].shape[1]
    stk, Dp, Fp = _stack_padded_params(layer_params, D, d_ff)

    N = S * B
    # Pad lanes to Dp and merge (S, B) into rows — a free reshape, no transpose.
    x_p = _pad_to(x_sbd.astype(jnp.float32), (S, B, Dp)).reshape(N, Dp)

    # Causal additive mask built once, passed as a resident constant.
    causal = jnp.triu(jnp.ones((S, S), jnp.bool_), k=1)
    mask = jnp.where(causal, jnp.float32(-1e30), jnp.float32(0.0))

    def resident(shape):
        nd = len(shape)
        return pl.BlockSpec(shape, lambda l, _n=nd: (0,) * _n)

    def per_layer(trailing):
        nt = len(trailing)
        return pl.BlockSpec((1,) + trailing, lambda l, _n=nt: (l,) + (0,) * _n)

    in_specs = [
        resident((N, Dp)),                          # x (loaded once)
        resident((S, S)),                           # causal mask (loaded once)
        per_layer((Dp, 3 * Dp)),                    # wqkv
        per_layer((1, 3 * Dp)),                     # bqkv
        per_layer((D, Dp)),                         # wo
        per_layer((1, Dp)),                         # bo
        per_layer((1, Dp)), per_layer((1, Dp)),     # ln1 gamma, beta
        per_layer((Dp, Fp)), per_layer((1, Fp)),    # w1, b1
        per_layer((Fp, Dp)), per_layer((1, Dp)),    # w2, b2
        per_layer((1, Dp)), per_layer((1, Dp)),     # ln2 gamma, beta
    ]

    out = pl.pallas_call(
        functools.partial(_decoder_kernel, n_head, D, n_layer, S),
        out_shape=jax.ShapeDtypeStruct((N, Dp), jnp.float32),
        grid_spec=pltpu.PrefetchScalarGridSpec(
            num_scalar_prefetch=0,
            grid=(n_layer,),
            in_specs=in_specs,
            out_specs=resident((N, Dp)),
            scratch_shapes=[pltpu.VMEM((N, Dp), jnp.float32)],
        ),
        compiler_params=pltpu.CompilerParams(
            dimension_semantics=("arbitrary",)),   # layers are sequential (carried state)
    )(x_p, mask, stk["wqkv"], stk["bqkv"], stk["wo"], stk["bo"],
      stk["g1"], stk["be1"], stk["w1"], stk["bf1"],
      stk["w2"], stk["bf2"], stk["g2"], stk["be2"])

    return out.reshape(S, B, Dp)[:, :, :D]


# ---------------- pure-JAX reference (for correctness check) ----------------
def _ref_layer(x, p, n_head):                      # x: (B, S, D)
    B, S, D = x.shape
    hd = D // n_head
    qkv = x @ p["wqkv"] + p["bqkv"][0]
    q, k, v = qkv[..., :D], qkv[..., D:2 * D], qkv[..., 2 * D:]
    q = q.reshape(B, S, n_head, hd).transpose(0, 2, 1, 3)
    k = k.reshape(B, S, n_head, hd).transpose(0, 2, 1, 3)
    v = v.reshape(B, S, n_head, hd).transpose(0, 2, 1, 3)
    s = jnp.einsum("bhqd,bhkd->bhqk", q, k) / (hd ** 0.5)
    mask = jnp.triu(jnp.ones((S, S), bool), k=1)
    s = jnp.where(mask, -1e30, s)
    a = jax.nn.softmax(s, axis=-1)
    o = jnp.einsum("bhqk,bhkd->bhqd", a, v).transpose(0, 2, 1, 3).reshape(B, S, D)
    o = o @ p["wo"] + p["bo"][0]
    h1 = x + o
    h1 = (h1 - h1.mean(-1, keepdims=True)) / jnp.sqrt(h1.var(-1, keepdims=True) + LN_EPS)
    h1 = h1 * p["g1"][0] + p["be1"][0]
    ff = jnp.maximum(h1 @ p["w1"] + p["bf1"][0], 0.0) @ p["w2"] + p["bf2"][0]
    h2 = h1 + ff
    h2 = (h2 - h2.mean(-1, keepdims=True)) / jnp.sqrt(h2.var(-1, keepdims=True) + LN_EPS)
    return h2 * p["g2"][0] + p["be2"][0]


def _ref_decoder(x_sbd, layer_params, n_head):
    out = jnp.transpose(x_sbd, (1, 0, 2))
    for p in layer_params:
        out = _ref_layer(out, p, n_head)
    return jnp.transpose(out, (1, 0, 2))


# ---------------- deterministic synthetic parameter init ----------------
def init_params(key, n_layer, d_model, d_ff):
    params = []
    for i in range(n_layer):
        ks = jax.random.split(jax.random.fold_in(key, i), 4)
        params.append({
            "wqkv": 0.05 * jax.random.normal(ks[0], (d_model, 3 * d_model), jnp.float32),
            "bqkv": jnp.zeros((1, 3 * d_model), jnp.float32),
            "wo":   0.05 * jax.random.normal(ks[1], (d_model, d_model), jnp.float32),
            "bo":   jnp.zeros((1, d_model), jnp.float32),
            "g1":   jnp.ones((1, d_model), jnp.float32),
            "be1":  jnp.zeros((1, d_model), jnp.float32),
            "w1":   0.05 * jax.random.normal(ks[2], (d_model, d_ff), jnp.float32),
            "bf1":  jnp.zeros((1, d_ff), jnp.float32),
            "w2":   0.05 * jax.random.normal(ks[3], (d_ff, d_model), jnp.float32),
            "bf2":  jnp.zeros((1, d_model), jnp.float32),
            "g2":   jnp.ones((1, d_model), jnp.float32),
            "be2":  jnp.zeros((1, d_model), jnp.float32),
        })
    return params


if __name__ == "__main__":
    n_layer, n_head, d_model, d_ff = 2, 4, 32, 64
    S, B = 8, 2

    key = jax.random.PRNGKey(0)
    kx, kp = jax.random.split(key)
    x = jax.random.normal(kx, (S, B, d_model), jnp.float32)   # (seq, batch, d_model)
    params = init_params(kp, n_layer, d_model, d_ff)

    out = jax.block_until_ready(plain_transformer_decoder(x, params, n_head))
    ref = jax.block_until_ready(_ref_decoder(x, params, n_head))

    assert out.shape == (S, B, d_model)
    err = float(jnp.max(jnp.abs(out - ref)))
    # tolerance slightly relaxed vs. pure-f32: EUP approx-reciprocal (+Newton) softmax.
    assert jnp.allclose(out, ref, atol=1e-3, rtol=1e-3), f"mismatch vs JAX reference (max abs err={err})"

    print("KERNEL_OK")
</pallas_src>

<mosaic_0001>
module attributes {stable_mosaic.version = 11 : i64} {
  func.func @_decoder_kernel(%arg0: i32, %arg1: memref<16x128xf32, #tpu.memory_space<vmem>>, %arg2: memref<8x8xf32, #tpu.memory_space<vmem>>, %arg3: memref<1x128x384xf32, #tpu.memory_space<vmem>>, %arg4: memref<1x1x384xf32, #tpu.memory_space<vmem>>, %arg5: memref<1x32x128xf32, #tpu.memory_space<vmem>>, %arg6: memref<1x1x128xf32, #tpu.memory_space<vmem>>, %arg7: memref<1x1x128xf32, #tpu.memory_space<vmem>>, %arg8: memref<1x1x128xf32, #tpu.memory_space<vmem>>, %arg9: memref<1x128x128xf32, #tpu.memory_space<vmem>>, %arg10: memref<1x1x128xf32, #tpu.memory_space<vmem>>, %arg11: memref<1x128x128xf32, #tpu.memory_space<vmem>>, %arg12: memref<1x1x128xf32, #tpu.memory_space<vmem>>, %arg13: memref<1x1x128xf32, #tpu.memory_space<vmem>>, %arg14: memref<1x1x128xf32, #tpu.memory_space<vmem>>, %arg15: memref<16x128xf32, #tpu.memory_space<vmem>>, %arg16: memref<16x128xf32, #tpu.memory_space<vmem>>) attributes {dimension_semantics = [#tpu.dimension_semantics<arbitrary>], iteration_bounds = array<i64: 2>, scalar_prefetch = 0 : i64, scratch_operands = 1 : i64, tpu.core_type = #tpu.core_type<tc>, window_params = [{pipeline_mode = #tpu.pipeline_mode<synchronous>, transform_indices = @transform_0, window_bounds = array<i64: 16, 128>}, {pipeline_mode = #tpu.pipeline_mode<synchronous>, transform_indices = @transform_1, window_bounds = array<i64: 8, 8>}, {transform_indices = @transform_2, window_bounds = array<i64: 1, 128, 384>}, {transform_indices = @transform_3, window_bounds = array<i64: 1, 1, 384>}, {transform_indices = @transform_4, window_bounds = array<i64: 1, 32, 128>}, {transform_indices = @transform_5, window_bounds = array<i64: 1, 1, 128>}, {transform_indices = @transform_6, window_bounds = array<i64: 1, 1, 128>}, {transform_indices = @transform_7, window_bounds = array<i64: 1, 1, 128>}, {transform_indices = @transform_8, window_bounds = array<i64: 1, 128, 128>}, {transform_indices = @transform_9, window_bounds = array<i64: 1, 1, 128>}, {transform_indices = @transform_10, window_bounds = array<i64: 1, 128, 128>}, {transform_indices = @transform_11, window_bounds = array<i64: 1, 1, 128>}, {transform_indices = @transform_12, window_bounds = array<i64: 1, 1, 128>}, {transform_indices = @transform_13, window_bounds = array<i64: 1, 1, 128>}, {pipeline_mode = #tpu.pipeline_mode<synchronous>, transform_indices = @transform_14, window_bounds = array<i64: 16, 128>}]} {
    %c0_i32 = arith.constant 0 : i32
    %0 = arith.cmpi eq, %arg0, %c0_i32 : i32
    %1 = arith.extui %0 : i1 to i32
    %c0_i32_0 = arith.constant 0 : i32
    %2 = arith.cmpi ne, %1, %c0_i32_0 : i32
    scf.if %2 {
      %c0_65 = arith.constant 0 : index
      %c0_66 = arith.constant 0 : index
      %136 = vector.load %arg1[%c0_65, %c0_66] : memref<16x128xf32, #tpu.memory_space<vmem>>, vector<16x128xf32>
      %c0_67 = arith.constant 0 : index
      %c0_68 = arith.constant 0 : index
      %137 = vector.load %arg16[%c0_67, %c0_68] : memref<16x128xf32, #tpu.memory_space<vmem>>, vector<16x128xf32>
      tpu.vector_store %arg16[%c0_67, %c0_68], %136 {strides = array<i32>} : memref<16x128xf32, #tpu.memory_space<vmem>>, vector<16x128xf32>,
    } else {
    }
    %c0 = arith.constant 0 : index
    %c0_1 = arith.constant 0 : index
    %3 = vector.load %arg16[%c0, %c0_1] : memref<16x128xf32, #tpu.memory_space<vmem>>, vector<16x128xf32>
    %4 = tpu.iota {dimensions = array<i32: 1>} : vector<1x128xi32>
    %c32_i32 = arith.constant 32 : i32
    %5 = vector.broadcast %c32_i32 : i32 to vector<1x128xi32>
    %6 = arith.cmpi slt, %4, %5 : vector<1x128xi32>
    %c0_2 = arith.constant 0 : index
    %c0_3 = arith.constant 0 : index
    %c0_4 = arith.constant 0 : index
    %7 = vector.load %arg3[%c0_2, %c0_3, %c0_4] : memref<1x128x384xf32, #tpu.memory_space<vmem>>, vector<1x128x384xf32>
    %8 = vector.shape_cast %7 : vector<1x128x384xf32> to vector<128x384xf32>
    %cst = arith.constant dense<0.000000e+00> : vector<16x384xf32>
    %9 = tpu.matmul %3, %8, %cst {dimension_numbers = #tpu.dot_dimension_numbers<[1], [0], [0], [1], [0, 0, 1, 1], [], []>} : vector<16x128xf32>, vector<128x384xf32>, vector<16x384xf32> -> vector<16x384xf32>
    %c0_5 = arith.constant 0 : index
    %c0_6 = arith.constant 0 : index
    %c0_7 = arith.constant 0 : index
    %10 = vector.load %arg4[%c0_5, %c0_6, %c0_7] : memref<1x1x384xf32, #tpu.memory_space<vmem>>, vector<1x1x384xf32>
    %11 = vector.shape_cast %10 : vector<1x1x384xf32> to vector<1x384xf32>
    %12 = vector.broadcast %11 : vector<1x384xf32> to vector<16x384xf32>
    %13 = arith.addf %9, %12 : vector<16x384xf32>
    %14 = vector.extract_strided_slice %13 {offsets = [0, 0], sizes = [16, 32], strides = [1, 1]} : vector<16x384xf32> to vector<16x32xf32>
    %15 = vector.shape_cast %14 : vector<16x32xf32> to vector<8x2x4x8xf32>
    %16 = tpu.transpose %15, [1, 2, 0, 3] : vector<8x2x4x8xf32> -> vector<2x4x8x8xf32>
    %17 = vector.shape_cast %16 : vector<2x4x8x8xf32> to vector<8x8x8xf32>
    %18 = vector.extract_strided_slice %13 {offsets = [0, 128], sizes = [16, 32], strides = [1, 1]} : vector<16x384xf32> to vector<16x32xf32>
    %19 = vector.shape_cast %18 : vector<16x32xf32> to vector<8x2x4x8xf32>
    %20 = tpu.transpose %19, [1, 2, 0, 3] : vector<8x2x4x8xf32> -> vector<2x4x8x8xf32>
    %21 = vector.shape_cast %20 : vector<2x4x8x8xf32> to vector<8x8x8xf32>
    %22 = vector.extract_strided_slice %13 {offsets = [0, 256], sizes = [16, 32], strides = [1, 1]} : vector<16x384xf32> to vector<16x32xf32>
    %23 = vector.shape_cast %22 : vector<16x32xf32> to vector<8x2x4x8xf32>
    %24 = tpu.transpose %23, [1, 2, 0, 3] : vector<8x2x4x8xf32> -> vector<2x4x8x8xf32>
    %25 = vector.shape_cast %24 : vector<2x4x8x8xf32> to vector<8x8x8xf32>
    "tpu.trace_start"() <{level = 10 : i32, message = "nqd,nkd->nqk"}> : () -> ()
    %cst_8 = arith.constant dense<0.000000e+00> : vector<8x8x8xf32>
    %26 = tpu.matmul %17, %21, %cst_8 {dimension_numbers = #tpu.dot_dimension_numbers<[2], [2], [1], [1], [0, 0, 0, 1, 1, 1], [0], [0]>} : vector<8x8x8xf32>, vector<8x8x8xf32>, vector<8x8x8xf32> -> vector<8x8x8xf32>
    "tpu.trace_stop"() : () -> ()
    %cst_9 = arith.constant 0.353553385 : f32
    %27 = vector.broadcast %cst_9 : f32 to vector<8x8x8xf32>
    %28 = arith.mulf %26, %27 : vector<8x8x8xf32>
    %c0_10 = arith.constant 0 : index
    %c0_11 = arith.constant 0 : index
    %29 = vector.load %arg2[%c0_10, %c0_11] : memref<8x8xf32, #tpu.memory_space<vmem>>, vector<8x8xf32>
    %30 = vector.shape_cast %29 : vector<8x8xf32> to vector<1x8x8xf32>
    %31 = vector.broadcast %30 : vector<1x8x8xf32> to vector<8x8x8xf32>
    %32 = arith.addf %28, %31 : vector<8x8x8xf32>
    %cst_12 = arith.constant dense<0xFF800000> : vector<8x8xf32>
    %33 = vector.multi_reduction <maximumf>, %32, %cst_12 [2] : vector<8x8x8xf32> to vector<8x8xf32>
    %34 = vector.shape_cast %33 : vector<8x8xf32> to vector<8x8x1xf32>
    %35 = vector.broadcast %34 : vector<8x8x1xf32> to vector<8x8x8xf32>
    %36 = arith.subf %32, %35 : vector<8x8x8xf32>
    %37 = math.exp %36 : vector<8x8x8xf32>
    %cst_13 = arith.constant dense<0.000000e+00> : vector<8x8xf32>
    %38 = vector.multi_reduction <add>, %37, %cst_13 [2] : vector<8x8x8xf32> to vector<8x8xf32>
    %39 = vector.shape_cast %38 : vector<8x8xf32> to vector<8x8x1xf32>
    %40 = tpu.reciprocal %39 {approx = true} : vector<8x8x1xf32> -> vector<8x8x1xf32>
    %41 = arith.mulf %39, %40 : vector<8x8x1xf32>
    %cst_14 = arith.constant 2.000000e+00 : f32
    %42 = vector.broadcast %cst_14 : f32 to vector<8x8x1xf32>
    %43 = arith.subf %42, %41 : vector<8x8x1xf32>
    %44 = arith.mulf %40, %43 : vector<8x8x1xf32>
    %45 = vector.broadcast %44 : vector<8x8x1xf32> to vector<8x8x8xf32>
    %46 = arith.mulf %37, %45 : vector<8x8x8xf32>
    "tpu.trace_start"() <{level = 10 : i32, message = "nqk,nkd->nqd"}> : () -> ()
    %cst_15 = arith.constant dense<0.000000e+00> : vector<8x8x8xf32>
    %47 = tpu.matmul %46, %25, %cst_15 {dimension_numbers = #tpu.dot_dimension_numbers<[2], [1], [1], [2], [0, 0, 0, 1, 1, 2], [0], [0]>} : vector<8x8x8xf32>, vector<8x8x8xf32>, vector<8x8x8xf32> -> vector<8x8x8xf32>
    "tpu.trace_stop"() : () -> ()
    %48 = vector.shape_cast %47 : vector<8x8x8xf32> to vector<2x4x8x8xf32>
    %49 = tpu.transpose %48, [2, 0, 1, 3] : vector<2x4x8x8xf32> -> vector<8x2x4x8xf32>
    %50 = vector.shape_cast %49 : vector<8x2x4x8xf32> to vector<16x32xf32>
    %c0_16 = arith.constant 0 : index
    %c0_17 = arith.constant 0 : index
    %c0_18 = arith.constant 0 : index
    %51 = vector.load %arg5[%c0_16, %c0_17, %c0_18] : memref<1x32x128xf32, #tpu.memory_space<vmem>>, vector<1x32x128xf32>
    %52 = vector.shape_cast %51 : vector<1x32x128xf32> to vector<32x128xf32>
    %cst_19 = arith.constant dense<0.000000e+00> : vector<16x128xf32>
    %53 = tpu.matmul %50, %52, %cst_19 {dimension_numbers = #tpu.dot_dimension_numbers<[1], [0], [0], [1], [0, 0, 1, 1], [], []>} : vector<16x32xf32>, vector<32x128xf32>, vector<16x128xf32> -> vector<16x128xf32>
    %c0_20 = arith.constant 0 : index
    %c0_21 = arith.constant 0 : index
    %c0_22 = arith.constant 0 : index
    %54 = vector.load %arg6[%c0_20, %c0_21, %c0_22] : memref<1x1x128xf32, #tpu.memory_space<vmem>>, vector<1x1x128xf32>
    %55 = vector.shape_cast %54 : vector<1x1x128xf32> to vector<1x128xf32>
    %56 = vector.broadcast %55 : vector<1x128xf32> to vector<16x128xf32>
    %57 = arith.addf %53, %56 : vector<16x128xf32>
    %58 = arith.addf %3, %57 : vector<16x128xf32>
    %c0_23 = arith.constant 0 : index
    %c0_24 = arith.constant 0 : index
    %c0_25 = arith.constant 0 : index
    %59 = vector.load %arg7[%c0_23, %c0_24, %c0_25] : memref<1x1x128xf32, #tpu.memory_space<vmem>>, vector<1x1x128xf32>
    %60 = vector.shape_cast %59 : vector<1x1x128xf32> to vector<1x128xf32>
    %c0_26 = arith.constant 0 : index
    %c0_27 = arith.constant 0 : index
    %c0_28 = arith.constant 0 : index
    %61 = vector.load %arg8[%c0_26, %c0_27, %c0_28] : memref<1x1x128xf32, #tpu.memory_space<vmem>>, vector<1x1x128xf32>
    %62 = vector.shape_cast %61 : vector<1x1x128xf32> to vector<1x128xf32>
    %cst_29 = arith.constant dense<0.000000e+00> : vector<16xf32>
    %63 = vector.multi_reduction <add>, %58, %cst_29 [1] : vector<16x128xf32> to vector<16xf32>
    %64 = vector.shape_cast %63 : vector<16xf32> to vector<16x1xf32>
    %cst_30 = arith.constant 3.125000e-02 : f32
    %65 = vector.broadcast %cst_30 : f32 to vector<16x1xf32>
    %66 = arith.mulf %64, %65 : vector<16x1xf32>
    %67 = vector.broadcast %66 : vector<16x1xf32> to vector<16x128xf32>
    %68 = arith.subf %58, %67 : vector<16x128xf32>
    %cst_31 = arith.constant 0.000000e+00 : f32
    %69 = vector.shape_cast %6 : vector<1x128xi1> to vector<1x128xi1>
    %70 = vector.broadcast %69 : vector<1x128xi1> to vector<16x128xi1>
    %71 = vector.broadcast %cst_31 : f32 to vector<16x128xf32>
    %72 = arith.select %70, %68, %71 : vector<16x128xi1>, vector<16x128xf32>
    %73 = arith.mulf %72, %72 : vector<16x128xf32>
    %cst_32 = arith.constant dense<0.000000e+00> : vector<16xf32>
    %74 = vector.multi_reduction <add>, %73, %cst_32 [1] : vector<16x128xf32> to vector<16xf32>
    %75 = vector.shape_cast %74 : vector<16xf32> to vector<16x1xf32>
    %cst_33 = arith.constant 3.125000e-02 : f32
    %76 = vector.broadcast %cst_33 : f32 to vector<16x1xf32>
    %77 = arith.mulf %75, %76 : vector<16x1xf32>
    %cst_34 = arith.constant 9.99999974E-6 : f32
    %78 = vector.broadcast %cst_34 : f32 to vector<16x1xf32>
    %79 = arith.addf %77, %78 : vector<16x1xf32>
    %80 = math.rsqrt %79 : vector<16x1xf32>
    %81 = vector.broadcast %80 : vector<16x1xf32> to vector<16x128xf32>
    %82 = arith.mulf %72, %81 : vector<16x128xf32>
    %83 = vector.broadcast %60 : vector<1x128xf32> to vector<16x128xf32>
    %84 = arith.mulf %82, %83 : vector<16x128xf32>
    %85 = vector.broadcast %62 : vector<1x128xf32> to vector<16x128xf32>
    %86 = arith.addf %84, %85 : vector<16x128xf32>
    %c0_35 = arith.constant 0 : index
    %c0_36 = arith.constant 0 : index
    %c0_37 = arith.constant 0 : index
    %87 = vector.load %arg9[%c0_35, %c0_36, %c0_37] : memref<1x128x128xf32, #tpu.memory_space<vmem>>, vector<1x128x128xf32>
    %88 = vector.shape_cast %87 : vector<1x128x128xf32> to vector<128x128xf32>
    %cst_38 = arith.constant dense<0.000000e+00> : vector<16x128xf32>
    %89 = tpu.matmul %86, %88, %cst_38 {dimension_numbers = #tpu.dot_dimension_numbers<[1], [0], [0], [1], [0, 0, 1, 1], [], []>} : vector<16x128xf32>, vector<128x128xf32>, vector<16x128xf32> -> vector<16x128xf32>
    %c0_39 = arith.constant 0 : index
    %c0_40 = arith.constant 0 : index
    %c0_41 = arith.constant 0 : index
    %90 = vector.load %arg10[%c0_39, %c0_40, %c0_41] : memref<1x1x128xf32, #tpu.memory_space<vmem>>, vector<1x1x128xf32>
    %91 = vector.shape_cast %90 : vector<1x1x128xf32> to vector<1x128xf32>
    %92 = vector.broadcast %91 : vector<1x128xf32> to vector<16x128xf32>
    %93 = arith.addf %89, %92 : vector<16x128xf32>
    %cst_42 = arith.constant 0.000000e+00 : f32
    %94 = vector.broadcast %cst_42 : f32 to vector<16x128xf32>
    %95 = arith.maximumf %93, %94 : vector<16x128xf32>
    %c0_43 = arith.constant 0 : index
    %c0_44 = arith.constant 0 : index
    %c0_45 = arith.constant 0 : index
    %96 = vector.load %arg11[%c0_43, %c0_44, %c0_45] : memref<1x128x128xf32, #tpu.memory_space<vmem>>, vector<1x128x128xf32>
    %97 = vector.shape_cast %96 : vector<1x128x128xf32> to vector<128x128xf32>
    %cst_46 = arith.constant dense<0.000000e+00> : vector<16x128xf32>
    %98 = tpu.matmul %95, %97, %cst_46 {dimension_numbers = #tpu.dot_dimension_numbers<[1], [0], [0], [1], [0, 0, 1, 1], [], []>} : vector<16x128xf32>, vector<128x128xf32>, vector<16x128xf32> -> vector<16x128xf32>
    %c0_47 = arith.constant 0 : index
    %c0_48 = arith.constant 0 : index
    %c0_49 = arith.constant 0 : index
    %99 = vector.load %arg12[%c0_47, %c0_48, %c0_49] : memref<1x1x128xf32, #tpu.memory_space<vmem>>, vector<1x1x128xf32>
    %100 = vector.shape_cast %99 : vector<1x1x128xf32> to vector<1x128xf32>
    %101 = vector.broadcast %100 : vector<1x128xf32> to vector<16x128xf32>
    %102 = arith.addf %98, %101 : vector<16x128xf32>
    %103 = arith.addf %86, %102 : vector<16x128xf32>
    %c0_50 = arith.constant 0 : index
    %c0_51 = arith.constant 0 : index
    %c0_52 = arith.constant 0 : index
    %104 = vector.load %arg13[%c0_50, %c0_51, %c0_52] : memref<1x1x128xf32, #tpu.memory_space<vmem>>, vector<1x1x128xf32>
    %105 = vector.shape_cast %104 : vector<1x1x128xf32> to vector<1x128xf32>
    %c0_53 = arith.constant 0 : index
    %c0_54 = arith.constant 0 : index
    %c0_55 = arith.constant 0 : index
    %106 = vector.load %arg14[%c0_53, %c0_54, %c0_55] : memref<1x1x128xf32, #tpu.memory_space<vmem>>, vector<1x1x128xf32>
    %107 = vector.shape_cast %106 : vector<1x1x128xf32> to vector<1x128xf32>
    %cst_56 = arith.constant dense<0.000000e+00> : vector<16xf32>
    %108 = vector.multi_reduction <add>, %103, %cst_56 [1] : vector<16x128xf32> to vector<16xf32>
    %109 = vector.shape_cast %108 : vector<16xf32> to vector<16x1xf32>
    %cst_57 = arith.constant 3.125000e-02 : f32
    %110 = vector.broadcast %cst_57 : f32 to vector<16x1xf32>
    %111 = arith.mulf %109, %110 : vector<16x1xf32>
    %112 = vector.broadcast %111 : vector<16x1xf32> to vector<16x128xf32>
    %113 = arith.subf %103, %112 : vector<16x128xf32>
    %cst_58 = arith.constant 0.000000e+00 : f32
    %114 = vector.shape_cast %6 : vector<1x128xi1> to vector<1x128xi1>
    %115 = vector.broadcast %114 : vector<1x128xi1> to vector<16x128xi1>
    %116 = vector.broadcast %cst_58 : f32 to vector<16x128xf32>
    %117 = arith.select %115, %113, %116 : vector<16x128xi1>, vector<16x128xf32>
    %118 = arith.mulf %117, %117 : vector<16x128xf32>
    %cst_59 = arith.constant dense<0.000000e+00> : vector<16xf32>
    %119 = vector.multi_reduction <add>, %118, %cst_59 [1] : vector<16x128xf32> to vector<16xf32>
    %120 = vector.shape_cast %119 : vector<16xf32> to vector<16x1xf32>
    %cst_60 = arith.constant 3.125000e-02 : f32
    %121 = vector.broadcast %cst_60 : f32 to vector<16x1xf32>
    %122 = arith.mulf %120, %121 : vector<16x1xf32>
    %cst_61 = arith.constant 9.99999974E-6 : f32
    %123 = vector.broadcast %cst_61 : f32 to vector<16x1xf32>
    %124 = arith.addf %122, %123 : vector<16x1xf32>
    %125 = math.rsqrt %124 : vector<16x1xf32>
    %126 = vector.broadcast %125 : vector<16x1xf32> to vector<16x128xf32>
    %127 = arith.mulf %117, %126 : vector<16x128xf32>
    %128 = vector.broadcast %105 : vector<1x128xf32> to vector<16x128xf32>
    %129 = arith.mulf %127, %128 : vector<16x128xf32>
    %130 = vector.broadcast %107 : vector<1x128xf32> to vector<16x128xf32>
    %131 = arith.addf %129, %130 : vector<16x128xf32>
    %c0_62 = arith.constant 0 : index
    %c0_63 = arith.constant 0 : index
    %132 = vector.load %arg16[%c0_62, %c0_63] : memref<16x128xf32, #tpu.memory_space<vmem>>, vector<16x128xf32>
    tpu.vector_store %arg16[%c0_62, %c0_63], %131 {strides = array<i32>} : memref<16x128xf32, #tpu.memory_space<vmem>>, vector<16x128xf32>,
    %c1_i32 = arith.constant 1 : i32
    %133 = arith.cmpi eq, %arg0, %c1_i32 : i32
    %134 = arith.extui %133 : i1 to i32
    %c0_i32_64 = arith.constant 0 : i32
    %135 = arith.cmpi ne, %134, %c0_i32_64 : i32
    scf.if %135 {
      %c0_65 = arith.constant 0 : index
      %c0_66 = arith.constant 0 : index
      %136 = vector.load %arg15[%c0_65, %c0_66] : memref<16x128xf32, #tpu.memory_space<vmem>>, vector<16x128xf32>
      tpu.vector_store %arg15[%c0_65, %c0_66], %131 {strides = array<i32>} : memref<16x128xf32, #tpu.memory_space<vmem>>, vector<16x128xf32>,
    } else {
    }
    return
  }
  func.func @transform_0(%arg0: i32) -> (i32, i32) {
    %c0_i32 = arith.constant 0 : i32
    %c0_i32_0 = arith.constant 0 : i32
    %c0_i32_1 = arith.constant 0 : i32
    return %c0_i32, %c0_i32_0 : i32, i32
  }
  func.func @transform_1(%arg0: i32) -> (i32, i32) {
    %c0_i32 = arith.constant 0 : i32
    %c0_i32_0 = arith.constant 0 : i32
    %c0_i32_1 = arith.constant 0 : i32
    return %c0_i32, %c0_i32_0 : i32, i32
  }
  func.func @transform_2(%arg0: i32) -> (i32, i32, i32) {
    %c0_i32 = arith.constant 0 : i32
    %c0_i32_0 = arith.constant 0 : i32
    %c0_i32_1 = arith.constant 0 : i32
    return %arg0, %c0_i32, %c0_i32_0 : i32, i32, i32
  }
  func.func @transform_3(%arg0: i32) -> (i32, i32, i32) {
    %c0_i32 = arith.constant 0 : i32
    %c0_i32_0 = arith.constant 0 : i32
    %c0_i32_1 = arith.constant 0 : i32
    return %arg0, %c0_i32, %c0_i32_0 : i32, i32, i32
  }
  func.func @transform_4(%arg0: i32) -> (i32, i32, i32) {
    %c0_i32 = arith.constant 0 : i32
    %c0_i32_0 = arith.constant 0 : i32
    %c0_i32_1 = arith.constant 0 : i32
    return %arg0, %c0_i32, %c0_i32_0 : i32, i32, i32
  }
  func.func @transform_5(%arg0: i32) -> (i32, i32, i32) {
    %c0_i32 = arith.constant 0 : i32
    %c0_i32_0 = arith.constant 0 : i32
    %c0_i32_1 = arith.constant 0 : i32
    return %arg0, %c0_i32, %c0_i32_0 : i32, i32, i32
  }
  func.func @transform_6(%arg0: i32) -> (i32, i32, i32) {
    %c0_i32 = arith.constant 0 : i32
    %c0_i32_0 = arith.constant 0 : i32
    %c0_i32_1 = arith.constant 0 : i32
    return %arg0, %c0_i32, %c0_i32_0 : i32, i32, i32
  }
  func.func @transform_7(%arg0: i32) -> (i32, i32, i32) {
    %c0_i32 = arith.constant 0 : i32
    %c0_i32_0 = arith.constant 0 : i32
    %c0_i32_1 = arith.constant 0 : i32
    return %arg0, %c0_i32, %c0_i32_0 : i32, i32, i32
  }
  func.func @transform_8(%arg0: i32) -> (i32, i32, i32) {
    %c0_i32 = arith.constant 0 : i32
    %c0_i32_0 = arith.constant 0 : i32
    %c0_i32_1 = arith.constant 0 : i32
    return %arg0, %c0_i32, %c0_i32_0 : i32, i32, i32
  }
  func.func @transform_9(%arg0: i32) -> (i32, i32, i32) {
    %c0_i32 = arith.constant 0 : i32
    %c0_i32_0 = arith.constant 0 : i32
    %c0_i32_1 = arith.constant 0 : i32
    return %arg0, %c0_i32, %c0_i32_0 : i32, i32, i32
  }
  func.func @transform_10(%arg0: i32) -> (i32, i32, i32) {
    %c0_i32 = arith.constant 0 : i32
    %c0_i32_0 = arith.constant 0 : i32
    %c0_i32_1 = arith.constant 0 : i32
    return %arg0, %c0_i32, %c0_i32_0 : i32, i32, i32
  }
  func.func @transform_11(%arg0: i32) -> (i32, i32, i32) {
    %c0_i32 = arith.constant 0 : i32
    %c0_i32_0 = arith.constant 0 : i32
    %c0_i32_1 = arith.constant 0 : i32
    return %arg0, %c0_i32, %c0_i32_0 : i32, i32, i32
  }
  func.func @transform_12(%arg0: i32) -> (i32, i32, i32) {
    %c0_i32 = arith.constant 0 : i32
    %c0_i32_0 = arith.constant 0 : i32
    %c0_i32_1 = arith.constant 0 : i32
    return %arg0, %c0_i32, %c0_i32_0 : i32, i32, i32
  }
  func.func @transform_13(%arg0: i32) -> (i32, i32, i32) {
    %c0_i32 = arith.constant 0 : i32
    %c0_i32_0 = arith.constant 0 : i32
    %c0_i32_1 = arith.constant 0 : i32
    return %arg0, %c0_i32, %c0_i32_0 : i32, i32, i32
  }
  func.func @transform_14(%arg0: i32) -> (i32, i32) {
    %c0_i32 = arith.constant 0 : i32
    %c0_i32_0 = arith.constant 0 : i32
    %c0_i32_1 = arith.constant 0 : i32
    return %c0_i32, %c0_i32_0 : i32, i32
  }
}

</mosaic_0001>

<llo_original>
// kernel: tpu_custom_call.1
$region0: #{tpu_custom_call.1}
  #allocation0 [shape = 'u32[]', space=smem, size = 0x4, offset = 0x4, fixed_abs, tag = 'smem constant byte address 0x4 - core index']
  #allocation1 [shape = 'u32[144,128]{1,0:T(1,128)}', space=vmem, size = 0x12000, scoped, tag = 'internal scratch']
  #allocation2 [shape = 'f32[16,128]{1,0:T(8,128)}', space=vmem, size = 0x2000, scoped, tag = 'scratch operand']
  %s0 = inlined_call_operand.hbm [shape: f32[16,128], index: 0, kind: input, shape index: {}]
  %s1 = inlined_call_operand.hbm [shape: f32[8,8], index: 1, kind: input, shape index: {}]
  %s2 = inlined_call_operand.hbm [shape: f32[2,128,384], index: 2, kind: input, shape index: {}]
  %s3 = inlined_call_operand.hbm [shape: f32[2,1,384], index: 3, kind: input, shape index: {}]
  %s4 = inlined_call_operand.hbm [shape: f32[2,32,128], index: 4, kind: input, shape index: {}]
  %s5 = inlined_call_operand.vmem [shape: f32[2,1,128], index: 5, kind: input, shape index: {}]
  %s6 = inlined_call_operand.vmem [shape: f32[2,1,128], index: 6, kind: input, shape index: {}]
  %s7 = inlined_call_operand.vmem [shape: f32[2,1,128], index: 7, kind: input, shape index: {}]
  %s8 = inlined_call_operand.hbm [shape: f32[2,128,128], index: 8, kind: input, shape index: {}]
  %s9 = inlined_call_operand.vmem [shape: f32[2,1,128], index: 9, kind: input, shape index: {}]
  %s10 = inlined_call_operand.hbm [shape: f32[2,128,128], index: 10, kind: input, shape index: {}]
  %s11 = inlined_call_operand.vmem [shape: f32[2,1,128], index: 11, kind: input, shape index: {}]
  %s12 = inlined_call_operand.vmem [shape: f32[2,1,128], index: 12, kind: input, shape index: {}]
  %s13 = inlined_call_operand.vmem [shape: f32[2,1,128], index: 13, kind: input, shape index: {}]
  %s14 = inlined_call_operand.hbm [shape: f32[16,128], index: 14, kind: output, shape index: {}]
  %s15 = sld [smem:[#allocation0]]
  $region125: #{tpu_custom_call.1} parent=0
    _
  %s17 = ssub.s32 1, %s15
  %s18 = scalar_select 0, %s17, %s15
  $region1: #{tpu_custom_call.1} parent=0
    #allocation3 [shape = 'u8[8192]{0}', space=vmem, size = 0x2000, scoped, tag = 'input window, operand 0, single buffered']
    #allocation4 [shape = 's32[2]{0}', space=sflag, size = 0x8, scoped, tag = 'scoped memory for tpu_custom_call.1']
    #allocation5 [shape = 's32[2]{0}', space=sflag, size = 0x8, scoped, tag = 'scoped memory for tpu_custom_call.1']
    #allocation6 [shape = 'u8[4096]{0}', space=vmem, size = 0x1000, scoped, tag = 'input window, operand 1, single buffered']
    #allocation7 [shape = 's32[1]{0}', space=sflag, size = 0x4, scoped, tag = 'scoped memory for tpu_custom_call.1']
    #allocation8 [shape = 'u8[393216]{0}', space=vmem, size = 0x60000, scoped, tag = 'input window, operand 2']
    #allocation9 [shape = 'u8[3072]{0}', space=vmem, size = 0xc00, scoped, tag = 'input window, operand 3']
    #allocation10 [shape = 'u8[32768]{0}', space=vmem, size = 0x8000, scoped, tag = 'input window, operand 4']
    #allocation11 [shape = 'u8[131072]{0}', space=vmem, size = 0x20000, scoped, tag = 'input window, operand 8']
    #allocation12 [shape = 'u8[131072]{0}', space=vmem, size = 0x20000, scoped, tag = 'input window, operand 10']
    #allocation13 [shape = 'u8[8192]{0}', space=vmem, size = 0x2000, scoped, tag = 'output window, operand 0, single buffered']
    %19 = vsyncpa [#allocation4], 0
    %20 = vsyncpa [#allocation7], 0
    %21 = vsyncpa [#allocation5], 0
    loop: start=0, step=1, limit=4
    $region2: #{tpu_custom_call.1} parent=1 // loop_pre_header
      _
    $region3: #{tpu_custom_call.1} parent=1 // loop_header
      %s23 = sphi 0, %s27
      %p24 = scmp.ge.s32.totalorder %s23, 4
      %s31 = sphi 0, %s31
      %s33 = sphi 0, %s31
      %s34 = sphi 0, %s33
      %s48 = sphi 0, %s34
      %s52 = sphi 0, %s52
      %s54 = sphi 0, %s52
      %s55 = sphi 0, %s54
      %s69 = sphi 0, %s55
      %s75 = sphi 0, %s77
      %s78 = sphi 0, %s75
      %s79 = sphi 0, %s78
      %s95 = sphi 0, %s79
      %s101 = sphi 0, %s103
      %s104 = sphi 0, %s101
      %s105 = sphi 0, %s104
      %s121 = sphi 0, %s105
      %s127 = sphi 0, %s129
      %s130 = sphi 0, %s127
      %s131 = sphi 0, %s130
      %s147 = sphi 0, %s131
      %s153 = sphi 0, %s155
      %s156 = sphi 0, %s153
      %s157 = sphi 0, %s156
      %s173 = sphi 0, %s157
      %s179 = sphi 0, %s181
      %s182 = sphi 0, %s179
      %s183 = sphi 0, %s182
      %s199 = sphi 0, %s183
      %s205 = sphi 0, %s207
      %s208 = sphi 0, %s205
      %s209 = sphi 0, %s208
      %s225 = sphi 0, %s209
      %s231 = sphi 0, %s233
      %s234 = sphi 0, %s231
      %s235 = sphi 0, %s234
      %s251 = sphi 0, %s235
      %s257 = sphi 0, %s259
      %s260 = sphi 0, %s257
      %s261 = sphi 0, %s260
      %s277 = sphi 0, %s261
      %s283 = sphi 0, %s285
      %s286 = sphi 0, %s283
      %s287 = sphi 0, %s286
      %s303 = sphi 0, %s287
      %s309 = sphi 0, %s311
      %s312 = sphi 0, %s309
      %s313 = sphi 0, %s312
      %s329 = sphi 0, %s313
      %s335 = sphi 0, %s337
      %s338 = sphi 0, %s335
      %s339 = sphi 0, %s338
      %s355 = sphi 0, %s339
      %s361 = sphi 0, %s363
      %s364 = sphi 0, %s361
      %s365 = sphi 0, %s364
      %s381 = sphi 0, %s365
      %s385 = sphi 0, %s385
      %s387 = sphi 0, %s385
      %s388 = sphi 0, %s387
      %s402 = sphi 0, %s388
    $region4: #{tpu_custom_call.1} parent=1 // loop_header_branch
      %26 = sbr.rel (%p24) target = $region8
    $region5: #{tpu_custom_call.1} parent=1 // loop_body
      %s28 = ssub.s32 %s23, 1
      %s29 = ssub.s32 %s23, 2
      %s30 = sadd.s32 %s23, 1
      %s32 = sadd.s32 %s31, 1
      %p35 = scmp.eq.s32.totalorder %s23, 1
      %p36 = scmp.ne.s32.totalorder %s31, %s33
      %p37 = scmp.eq.s32.totalorder %s23, 0
      %p38 = por %p36, %p37
      %p39 = scmp.ne.s32.totalorder %s31, %s33
      %p40 = scmp.eq.s32.totalorder %s28, 1
      %p41 = por %p39, %p40
      %p42 = scmp.ne.s32.totalorder %s33, %s34
      %p43 = scmp.eq.s32.totalorder %s28, 0
      %p44 = por %p42, %p43
      %p45 = scmp.ne.s32.totalorder %s33, %s34
      %p46 = scmp.eq.s32.totalorder %s29, 1
      %p47 = por %p45, %p46
      %p49 = scmp.ne.s32.totalorder %s34, %s48
      %p50 = scmp.eq.s32.totalorder %s29, 0
      %p51 = por %p49, %p50
      %s53 = sadd.s32 %s52, 1
      %p56 = scmp.eq.s32.totalorder %s23, 1
      %p57 = scmp.ne.s32.totalorder %s52, %s54
      %p58 = scmp.eq.s32.totalorder %s23, 0
      %p59 = por %p57, %p58
      %p60 = scmp.ne.s32.totalorder %s52, %s54
      %p61 = scmp.eq.s32.totalorder %s28, 1
      %p62 = por %p60, %p61
      %p63 = scmp.ne.s32.totalorder %s54, %s55
      %p64 = scmp.eq.s32.totalorder %s28, 0
      %p65 = por %p63, %p64
      %p66 = scmp.ne.s32.totalorder %s54, %s55
      %p67 = scmp.eq.s32.totalorder %s29, 1
      %p68 = por %p66, %p67
      %p70 = scmp.ne.s32.totalorder %s55, %s69
      %p71 = scmp.eq.s32.totalorder %s29, 0
      %p72 = por %p70, %p71
      %s73 = ssub.s32 %s23, %s30
      %p74 = scmp.eq.s32.totalorder %s73, 0
      %s76 = sadd.s32 %s75, 1
      %s77 = scalar_select %p74, %s75, %s76
      %p80 = pneg %p74
      %p81 = scmp.eq.s32.totalorder %s23, 1
      %p82 = por %p80, %p81
      %p83 = scmp.ne.s32.totalorder %s75, %s78
      %p84 = scmp.eq.s32.totalorder %s23, 0
      %p85 = por %p83, %p84
      %p86 = scmp.ne.s32.totalorder %s75, %s78
      %p87 = scmp.eq.s32.totalorder %s28, 1
      %p88 = por %p86, %p87
      %p89 = scmp.ne.s32.totalorder %s78, %s79
      %p90 = scmp.eq.s32.totalorder %s28, 0
      %p91 = por %p89, %p90
      %p92 = scmp.ne.s32.totalorder %s78, %s79
      %p93 = scmp.eq.s32.totalorder %s29, 1
      %p94 = por %p92, %p93
      %p96 = scmp.ne.s32.totalorder %s79, %s95
      %p97 = scmp.eq.s32.totalorder %s29, 0
      %p98 = por %p96, %p97
      %s99 = ssub.s32 %s23, %s30
      %p100 = scmp.eq.s32.totalorder %s99, 0
      %s102 = sadd.s32 %s101, 1
      %s103 = scalar_select %p100, %s101, %s102
      %p106 = pneg %p100
      %p107 = scmp.eq.s32.totalorder %s23, 1
      %p108 = por %p106, %p107
      %p109 = scmp.ne.s32.totalorder %s101, %s104
      %p110 = scmp.eq.s32.totalorder %s23, 0
      %p111 = por %p109, %p110
      %p112 = scmp.ne.s32.totalorder %s101, %s104
      %p113 = scmp.eq.s32.totalorder %s28, 1
      %p114 = por %p112, %p113
      %p115 = scmp.ne.s32.totalorder %s104, %s105
      %p116 = scmp.eq.s32.totalorder %s28, 0
      %p117 = por %p115, %p116
      %p118 = scmp.ne.s32.totalorder %s104, %s105
      %p119 = scmp.eq.s32.totalorder %s29, 1
      %p120 = por %p118, %p119
      %p122 = scmp.ne.s32.totalorder %s105, %s121
      %p123 = scmp.eq.s32.totalorder %s29, 0
      %p124 = por %p122, %p123
      %s125 = ssub.s32 %s23, %s30
      %p126 = scmp.eq.s32.totalorder %s125, 0
      %s128 = sadd.s32 %s127, 1
      %s129 = scalar_select %p126, %s127, %s128
      %p132 = pneg %p126
      %p133 = scmp.eq.s32.totalorder %s23, 1
      %p134 = por %p132, %p133
      %p135 = scmp.ne.s32.totalorder %s127, %s130
      %p136 = scmp.eq.s32.totalorder %s23, 0
      %p137 = por %p135, %p136
      %p138 = scmp.ne.s32.totalorder %s127, %s130
      %p139 = scmp.eq.s32.totalorder %s28, 1
      %p140 = por %p138, %p139
      %p141 = scmp.ne.s32.totalorder %s130, %s131
      %p142 = scmp.eq.s32.totalorder %s28, 0
      %p143 = por %p141, %p142
      %p144 = scmp.ne.s32.totalorder %s130, %s131
      %p145 = scmp.eq.s32.totalorder %s29, 1
      %p146 = por %p144, %p145
      %p148 = scmp.ne.s32.totalorder %s131, %s147
      %p149 = scmp.eq.s32.totalorder %s29, 0
      %p150 = por %p148, %p149
      %s151 = ssub.s32 %s23, %s30
      %p152 = scmp.eq.s32.totalorder %s151, 0
      %s154 = sadd.s32 %s153, 1
      %s155 = scalar_select %p152, %s153, %s154
      %p158 = pneg %p152
      %p159 = scmp.eq.s32.totalorder %s23, 1
      %p160 = por %p158, %p159
      %p161 = scmp.ne.s32.totalorder %s153, %s156
      %p162 = scmp.eq.s32.totalorder %s23, 0
      %p163 = por %p161, %p162
      %p164 = scmp.ne.s32.totalorder %s153, %s156
      %p165 = scmp.eq.s32.totalorder %s28, 1
      %p166 = por %p164, %p165
      %p167 = scmp.ne.s32.totalorder %s156, %s157
      %p168 = scmp.eq.s32.totalorder %s28, 0
      %p169 = por %p167, %p168
      %p170 = scmp.ne.s32.totalorder %s156, %s157
      %p171 = scmp.eq.s32.totalorder %s29, 1
      %p172 = por %p170, %p171
      %p174 = scmp.ne.s32.totalorder %s157, %s173
      %p175 = scmp.eq.s32.totalorder %s29, 0
      %p176 = por %p174, %p175
      %s177 = ssub.s32 %s23, %s30
      %p178 = scmp.eq.s32.totalorder %s177, 0
      %s180 = sadd.s32 %s179, 1
      %s181 = scalar_select %p178, %s179, %s180
      %p184 = pneg %p178
      %p185 = scmp.eq.s32.totalorder %s23, 1
      %p186 = por %p184, %p185
      %p187 = scmp.ne.s32.totalorder %s179, %s182
      %p188 = scmp.eq.s32.totalorder %s23, 0
      %p189 = por %p187, %p188
      %p190 = scmp.ne.s32.totalorder %s179, %s182
      %p191 = scmp.eq.s32.totalorder %s28, 1
      %p192 = por %p190, %p191
      %p193 = scmp.ne.s32.totalorder %s182, %s183
      %p194 = scmp.eq.s32.totalorder %s28, 0
      %p195 = por %p193, %p194
      %p196 = scmp.ne.s32.totalorder %s182, %s183
      %p197 = scmp.eq.s32.totalorder %s29, 1
      %p198 = por %p196, %p197
      %p200 = scmp.ne.s32.totalorder %s183, %s199
      %p201 = scmp.eq.s32.totalorder %s29, 0
      %p202 = por %p200, %p201
      %s203 = ssub.s32 %s23, %s30
      %p204 = scmp.eq.s32.totalorder %s203, 0
      %s206 = sadd.s32 %s205, 1
      %s207 = scalar_select %p204, %s205, %s206
      %p210 = pneg %p204
      %p211 = scmp.eq.s32.totalorder %s23, 1
      %p212 = por %p210, %p211
      %p213 = scmp.ne.s32.totalorder %s205, %s208
      %p214 = scmp.eq.s32.totalorder %s23, 0
      %p215 = por %p213, %p214
      %p216 = scmp.ne.s32.totalorder %s205, %s208
      %p217 = scmp.eq.s32.totalorder %s28, 1
      %p218 = por %p216, %p217
      %p219 = scmp.ne.s32.totalorder %s208, %s209
      %p220 = scmp.eq.s32.totalorder %s28, 0
      %p221 = por %p219, %p220
      %p222 = scmp.ne.s32.totalorder %s208, %s209
      %p223 = scmp.eq.s32.totalorder %s29, 1
      %p224 = por %p222, %p223
      %p226 = scmp.ne.s32.totalorder %s209, %s225
      %p227 = scmp.eq.s32.totalorder %s29, 0
      %p228 = por %p226, %p227
      %s229 = ssub.s32 %s23, %s30
      %p230 = scmp.eq.s32.totalorder %s229, 0
      %s232 = sadd.s32 %s231, 1
      %s233 = scalar_select %p230, %s231, %s232
      %p236 = pneg %p230
      %p237 = scmp.eq.s32.totalorder %s23, 1
      %p238 = por %p236, %p237
      %p239 = scmp.ne.s32.totalorder %s231, %s234
      %p240 = scmp.eq.s32.totalorder %s23, 0
      %p241 = por %p239, %p240
      %p242 = scmp.ne.s32.totalorder %s231, %s234
      %p243 = scmp.eq.s32.totalorder %s28, 1
      %p244 = por %p242, %p243
      %p245 = scmp.ne.s32.totalorder %s234, %s235
      %p246 = scmp.eq.s32.totalorder %s28, 0
      %p247 = por %p245, %p246
      %p248 = scmp.ne.s32.totalorder %s234, %s235
      %p249 = scmp.eq.s32.totalorder %s29, 1
      %p250 = por %p248, %p249
      %p252 = scmp.ne.s32.totalorder %s235, %s251
      %p253 = scmp.eq.s32.totalorder %s29, 0
      %p254 = por %p252, %p253
      %s255 = ssub.s32 %s23, %s30
      %p256 = scmp.eq.s32.totalorder %s255, 0
      %s258 = sadd.s32 %s257, 1
      %s259 = scalar_select %p256, %s257, %s258
      %p262 = pneg %p256
      %p263 = scmp.eq.s32.totalorder %s23, 1
      %p264 = por %p262, %p263
      %p265 = scmp.ne.s32.totalorder %s257, %s260
      %p266 = scmp.eq.s32.totalorder %s23, 0
      %p267 = por %p265, %p266
      %p268 = scmp.ne.s32.totalorder %s257, %s260
      %p269 = scmp.eq.s32.totalorder %s28, 1
      %p270 = por %p268, %p269
      %p271 = scmp.ne.s32.totalorder %s260, %s261
      %p272 = scmp.eq.s32.totalorder %s28, 0
      %p273 = por %p271, %p272
      %p274 = scmp.ne.s32.totalorder %s260, %s261
      %p275 = scmp.eq.s32.totalorder %s29, 1
      %p276 = por %p274, %p275
      %p278 = scmp.ne.s32.totalorder %s261, %s277
      %p279 = scmp.eq.s32.totalorder %s29, 0
      %p280 = por %p278, %p279
      %s281 = ssub.s32 %s23, %s30
      %p282 = scmp.eq.s32.totalorder %s281, 0
      %s284 = sadd.s32 %s283, 1
      %s285 = scalar_select %p282, %s283, %s284
      %p288 = pneg %p282
      %p289 = scmp.eq.s32.totalorder %s23, 1
      %p290 = por %p288, %p289
      %p291 = scmp.ne.s32.totalorder %s283, %s286
      %p292 = scmp.eq.s32.totalorder %s23, 0
      %p293 = por %p291, %p292
      %p294 = scmp.ne.s32.totalorder %s283, %s286
      %p295 = scmp.eq.s32.totalorder %s28, 1
      %p296 = por %p294, %p295
      %p297 = scmp.ne.s32.totalorder %s286, %s287
      %p298 = scmp.eq.s32.totalorder %s28, 0
      %p299 = por %p297, %p298
      %p300 = scmp.ne.s32.totalorder %s286, %s287
      %p301 = scmp.eq.s32.totalorder %s29, 1
      %p302 = por %p300, %p301
      %p304 = scmp.ne.s32.totalorder %s287, %s303
      %p305 = scmp.eq.s32.totalorder %s29, 0
      %p306 = por %p304, %p305
      %s307 = ssub.s32 %s23, %s30
      %p308 = scmp.eq.s32.totalorder %s307, 0
      %s310 = sadd.s32 %s309, 1
      %s311 = scalar_select %p308, %s309, %s310
      %p314 = pneg %p308
      %p315 = scmp.eq.s32.totalorder %s23, 1
      %p316 = por %p314, %p315
      %p317 = scmp.ne.s32.totalorder %s309, %s312
      %p318 = scmp.eq.s32.totalorder %s23, 0
      %p319 = por %p317, %p318
      %p320 = scmp.ne.s32.totalorder %s309, %s312
      %p321 = scmp.eq.s32.totalorder %s28, 1
      %p322 = por %p320, %p321
      %p323 = scmp.ne.s32.totalorder %s312, %s313
      %p324 = scmp.eq.s32.totalorder %s28, 0
      %p325 = por %p323, %p324
      %p326 = scmp.ne.s32.totalorder %s312, %s313
      %p327 = scmp.eq.s32.totalorder %s29, 1
      %p328 = por %p326, %p327
      %p330 = scmp.ne.s32.totalorder %s313, %s329
      %p331 = scmp.eq.s32.totalorder %s29, 0
      %p332 = por %p330, %p331
      %s333 = ssub.s32 %s23, %s30
      %p334 = scmp.eq.s32.totalorder %s333, 0
      %s336 = sadd.s32 %s335, 1
      %s337 = scalar_select %p334, %s335, %s336
      %p340 = pneg %p334
      %p341 = scmp.eq.s32.totalorder %s23, 1
      %p342 = por %p340, %p341
      %p343 = scmp.ne.s32.totalorder %s335, %s338
      %p344 = scmp.eq.s32.totalorder %s23, 0
      %p345 = por %p343, %p344
      %p346 = scmp.ne.s32.totalorder %s335, %s338
      %p347 = scmp.eq.s32.totalorder %s28, 1
      %p348 = por %p346, %p347
      %p349 = scmp.ne.s32.totalorder %s338, %s339
      %p350 = scmp.eq.s32.totalorder %s28, 0
      %p351 = por %p349, %p350
      %p352 = scmp.ne.s32.totalorder %s338, %s339
      %p353 = scmp.eq.s32.totalorder %s29, 1
      %p354 = por %p352, %p353
      %p356 = scmp.ne.s32.totalorder %s339, %s355
      %p357 = scmp.eq.s32.totalorder %s29, 0
      %p358 = por %p356, %p357
      %s359 = ssub.s32 %s23, %s30
      %p360 = scmp.eq.s32.totalorder %s359, 0
      %s362 = sadd.s32 %s361, 1
      %s363 = scalar_select %p360, %s361, %s362
      %p366 = pneg %p360
      %p367 = scmp.eq.s32.totalorder %s23, 1
      %p368 = por %p366, %p367
      %p369 = scmp.ne.s32.totalorder %s361, %s364
      %p370 = scmp.eq.s32.totalorder %s23, 0
      %p371 = por %p369, %p370
      %p372 = scmp.ne.s32.totalorder %s361, %s364
      %p373 = scmp.eq.s32.totalorder %s28, 1
      %p374 = por %p372, %p373
      %p375 = scmp.ne.s32.totalorder %s364, %s365
      %p376 = scmp.eq.s32.totalorder %s28, 0
      %p377 = por %p375, %p376
      %p378 = scmp.ne.s32.totalorder %s364, %s365
      %p379 = scmp.eq.s32.totalorder %s29, 1
      %p380 = por %p378, %p379
      %p382 = scmp.ne.s32.totalorder %s365, %s381
      %p383 = scmp.eq.s32.totalorder %s29, 0
      %p384 = por %p382, %p383
      %s386 = sadd.s32 %s385, 1
      %p389 = scmp.eq.s32.totalorder %s23, 1
      %p390 = scmp.ne.s32.totalorder %s385, %s387
      %p391 = scmp.eq.s32.totalorder %s23, 0
      %p392 = por %p390, %p391
      %p393 = scmp.ne.s32.totalorder %s385, %s387
      %p394 = scmp.eq.s32.totalorder %s28, 1
      %p395 = por %p393, %p394
      %p396 = scmp.ne.s32.totalorder %s387, %s388
      %p397 = scmp.eq.s32.totalorder %s28, 0
      %p398 = por %p396, %p397
      %p399 = scmp.ne.s32.totalorder %s387, %s388
      %p400 = scmp.eq.s32.totalorder %s29, 1
      %p401 = por %p399, %p400
      %p403 = scmp.ne.s32.totalorder %s388, %s402
      %p404 = scmp.eq.s32.totalorder %s29, 0
      %p405 = por %p403, %p404
      %p406 = scmp.le.s32.totalorder 1, %s23
      %p407 = scmp.lt.s32.totalorder %s23, 3
      %p408 = pnand %p406, %p407
      %p409 = pneg %p408
      // Predicated region
      $region9: #{tpu_custom_call.1} parent=5 // pred_check
        _
      $region10: #{tpu_custom_call.1} parent=5 // pred_check_branch
        %411 = sbr.rel (%p408) target = $region12
      $region11: #{tpu_custom_call.1} parent=5 // pred_region
        %s412 = ssub.s32 %s23, 1
        // Predicated region
        $region13: #{tpu_custom_call.1} parent=11 // pred_check
          %p413 = pneg %p44
        $region14: #{tpu_custom_call.1} parent=11 // pred_check_branch
          %415 = sbr.rel (%p413) target = $region16
        $region15: #{tpu_custom_call.1} parent=11 // pred_region
          %s417 = ssub.s32 256, 256
          %418 = vsyncadd [#allocation4], %s417
          %s419 = sshll.u32 [#allocation3], 4
          %s420 = int_to_ptr.vmem [resolvable:$true] %s419
          %425 = dma.hbm_to_vmem [thread:$0]  %s0, 256, %s420, [#allocation4], 128, 128, 8
        $region16: #{tpu_custom_call.1} parent=11 // pred_fallthru
          _
        // Predicated region
        $region17: #{tpu_custom_call.1} parent=11 // pred_check
          %p426 = pneg %p65
        $region18: #{tpu_custom_call.1} parent=11 // pred_check_branch
          %428 = sbr.rel (%p426) target = $region20
        $region19: #{tpu_custom_call.1} parent=11 // pred_region
          %s430 = ssub.s32 128, 128
          %431 = vsyncadd [#allocation7], %s430
          %s433 = sshll.u32 [#allocation6], 4
          %s434 = int_to_ptr.vmem [resolvable:$true] %s433
          %436 = dma.hbm_to_vmem [thread:$0]  %s1, 128, %s434, [#allocation7]
        $region20: #{tpu_custom_call.1} parent=11 // pred_fallthru
          _
      $region12: #{tpu_custom_call.1} parent=5 // pred_fallthru
        _
      %p437 = scmp.lt.s32.totalorder %s23, 2
      // Predicated region
      $region21: #{tpu_custom_call.1} parent=5 // pred_check
        %p438 = pneg %p437
      $region22: #{tpu_custom_call.1} parent=5 // pred_check_branch
        %440 = sbr.rel (%p438) target = $region24
      $region23: #{tpu_custom_call.1} parent=5 // pred_region
        // Predicated region
        $region25: #{tpu_custom_call.1} parent=23 // pred_check
          %p441 = pneg %p85
        $region26: #{tpu_custom_call.1} parent=23 // pred_check_branch
          %443 = sbr.rel (%p441) target = $region28
        $region27: #{tpu_custom_call.1} parent=23 // pred_region
          %s444 = sand.u32 %s23, 1
          %s445 = scalar_lea.sflag [#allocation4], %s444
          %s446 = sand.u32 %s75, 1
          %s447 = smul.addr %s446, 384
          %s448 = scalar_lea.vmem [#allocation8], %s447
          %s450 = ssub.s32 6144, 6144
          %451 = vsyncadd %s445, %s450
          %s452 = smul.addr %s23, 48
          %s453 = smul.addr %s452, 128
          %s454 = scalar_lea.hbm %s2, %s453
          %s455 = sshll.u32 %s448, 4
          %s456 = int_to_ptr.vmem [resolvable:$true] %s455
          %461 = dma.hbm_to_vmem [thread:$0]  %s454, 6144, %s456, %s445, 384, 384, 24
        $region28: #{tpu_custom_call.1} parent=23 // pred_fallthru
          _
        // Predicated region
        $region29: #{tpu_custom_call.1} parent=23 // pred_check
          %p462 = pneg %p111
        $region30: #{tpu_custom_call.1} parent=23 // pred_check_branch
          %464 = sbr.rel (%p462) target = $region32
        $region31: #{tpu_custom_call.1} parent=23 // pred_region
          %s465 = sand.u32 %s23, 1
          %s466 = scalar_lea.sflag [#allocation4], %s465
          %s467 = sand.u32 %s101, 1
          %s468 = smul.addr %s467, 3
          %s469 = scalar_lea.vmem [#allocation9], %s468
          %s471 = ssub.s32 48, 48
          %472 = vsyncadd %s466, %s471
          %s473 = smul.addr %s23, 3
          %s474 = smul.addr %s473, 16
          %s475 = scalar_lea.hbm %s3, %s474
          %s477 = sshll.u32 %s469, 4
          %s478 = int_to_ptr.vmem [resolvable:$true] %s477
          %480 = dma.hbm_to_vmem [thread:$0]  %s475, 48, %s478, %s466
        $region32: #{tpu_custom_call.1} parent=23 // pred_fallthru
          _
        // Predicated region
        $region33: #{tpu_custom_call.1} parent=23 // pred_check
          %p481 = pneg %p137
        $region34: #{tpu_custom_call.1} parent=23 // pred_check_branch
          %483 = sbr.rel (%p481) target = $region36
        $region35: #{tpu_custom_call.1} parent=23 // pred_region
          %s484 = sand.u32 %s23, 1
          %s485 = scalar_lea.sflag [#allocation4], %s484
          %s486 = sand.u32 %s127, 1
          %s487 = smul.addr %s486, 32
          %s488 = scalar_lea.vmem [#allocation10], %s487
          %s490 = ssub.s32 512, 512
          %491 = vsyncadd %s485, %s490
          %s492 = smul.addr %s23, 4
          %s493 = smul.addr %s492, 128
          %s494 = scalar_lea.hbm %s4, %s493
          %s495 = sshll.u32 %s488, 4
          %s496 = int_to_ptr.vmem [resolvable:$true] %s495
          %501 = dma.hbm_to_vmem [thread:$0]  %s494, 512, %s496, %s485, 128, 128, 8
        $region36: #{tpu_custom_call.1} parent=23 // pred_fallthru
          _
        // Predicated region
        $region37: #{tpu_custom_call.1} parent=23 // pred_check
          %p502 = pneg %p163
        $region38: #{tpu_custom_call.1} parent=23 // pred_check_branch
          %504 = sbr.rel (%p502) target = $region40
        $region39: #{tpu_custom_call.1} parent=23 // pred_region
          %p505 = scmp.lt.s32.totalorder %s23, 1
          %s506 = scalar_select %p505, %s23, 1
          %s507 = scalar_lea.vmem %s5, %s506
        $region40: #{tpu_custom_call.1} parent=23 // pred_fallthru
          _
        // Predicated region
        $region41: #{tpu_custom_call.1} parent=23 // pred_check
          %p508 = pneg %p189
        $region42: #{tpu_custom_call.1} parent=23 // pred_check_branch
          %510 = sbr.rel (%p508) target = $region44
        $region43: #{tpu_custom_call.1} parent=23 // pred_region
          %p511 = scmp.lt.s32.totalorder %s23, 1
          %s512 = scalar_select %p511, %s23, 1
          %s513 = scalar_lea.vmem %s6, %s512
        $region44: #{tpu_custom_call.1} parent=23 // pred_fallthru
          _
        // Predicated region
        $region45: #{tpu_custom_call.1} parent=23 // pred_check
          %p514 = pneg %p215
        $region46: #{tpu_custom_call.1} parent=23 // pred_check_branch
          %516 = sbr.rel (%p514) target = $region48
        $region47: #{tpu_custom_call.1} parent=23 // pred_region
          %p517 = scmp.lt.s32.totalorder %s23, 1
          %s518 = scalar_select %p517, %s23, 1
          %s519 = scalar_lea.vmem %s7, %s518
        $region48: #{tpu_custom_call.1} parent=23 // pred_fallthru
          _
        // Predicated region
        $region49: #{tpu_custom_call.1} parent=23 // pred_check
          %p520 = pneg %p241
        $region50: #{tpu_custom_call.1} parent=23 // pred_check_branch
          %522 = sbr.rel (%p520) target = $region52
        $region51: #{tpu_custom_call.1} parent=23 // pred_region
          %s523 = sand.u32 %s23, 1
          %s524 = scalar_lea.sflag [#allocation4], %s523
          %s525 = sand.u32 %s231, 1
          %s526 = smul.addr %s525, 128
          %s527 = scalar_lea.vmem [#allocation11], %s526
          %s529 = ssub.s32 2048, 2048
          %530 = vsyncadd %s524, %s529
          %s531 = smul.addr %s23, 16
          %s532 = smul.addr %s531, 128
          %s533 = scalar_lea.hbm %s8, %s532
          %s534 = sshll.u32 %s527, 4
          %s535 = int_to_ptr.vmem [resolvable:$true] %s534
          %540 = dma.hbm_to_vmem [thread:$0]  %s533, 2048, %s535, %s524, 128, 128, 8
        $region52: #{tpu_custom_call.1} parent=23 // pred_fallthru
          _
        // Predicated region
        $region53: #{tpu_custom_call.1} parent=23 // pred_check
          %p541 = pneg %p267
        $region54: #{tpu_custom_call.1} parent=23 // pred_check_branch
          %543 = sbr.rel (%p541) target = $region56
        $region55: #{tpu_custom_call.1} parent=23 // pred_region
          %p544 = scmp.lt.s32.totalorder %s23, 1
          %s545 = scalar_select %p544, %s23, 1
          %s546 = scalar_lea.vmem %s9, %s545
        $region56: #{tpu_custom_call.1} parent=23 // pred_fallthru
          _
        // Predicated region
        $region57: #{tpu_custom_call.1} parent=23 // pred_check
          %p547 = pneg %p293
        $region58: #{tpu_custom_call.1} parent=23 // pred_check_branch
          %549 = sbr.rel (%p547) target = $region60
        $region59: #{tpu_custom_call.1} parent=23 // pred_region
          %s550 = sand.u32 %s23, 1
          %s551 = scalar_lea.sflag [#allocation4], %s550
          %s552 = sand.u32 %s283, 1
          %s553 = smul.addr %s552, 128
          %s554 = scalar_lea.vmem [#allocation12], %s553
          %s556 = ssub.s32 2048, 2048
          %557 = vsyncadd %s551, %s556
          %s558 = smul.addr %s23, 16
          %s559 = smul.addr %s558, 128
          %s560 = scalar_lea.hbm %s10, %s559
          %s561 = sshll.u32 %s554, 4
          %s562 = int_to_ptr.vmem [resolvable:$true] %s561
          %567 = dma.hbm_to_vmem [thread:$0]  %s560, 2048, %s562, %s551, 128, 128, 8
        $region60: #{tpu_custom_call.1} parent=23 // pred_fallthru
          _
        // Predicated region
        $region61: #{tpu_custom_call.1} parent=23 // pred_check
          %p568 = pneg %p319
        $region62: #{tpu_custom_call.1} parent=23 // pred_check_branch
          %570 = sbr.rel (%p568) target = $region64
        $region63: #{tpu_custom_call.1} parent=23 // pred_region
          %p571 = scmp.lt.s32.totalorder %s23, 1
          %s572 = scalar_select %p571, %s23, 1
          %s573 = scalar_lea.vmem %s11, %s572
        $region64: #{tpu_custom_call.1} parent=23 // pred_fallthru
          _
        // Predicated region
        $region65: #{tpu_custom_call.1} parent=23 // pred_check
          %p574 = pneg %p345
        $region66: #{tpu_custom_call.1} parent=23 // pred_check_branch
          %576 = sbr.rel (%p574) target = $region68
        $region67: #{tpu_custom_call.1} parent=23 // pred_region
          %p577 = scmp.lt.s32.totalorder %s23, 1
          %s578 = scalar_select %p577, %s23, 1
          %s579 = scalar_lea.vmem %s12, %s578
        $region68: #{tpu_custom_call.1} parent=23 // pred_fallthru
          _
        // Predicated region
        $region69: #{tpu_custom_call.1} parent=23 // pred_check
          %p580 = pneg %p371
        $region70: #{tpu_custom_call.1} parent=23 // pred_check_branch
          %582 = sbr.rel (%p580) target = $region72
        $region71: #{tpu_custom_call.1} parent=23 // pred_region
          %p583 = scmp.lt.s32.totalorder %s23, 1
          %s584 = scalar_select %p583, %s23, 1
          %s585 = scalar_lea.vmem %s13, %s584
        $region72: #{tpu_custom_call.1} parent=23 // pred_fallthru
          _
      $region24: #{tpu_custom_call.1} parent=5 // pred_fallthru
        _
      %p586 = scmp.le.s32.totalorder 1, %s23
      %p587 = scmp.lt.s32.totalorder %s23, 3
      %p588 = pnand %p586, %p587
      %p589 = pneg %p588
      // Predicated region
      $region73: #{tpu_custom_call.1} parent=5 // pred_check
        _
      $region74: #{tpu_custom_call.1} parent=5 // pred_check_branch
        %591 = sbr.rel (%p588) target = $region76
      $region75: #{tpu_custom_call.1} parent=5 // pred_region
        %s592 = ssub.s32 %s23, 1
        // Predicated region
        $region77: #{tpu_custom_call.1} parent=75 // pred_check
          %p593 = pneg %p44
        $region78: #{tpu_custom_call.1} parent=75 // pred_check_branch
          %595 = sbr.rel (%p593) target = $region80
        $region79: #{tpu_custom_call.1} parent=75 // pred_region
          %596 = dma.done [#allocation4], 256
        $region80: #{tpu_custom_call.1} parent=75 // pred_fallthru
          _
        // Predicated region
        $region81: #{tpu_custom_call.1} parent=75 // pred_check
          %p597 = pneg %p65
        $region82: #{tpu_custom_call.1} parent=75 // pred_check_branch
          %599 = sbr.rel (%p597) target = $region84
        $region83: #{tpu_custom_call.1} parent=75 // pred_region
          %600 = dma.done [#allocation7], 128
        $region84: #{tpu_custom_call.1} parent=75 // pred_fallthru
          _
        %s601 = sand.u32 %s28, 1
        %s602 = scalar_lea.sflag [#allocation4], %s601
        %s603 = sand.u32 %s78, 1
        %s604 = smul.addr %s603, 384
        %s605 = scalar_lea.vmem [#allocation8], %s604
        // Predicated region
        $region85: #{tpu_custom_call.1} parent=75 // pred_check
          %p606 = pneg %p91
        $region86: #{tpu_custom_call.1} parent=75 // pred_check_branch
          %608 = sbr.rel (%p606) target = $region88
        $region87: #{tpu_custom_call.1} parent=75 // pred_region
          %609 = dma.done %s602, 6144
        $region88: #{tpu_custom_call.1} parent=75 // pred_fallthru
          _
        %s610 = sand.u32 %s28, 1
        %s611 = scalar_lea.sflag [#allocation4], %s610
        %s612 = sand.u32 %s104, 1
        %s613 = smul.addr %s612, 3
        %s614 = scalar_lea.vmem [#allocation9], %s613
        // Predicated region
        $region89: #{tpu_custom_call.1} parent=75 // pred_check
          %p615 = pneg %p117
        $region90: #{tpu_custom_call.1} parent=75 // pred_check_branch
          %617 = sbr.rel (%p615) target = $region92
        $region91: #{tpu_custom_call.1} parent=75 // pred_region
          %618 = dma.done %s611, 48
        $region92: #{tpu_custom_call.1} parent=75 // pred_fallthru
          _
        %s619 = sand.u32 %s28, 1
        %s620 = scalar_lea.sflag [#allocation4], %s619
        %s621 = sand.u32 %s130, 1
        %s622 = smul.addr %s621, 32
        %s623 = scalar_lea.vmem [#allocation10], %s622
        // Predicated region
        $region93: #{tpu_custom_call.1} parent=75 // pred_check
          %p624 = pneg %p143
        $region94: #{tpu_custom_call.1} parent=75 // pred_check_branch
          %626 = sbr.rel (%p624) target = $region96
        $region95: #{tpu_custom_call.1} parent=75 // pred_region
          %627 = dma.done %s620, 512
        $region96: #{tpu_custom_call.1} parent=75 // pred_fallthru
          _
        %s628 = sand.u32 %s28, 1
        %s629 = scalar_lea.sflag [#allocation4], %s628
        %s630 = sand.u32 %s234, 1
        %s631 = smul.addr %s630, 128
        %s632 = scalar_lea.vmem [#allocation11], %s631
        // Predicated region
        $region97: #{tpu_custom_call.1} parent=75 // pred_check
          %p633 = pneg %p247
        $region98: #{tpu_custom_call.1} parent=75 // pred_check_branch
          %635 = sbr.rel (%p633) target = $region100
        $region99: #{tpu_custom_call.1} parent=75 // pred_region
          %636 = dma.done %s629, 2048
        $region100: #{tpu_custom_call.1} parent=75 // pred_fallthru
          _
        %s637 = sand.u32 %s28, 1
        %s638 = scalar_lea.sflag [#allocation4], %s637
        %s639 = sand.u32 %s286, 1
        %s640 = smul.addr %s639, 128
        %s641 = scalar_lea.vmem [#allocation12], %s640
        // Predicated region
        $region101: #{tpu_custom_call.1} parent=75 // pred_check
          %p642 = pneg %p299
        $region102: #{tpu_custom_call.1} parent=75 // pred_check_branch
          %644 = sbr.rel (%p642) target = $region104
        $region103: #{tpu_custom_call.1} parent=75 // pred_region
          %645 = dma.done %s638, 2048
        $region104: #{tpu_custom_call.1} parent=75 // pred_fallthru
          _
        %p646 = pneg %p44
        %p647 = pneg %p41
        %p648 = pneg %p65
        %p649 = pneg %p62
        %s650 = sand.u32 %s28, 1
        %s651 = scalar_lea.sflag [#allocation4], %s650
        %s652 = sand.u32 %s78, 1
        %s653 = smul.addr %s652, 384
        %s654 = scalar_lea.vmem [#allocation8], %s653
        %p655 = pneg %p91
        %p656 = pneg %p88
        %s657 = sand.u32 %s28, 1
        %s658 = scalar_lea.sflag [#allocation4], %s657
        %s659 = sand.u32 %s104, 1
        %s660 = smul.addr %s659, 3
        %s661 = scalar_lea.vmem [#allocation9], %s660
        %p662 = pneg %p117
        %p663 = pneg %p114
        %s664 = sand.u32 %s28, 1
        %s665 = scalar_lea.sflag [#allocation4], %s664
        %s666 = sand.u32 %s130, 1
        %s667 = smul.addr %s666, 32
        %s668 = scalar_lea.vmem [#allocation10], %s667
        %p669 = pneg %p143
        %p670 = pneg %p140
        %p671 = scmp.lt.s32.totalorder %s28, 1
        %s672 = scalar_select %p671, %s28, 1
        %s673 = scalar_lea.vmem %s5, %s672
        %p674 = pneg %p169
        %p675 = pneg %p166
        %p676 = scmp.lt.s32.totalorder %s28, 1
        %s677 = scalar_select %p676, %s28, 1
        %s678 = scalar_lea.vmem %s6, %s677
        %p679 = pneg %p195
        %p680 = pneg %p192
        %p681 = scmp.lt.s32.totalorder %s28, 1
        %s682 = scalar_select %p681, %s28, 1
        %s683 = scalar_lea.vmem %s7, %s682
        %p684 = pneg %p221
        %p685 = pneg %p218
        %s686 = sand.u32 %s28, 1
        %s687 = scalar_lea.sflag [#allocation4], %s686
        %s688 = sand.u32 %s234, 1
        %s689 = smul.addr %s688, 128
        %s690 = scalar_lea.vmem [#allocation11], %s689
        %p691 = pneg %p247
        %p692 = pneg %p244
        %p693 = scmp.lt.s32.totalorder %s28, 1
        %s694 = scalar_select %p693, %s28, 1
        %s695 = scalar_lea.vmem %s9, %s694
        %p696 = pneg %p273
        %p697 = pneg %p270
        %s698 = sand.u32 %s28, 1
        %s699 = scalar_lea.sflag [#allocation4], %s698
        %s700 = sand.u32 %s286, 1
        %s701 = smul.addr %s700, 128
        %s702 = scalar_lea.vmem [#allocation12], %s701
        %p703 = pneg %p299
        %p704 = pneg %p296
        %p705 = scmp.lt.s32.totalorder %s28, 1
        %s706 = scalar_select %p705, %s28, 1
        %s707 = scalar_lea.vmem %s11, %s706
        %p708 = pneg %p325
        %p709 = pneg %p322
        %p710 = scmp.lt.s32.totalorder %s28, 1
        %s711 = scalar_select %p710, %s28, 1
        %s712 = scalar_lea.vmem %s12, %s711
        %p713 = pneg %p351
        %p714 = pneg %p348
        %p715 = scmp.lt.s32.totalorder %s28, 1
        %s716 = scalar_select %p715, %s28, 1
        %s717 = scalar_lea.vmem %s13, %s716
        %p718 = pneg %p377
        %p719 = pneg %p374
        %p720 = pneg %p398
        %p721 = pneg %p395
        %p722 = scmp.lt.s32.totalorder %s28, 1
        %s723 = scalar_select %p722, %s28, 1
        %s724 = scalar_lea.vmem %s5, %s723
        %p725 = scmp.lt.s32.totalorder %s28, 1
        %s726 = scalar_select %p725, %s28, 1
        %s727 = scalar_lea.vmem %s6, %s726
        %p728 = scmp.lt.s32.totalorder %s28, 1
        %s729 = scalar_select %p728, %s28, 1
        %s730 = scalar_lea.vmem %s7, %s729
        %p731 = scmp.lt.s32.totalorder %s28, 1
        %s732 = scalar_select %p731, %s28, 1
        %s733 = scalar_lea.vmem %s9, %s732
        %p734 = scmp.lt.s32.totalorder %s28, 1
        %s735 = scalar_select %p734, %s28, 1
        %s736 = scalar_lea.vmem %s11, %s735
        %p737 = scmp.lt.s32.totalorder %s28, 1
        %s738 = scalar_select %p737, %s28, 1
        %s739 = scalar_lea.vmem %s12, %s738
        %p740 = scmp.lt.s32.totalorder %s28, 1
        %s741 = scalar_select %p740, %s28, 1
        %s742 = scalar_lea.vmem %s13, %s741
        %p743 = scmp.eq.s32.totalorder %s28, 0
        // Predicated region
        $region105: #{tpu_custom_call.1} parent=75 // pred_check
          %p744 = pneg %p743
        $region106: #{tpu_custom_call.1} parent=75 // pred_check_branch
          %746 = sbr.rel (%p744) target = $region108
        $region107: #{tpu_custom_call.1} parent=75 // pred_region
          %v747 = vld [vmem:[#allocation3] sm:$0xff]
          %v748 = vld [vmem:[#allocation3 + $0x8] sm:$0xff]
          %749 = vst [vmem:[#allocation2] sm:$0xff] %v747
          %750 = vst [vmem:[#allocation2 + $0x8] sm:$0xff] %v748
        $region108: #{tpu_custom_call.1} parent=75 // pred_fallthru
          _
        %v751 = vld [vmem:[#allocation2] sm:$0xff]
        %v752 = vld [vmem:[#allocation2 + $0x8] sm:$0xff]
        %v753 = vlaneseq
        %v754 = vand.u32 %v753, 127
        %vm755 = vcmp.lt.s32.totalorder %v754, 32
        %v756 = vld [vmem:[%s605] sm:$0xff]
        %v757 = vld [vmem:[%s605 + $0x8] sm:$0xff]
        %v758 = vld [vmem:[%s605 + $0x10] sm:$0xff]
        %v759 = vld [vmem:[%s605 + $0x18] sm:$0xff]
        %v760 = vld [vmem:[%s605 + $0x20] sm:$0xff]
        %v761 = vld [vmem:[%s605 + $0x28] sm:$0xff]
        %v762 = vld [vmem:[%s605 + $0x30] sm:$0xff]
        %v763 = vld [vmem:[%s605 + $0x38] sm:$0xff]
        %v764 = vld [vmem:[%s605 + $0x40] sm:$0xff]
        %v765 = vld [vmem:[%s605 + $0x48] sm:$0xff]
        %v766 = vld [vmem:[%s605 + $0x50] sm:$0xff]
        %v767 = vld [vmem:[%s605 + $0x58] sm:$0xff]
        %v768 = vld [vmem:[%s605 + $0x60] sm:$0xff]
        %v769 = vld [vmem:[%s605 + $0x68] sm:$0xff]
        %v770 = vld [vmem:[%s605 + $0x70] sm:$0xff]
        %v771 = vld [vmem:[%s605 + $0x78] sm:$0xff]
        %v772 = vld [vmem:[%s605 + $0x80] sm:$0xff]
        %v773 = vld [vmem:[%s605 + $0x88] sm:$0xff]
        %v774 = vld [vmem:[%s605 + $0x90] sm:$0xff]
        %v775 = vld [vmem:[%s605 + $0x98] sm:$0xff]
        %v776 = vld [vmem:[%s605 + $0xa0] sm:$0xff]
        %v777 = vld [vmem:[%s605 + $0xa8] sm:$0xff]
        %v778 = vld [vmem:[%s605 + $0xb0] sm:$0xff]
        %v779 = vld [vmem:[%s605 + $0xb8] sm:$0xff]
        %v780 = vld [vmem:[%s605 + $0xc0] sm:$0xff]
        %v781 = vld [vmem:[%s605 + $0xc8] sm:$0xff]
        %v782 = vld [vmem:[%s605 + $0xd0] sm:$0xff]
        %v783 = vld [vmem:[%s605 + $0xd8] sm:$0xff]
        %v784 = vld [vmem:[%s605 + $0xe0] sm:$0xff]
        %v785 = vld [vmem:[%s605 + $0xe8] sm:$0xff]
        %v786 = vld [vmem:[%s605 + $0xf0] sm:$0xff]
        %v787 = vld [vmem:[%s605 + $0xf8] sm:$0xff]
        %v788 = vld [vmem:[%s605 + $0x100] sm:$0xff]
        %v789 = vld [vmem:[%s605 + $0x108] sm:$0xff]
        %v790 = vld [vmem:[%s605 + $0x110] sm:$0xff]
        %v791 = vld [vmem:[%s605 + $0x118] sm:$0xff]
        %v792 = vld [vmem:[%s605 + $0x120] sm:$0xff]
        %v793 = vld [vmem:[%s605 + $0x128] sm:$0xff]
        %v794 = vld [vmem:[%s605 + $0x130] sm:$0xff]
        %v795 = vld [vmem:[%s605 + $0x138] sm:$0xff]
        %v796 = vld [vmem:[%s605 + $0x140] sm:$0xff]
        %v797 = vld [vmem:[%s605 + $0x148] sm:$0xff]
        %v798 = vld [vmem:[%s605 + $0x150] sm:$0xff]
        %v799 = vld [vmem:[%s605 + $0x158] sm:$0xff]
        %v800 = vld [vmem:[%s605 + $0x160] sm:$0xff]
        %v801 = vld [vmem:[%s605 + $0x168] sm:$0xff]
        %v802 = vld [vmem:[%s605 + $0x170] sm:$0xff]
        %v803 = vld [vmem:[%s605 + $0x178] sm:$0xff]
        %v804 = vld [vmem:[%s614] sm:$0x7]
        %v806 = vlaneseq
        %v807 = vshrl.u32 %v806, 7
        %v808 = vsub.s32 0, %v807
        %v809 = vrot.slane %v804, %v808
        %v810 = vlaneseq
        %v811 = vshrl.u32 %v810, 7
        %v812 = vsub.s32 1, %v811
        %v813 = vrot.slane %v804, %v812
        %v814 = vlaneseq
        %v815 = vshrl.u32 %v814, 7
        %v816 = vsub.s32 2, %v815
        %v817 = vrot.slane %v804, %v816
        %821 = vmatprep.subr.mxu0 %v802
        %822 = vmatpush1.msra.mxu0 %v801
        %823 = vmatprep.subr.mxu0 %v799
        %824 = vmatpush1.msra.mxu0 %v798
        %825 = vmatprep.subr.mxu0 %v796
        %826 = vmatpush1.msra.mxu0 %v795
        %827 = vmatprep.subr.mxu0 %v793
        %828 = vmatpush1.msra.mxu0 %v792
        %829 = vmatprep.subr.mxu0 %v790
        %830 = vmatpush1.msra.mxu0 %v789
        %831 = vmatprep.subr.mxu0 %v787
        %832 = vmatpush1.msra.mxu0 %v786
        %833 = vmatprep.subr.mxu0 %v784
        %834 = vmatpush1.msra.mxu0 %v783
        %835 = vmatprep.subr.mxu0 %v781
        %836 = vmatpush1.msra.mxu0 %v780
        %837 = vmatprep.subr.mxu0 %v778
        %838 = vmatpush1.msra.mxu0 %v777
        %839 = vmatprep.subr.mxu0 %v775
        %840 = vmatpush1.msra.mxu0 %v774
        %841 = vmatprep.subr.mxu0 %v772
        %842 = vmatpush1.msra.mxu0 %v771
        %843 = vmatprep.subr.mxu0 %v769
        %844 = vmatpush1.msra.mxu0 %v768
        %845 = vmatprep.subr.mxu0 %v766
        %846 = vmatpush1.msra.mxu0 %v765
        %847 = vmatprep.subr.mxu0 %v763
        %848 = vmatpush1.msra.mxu0 %v762
        %849 = vmatprep.subr.mxu0 %v760
        %850 = vmatpush1.msra.mxu0 %v759
        %851 = vmatprep.subr.mxu0 %v757
        %852 = vmatpush1.msra.mxu0 %v756
        %853 = vmatprep.subr.mxu0 0.0
        %854 = vmatpush2.msra.mxu0 0.0
        %855 = vmatprep.subr.mxu0 0.0
        %856 = vmatpush2.msra.mxu0 0.0
        %857 = vmatprep.subr.mxu0 0.0
        %858 = vmatpush2.msra.mxu0 0.0
        %859 = vmatprep.subr.mxu0 0.0
        %860 = vmatpush2.msra.mxu0 0.0
        %861 = vmatprep.subr.mxu0 0.0
        %862 = vmatpush2.msra.mxu0 0.0
        %863 = vmatprep.subr.mxu0 0.0
        %864 = vmatpush2.msra.mxu0 0.0
        %865 = vmatprep.subr.mxu0 0.0
        %866 = vmatpush2.msra.mxu0 0.0
        %867 = vmatprep.subr.mxu0 0.0
        %868 = vmatpush2.msra.mxu0 0.0
        %869 = vmatprep.subr.mxu0 0.0
        %870 = vmatpush2.msra.mxu0 0.0
        %871 = vmatprep.subr.mxu0 0.0
        %872 = vmatpush2.msra.mxu0 0.0
        %873 = vmatprep.subr.mxu0 0.0
        %874 = vmatpush2.msra.mxu0 0.0
        %875 = vmatprep.subr.mxu0 0.0
        %876 = vmatpush2.msra.mxu0 0.0
        %877 = vmatprep.subr.mxu0 0.0
        %878 = vmatpush2.msra.mxu0 0.0
        %879 = vmatprep.subr.mxu0 0.0
        %880 = vmatpush2.msra.mxu0 0.0
        %881 = vmatprep.subr.mxu0 0.0
        %882 = vmatpush2.msra.mxu0 0.0
        %883 = vmatprep.subr.mxu0 0.0
        %884 = vmatpush2.msra.mxu0 0.0
        %885 = vmatprep.mubr.f32.mxu0 0.0
        %886 = vmatmul.mubr.f32.gmra.mxu0 %v751
        %v887 = vpop.f32.mrf.mxu0
        %v888 = vadd.f32 %v809, %v887
        %v889 = vpop.f32.mrf.mxu0
        %v890 = vadd.f32 %v813, %v889
        %891 = vmatprep.mubr.f32.mxu0 0.0
        %892 = vmatmul.mubr.f32.gmra.mxu0 %v752
        %v893 = vpop.f32.mrf.mxu0
        %v894 = vadd.f32 %v809, %v893
        %v895 = vpop.f32.mrf.mxu0
        %v896 = vadd.f32 %v813, %v895
        %897 = vdwg.mxu0
        %898 = vmatprep.subr.mxu0 0.0
        %899 = vmatpush1.msra.mxu0 %v803
        %900 = vmatprep.subr.mxu0 0.0
        %901 = vmatpush1.msra.mxu0 %v800
        %902 = vmatprep.subr.mxu0 0.0
        %903 = vmatpush1.msra.mxu0 %v797
        %904 = vmatprep.subr.mxu0 0.0
        %905 = vmatpush1.msra.mxu0 %v794
        %906 = vmatprep.subr.mxu0 0.0
        %907 = vmatpush1.msra.mxu0 %v791
        %908 = vmatprep.subr.mxu0 0.0
        %909 = vmatpush1.msra.mxu0 %v788
        %910 = vmatprep.subr.mxu0 0.0
        %911 = vmatpush1.msra.mxu0 %v785
        %912 = vmatprep.subr.mxu0 0.0
        %913 = vmatpush1.msra.mxu0 %v782
        %914 = vmatprep.subr.mxu0 0.0
        %915 = vmatpush1.msra.mxu0 %v779
        %916 = vmatprep.subr.mxu0 0.0
        %917 = vmatpush1.msra.mxu0 %v776
        %918 = vmatprep.subr.mxu0 0.0
        %919 = vmatpush1.msra.mxu0 %v773
        %920 = vmatprep.subr.mxu0 0.0
        %921 = vmatpush1.msra.mxu0 %v770
        %922 = vmatprep.subr.mxu0 0.0
        %923 = vmatpush1.msra.mxu0 %v767
        %924 = vmatprep.subr.mxu0 0.0
        %925 = vmatpush1.msra.mxu0 %v764
        %926 = vmatprep.subr.mxu0 0.0
        %927 = vmatpush1.msra.mxu0 %v761
        %928 = vmatprep.subr.mxu0 0.0
        %929 = vmatpush1.msra.mxu0 %v758
        %930 = vmatprep.subr.mxu0 0.0
        %931 = vmatpush2.msra.mxu0 0.0
        %932 = vmatprep.subr.mxu0 0.0
        %933 = vmatpush2.msra.mxu0 0.0
        %934 = vmatprep.subr.mxu0 0.0
        %935 = vmatpush2.msra.mxu0 0.0
        %936 = vmatprep.subr.mxu0 0.0
        %937 = vmatpush2.msra.mxu0 0.0
        %938 = vmatprep.subr.mxu0 0.0
        %939 = vmatpush2.msra.mxu0 0.0
        %940 = vmatprep.subr.mxu0 0.0
        %941 = vmatpush2.msra.mxu0 0.0
        %942 = vmatprep.subr.mxu0 0.0
        %943 = vmatpush2.msra.mxu0 0.0
        %944 = vmatprep.subr.mxu0 0.0
        %945 = vmatpush2.msra.mxu0 0.0
        %946 = vmatprep.subr.mxu0 0.0
        %947 = vmatpush2.msra.mxu0 0.0
        %948 = vmatprep.subr.mxu0 0.0
        %949 = vmatpush2.msra.mxu0 0.0
        %950 = vmatprep.subr.mxu0 0.0
        %951 = vmatpush2.msra.mxu0 0.0
        %952 = vmatprep.subr.mxu0 0.0
        %953 = vmatpush2.msra.mxu0 0.0
        %954 = vmatprep.subr.mxu0 0.0
        %955 = vmatpush2.msra.mxu0 0.0
        %956 = vmatprep.subr.mxu0 0.0
        %957 = vmatpush2.msra.mxu0 0.0
        %958 = vmatprep.subr.mxu0 0.0
        %959 = vmatpush2.msra.mxu0 0.0
        %960 = vmatprep.subr.mxu0 0.0
        %961 = vmatpush2.msra.mxu0 0.0
        %962 = vmatprep.mubr.f32.mxu0 0.0
        %963 = vmatmul.mubr.f32.gmra.mxu0 %v751
        %v964 = vpop.f32.mrf.mxu0
        %v965 = vadd.f32 %v817, %v964
        %v966 = vpop.f32.mrf.mxu0
        %967 = vmatprep.mubr.f32.mxu0 0.0
        %968 = vmatmul.mubr.f32.gmra.mxu0 %v752
        %v969 = vpop.f32.mrf.mxu0
        %v970 = vadd.f32 %v817, %v969
        %v971 = vpop.f32.mrf.mxu0
        %972 = vdwg.mxu0
        %975 = vrot.lane.b32.xlu0 %v888, 120
        %v976 = vpop.permute.xlu0 %975
        %977 = vrot.lane.b32.xlu0 %v894, 120
        %v978 = vpop.permute.xlu0 %977
        %981 = vrot.lane.b32.xlu0 %v888, 112
        %v982 = vpop.permute.xlu0 %981
        %983 = vrot.lane.b32.xlu0 %v894, 112
        %v984 = vpop.permute.xlu0 %983
        %987 = vrot.lane.b32.xlu0 %v888, 104
        %v988 = vpop.permute.xlu0 %987
        %989 = vrot.lane.b32.xlu0 %v894, 104
        %v990 = vpop.permute.xlu0 %989
        %v993 = vcombine.low %v888, %v982
        %v994 = vcombine.high %v888, %v982
        %v996 = vunpack.c.l.s4 1983009808
        %v997 = vunpack.c.0.s8 %v996
        %v998 = vlaneseq
        %v999 = vshrl.u32 %v998, 7
        %v1000 = vsub.s32 %v997, %v999
        %v1001 = vrot.slane %v993, %v1000
        %v1003 = vunpack.c.l.s4 1983009808
        %v1004 = vunpack.c.0.s8 %v1003
        %v1005 = vlaneseq
        %v1006 = vshrl.u32 %v1005, 7
        %v1007 = vsub.s32 %v1004, %v1006
        %v1008 = vrot.slane %v994, %v1007
        %v1009 = vcombine.low %v976, %v988
        %v1010 = vcombine.high %v976, %v988
        %v1012 = vunpack.c.l.s4 1983009808
        %v1013 = vunpack.c.0.s8 %v1012
        %v1014 = vlaneseq
        %v1015 = vshrl.u32 %v1014, 7
        %v1016 = vsub.s32 %v1013, %v1015
        %v1017 = vrot.slane %v1009, %v1016
        %v1019 = vunpack.c.l.s4 1983009808
        %v1020 = vunpack.c.0.s8 %v1019
        %v1021 = vlaneseq
        %v1022 = vshrl.u32 %v1021, 7
        %v1023 = vsub.s32 %v1020, %v1022
        %v1024 = vrot.slane %v1010, %v1023
        %v1025 = vcombine.low %v1001, %v1017
        %v1026 = vcombine.high %v1001, %v1017
        %v1028 = vunpack.c.l.s4 1934713408
        %v1029 = vunpack.c.0.s8 %v1028
        %v1030 = vlaneseq
        %v1031 = vshrl.u32 %v1030, 7
        %v1032 = vsub.s32 %v1029, %v1031
        %v1033 = vrot.slane %v1025, %v1032
        %v1035 = vunpack.c.l.s4 1934713408
        %v1036 = vunpack.c.0.s8 %v1035
        %v1037 = vlaneseq
        %v1038 = vshrl.u32 %v1037, 7
        %v1039 = vsub.s32 %v1036, %v1038
        %v1040 = vrot.slane %v1026, %v1039
        %v1041 = vcombine.low %v1008, %v1024
        %v1042 = vcombine.high %v1008, %v1024
        %v1044 = vunpack.c.l.s4 1934713408
        %v1045 = vunpack.c.0.s8 %v1044
        %v1046 = vlaneseq
        %v1047 = vshrl.u32 %v1046, 7
        %v1048 = vsub.s32 %v1045, %v1047
        %v1049 = vrot.slane %v1041, %v1048
        %v1051 = vunpack.c.l.s4 1934713408
        %v1052 = vunpack.c.0.s8 %v1051
        %v1053 = vlaneseq
        %v1054 = vshrl.u32 %v1053, 7
        %v1055 = vsub.s32 %v1052, %v1054
        %v1056 = vrot.slane %v1042, %v1055
        %v1057 = vcombine.high %v1033, 0.0
        %v1058 = vcombine.high %v1040, 0.0
        %v1059 = vcombine.high %v1049, 0.0
        %v1060 = vcombine.high %v1056, 0.0
        %v1061 = vcombine.low %v894, %v984
        %v1062 = vcombine.high %v894, %v984
        %v1064 = vunpack.c.l.s4 1983009808
        %v1065 = vunpack.c.0.s8 %v1064
        %v1066 = vlaneseq
        %v1067 = vshrl.u32 %v1066, 7
        %v1068 = vsub.s32 %v1065, %v1067
        %v1069 = vrot.slane %v1061, %v1068
        %v1071 = vunpack.c.l.s4 1983009808
        %v1072 = vunpack.c.0.s8 %v1071
        %v1073 = vlaneseq
        %v1074 = vshrl.u32 %v1073, 7
        %v1075 = vsub.s32 %v1072, %v1074
        %v1076 = vrot.slane %v1062, %v1075
        %v1077 = vcombine.low %v978, %v990
        %v1078 = vcombine.high %v978, %v990
        %v1080 = vunpack.c.l.s4 1983009808
        %v1081 = vunpack.c.0.s8 %v1080
        %v1082 = vlaneseq
        %v1083 = vshrl.u32 %v1082, 7
        %v1084 = vsub.s32 %v1081, %v1083
        %v1085 = vrot.slane %v1077, %v1084
        %v1087 = vunpack.c.l.s4 1983009808
        %v1088 = vunpack.c.0.s8 %v1087
        %v1089 = vlaneseq
        %v1090 = vshrl.u32 %v1089, 7
        %v1091 = vsub.s32 %v1088, %v1090
        %v1092 = vrot.slane %v1078, %v1091
        %v1093 = vcombine.low %v1069, %v1085
        %v1094 = vcombine.high %v1069, %v1085
        %v1096 = vunpack.c.l.s4 1934713408
        %v1097 = vunpack.c.0.s8 %v1096
        %v1098 = vlaneseq
        %v1099 = vshrl.u32 %v1098, 7
        %v1100 = vsub.s32 %v1097, %v1099
        %v1101 = vrot.slane %v1093, %v1100
        %v1103 = vunpack.c.l.s4 1934713408
        %v1104 = vunpack.c.0.s8 %v1103
        %v1105 = vlaneseq
        %v1106 = vshrl.u32 %v1105, 7
        %v1107 = vsub.s32 %v1104, %v1106
        %v1108 = vrot.slane %v1094, %v1107
        %v1109 = vcombine.low %v1076, %v1092
        %v1110 = vcombine.high %v1076, %v1092
        %v1112 = vunpack.c.l.s4 1934713408
        %v1113 = vunpack.c.0.s8 %v1112
        %v1114 = vlaneseq
        %v1115 = vshrl.u32 %v1114, 7
        %v1116 = vsub.s32 %v1113, %v1115
        %v1117 = vrot.slane %v1109, %v1116
        %v1119 = vunpack.c.l.s4 1934713408
        %v1120 = vunpack.c.0.s8 %v1119
        %v1121 = vlaneseq
        %v1122 = vshrl.u32 %v1121, 7
        %v1123 = vsub.s32 %v1120, %v1122
        %v1124 = vrot.slane %v1110, %v1123
        %v1125 = vcombine.high %v1101, 0.0
        %v1126 = vcombine.high %v1108, 0.0
        %v1127 = vcombine.high %v1117, 0.0
        %v1128 = vcombine.high %v1124, 0.0
        %v1129 = vcombine.low %v1033, %v1049
        %v1131 = vunpack.c.l.s4 1983009808
        %v1132 = vunpack.c.0.s8 %v1131
        %v1133 = vlaneseq
        %v1134 = vshrl.u32 %v1133, 7
        %v1135 = vsub.s32 %v1132, %v1134
        %v1136 = vrot.slane %v1129, %v1135
        %v1137 = vcombine.low %v1040, %v1056
        %v1139 = vunpack.c.l.s4 1983009808
        %v1140 = vunpack.c.0.s8 %v1139
        %v1141 = vlaneseq
        %v1142 = vshrl.u32 %v1141, 7
        %v1143 = vsub.s32 %v1140, %v1142
        %v1144 = vrot.slane %v1137, %v1143
        %v1145 = vcombine.low %v1101, %v1117
        %v1147 = vunpack.c.l.s4 1983009808
        %v1148 = vunpack.c.0.s8 %v1147
        %v1149 = vlaneseq
        %v1150 = vshrl.u32 %v1149, 7
        %v1151 = vsub.s32 %v1148, %v1150
        %v1152 = vrot.slane %v1145, %v1151
        %v1153 = vcombine.low %v1108, %v1124
        %v1155 = vunpack.c.l.s4 1983009808
        %v1156 = vunpack.c.0.s8 %v1155
        %v1157 = vlaneseq
        %v1158 = vshrl.u32 %v1157, 7
        %v1159 = vsub.s32 %v1156, %v1158
        %v1160 = vrot.slane %v1153, %v1159
        %v1161 = vcombine.low %v1136, %v1144
        %v1162 = vcombine.high %v1136, %v1144
        %v1164 = vunpack.c.l.s4 1934713408
        %v1165 = vunpack.c.0.s8 %v1164
        %v1166 = vlaneseq
        %v1167 = vshrl.u32 %v1166, 7
        %v1168 = vsub.s32 %v1165, %v1167
        %v1169 = vrot.slane %v1161, %v1168
        %v1171 = vunpack.c.l.s4 1934713408
        %v1172 = vunpack.c.0.s8 %v1171
        %v1173 = vlaneseq
        %v1174 = vshrl.u32 %v1173, 7
        %v1175 = vsub.s32 %v1172, %v1174
        %v1176 = vrot.slane %v1162, %v1175
        %v1177 = vcombine.low %v1152, %v1160
        %v1178 = vcombine.high %v1152, %v1160
        %v1180 = vunpack.c.l.s4 1934713408
        %v1181 = vunpack.c.0.s8 %v1180
        %v1182 = vlaneseq
        %v1183 = vshrl.u32 %v1182, 7
        %v1184 = vsub.s32 %v1181, %v1183
        %v1185 = vrot.slane %v1177, %v1184
        %v1187 = vunpack.c.l.s4 1934713408
        %v1188 = vunpack.c.0.s8 %v1187
        %v1189 = vlaneseq
        %v1190 = vshrl.u32 %v1189, 7
        %v1191 = vsub.s32 %v1188, %v1190
        %v1192 = vrot.slane %v1178, %v1191
        %v1193 = vcombine.low %v1169, %v1185
        %v1194 = vcombine.high %v1169, %v1185
        %v1195 = vcombine.low %v1176, %v1192
        %v1196 = vcombine.high %v1176, %v1192
        %v1197 = vcombine.low %v1057, %v1059
        %v1199 = vunpack.c.l.s4 1983009808
        %v1200 = vunpack.c.0.s8 %v1199
        %v1201 = vlaneseq
        %v1202 = vshrl.u32 %v1201, 7
        %v1203 = vsub.s32 %v1200, %v1202
        %v1204 = vrot.slane %v1197, %v1203
        %v1205 = vcombine.low %v1058, %v1060
        %v1207 = vunpack.c.l.s4 1983009808
        %v1208 = vunpack.c.0.s8 %v1207
        %v1209 = vlaneseq
        %v1210 = vshrl.u32 %v1209, 7
        %v1211 = vsub.s32 %v1208, %v1210
        %v1212 = vrot.slane %v1205, %v1211
        %v1213 = vcombine.low %v1125, %v1127
        %v1215 = vunpack.c.l.s4 1983009808
        %v1216 = vunpack.c.0.s8 %v1215
        %v1217 = vlaneseq
        %v1218 = vshrl.u32 %v1217, 7
        %v1219 = vsub.s32 %v1216, %v1218
        %v1220 = vrot.slane %v1213, %v1219
        %v1221 = vcombine.low %v1126, %v1128
        %v1223 = vunpack.c.l.s4 1983009808
        %v1224 = vunpack.c.0.s8 %v1223
        %v1225 = vlaneseq
        %v1226 = vshrl.u32 %v1225, 7
        %v1227 = vsub.s32 %v1224, %v1226
        %v1228 = vrot.slane %v1221, %v1227
        %v1229 = vcombine.low %v1204, %v1212
        %v1230 = vcombine.high %v1204, %v1212
        %v1232 = vunpack.c.l.s4 1934713408
        %v1233 = vunpack.c.0.s8 %v1232
        %v1234 = vlaneseq
        %v1235 = vshrl.u32 %v1234, 7
        %v1236 = vsub.s32 %v1233, %v1235
        %v1237 = vrot.slane %v1229, %v1236
        %v1239 = vunpack.c.l.s4 1934713408
        %v1240 = vunpack.c.0.s8 %v1239
        %v1241 = vlaneseq
        %v1242 = vshrl.u32 %v1241, 7
        %v1243 = vsub.s32 %v1240, %v1242
        %v1244 = vrot.slane %v1230, %v1243
        %v1245 = vcombine.low %v1220, %v1228
        %v1246 = vcombine.high %v1220, %v1228
        %v1248 = vunpack.c.l.s4 1934713408
        %v1249 = vunpack.c.0.s8 %v1248
        %v1250 = vlaneseq
        %v1251 = vshrl.u32 %v1250, 7
        %v1252 = vsub.s32 %v1249, %v1251
        %v1253 = vrot.slane %v1245, %v1252
        %v1255 = vunpack.c.l.s4 1934713408
        %v1256 = vunpack.c.0.s8 %v1255
        %v1257 = vlaneseq
        %v1258 = vshrl.u32 %v1257, 7
        %v1259 = vsub.s32 %v1256, %v1258
        %v1260 = vrot.slane %v1246, %v1259
        %v1261 = vcombine.low %v1237, %v1253
        %v1262 = vcombine.high %v1237, %v1253
        %v1263 = vcombine.low %v1244, %v1260
        %v1264 = vcombine.high %v1244, %v1260
        %1267 = vrot.lane.b32.xlu0 %v890, 120
        %v1268 = vpop.permute.xlu0 %1267
        %1269 = vrot.lane.b32.xlu0 %v896, 120
        %v1270 = vpop.permute.xlu0 %1269
        %1273 = vrot.lane.b32.xlu0 %v890, 112
        %v1274 = vpop.permute.xlu0 %1273
        %1275 = vrot.lane.b32.xlu0 %v896, 112
        %v1276 = vpop.permute.xlu0 %1275
        %1279 = vrot.lane.b32.xlu0 %v890, 104
        %v1280 = vpop.permute.xlu0 %1279
        %1281 = vrot.lane.b32.xlu0 %v896, 104
        %v1282 = vpop.permute.xlu0 %1281
        %v1285 = vcombine.low %v890, %v1274
        %v1286 = vcombine.high %v890, %v1274
        %v1288 = vunpack.c.l.s4 1983009808
        %v1289 = vunpack.c.0.s8 %v1288
        %v1290 = vlaneseq
        %v1291 = vshrl.u32 %v1290, 7
        %v1292 = vsub.s32 %v1289, %v1291
        %v1293 = vrot.slane %v1285, %v1292
        %v1295 = vunpack.c.l.s4 1983009808
        %v1296 = vunpack.c.0.s8 %v1295
        %v1297 = vlaneseq
        %v1298 = vshrl.u32 %v1297, 7
        %v1299 = vsub.s32 %v1296, %v1298
        %v1300 = vrot.slane %v1286, %v1299
        %v1301 = vcombine.low %v1268, %v1280
        %v1302 = vcombine.high %v1268, %v1280
        %v1304 = vunpack.c.l.s4 1983009808
        %v1305 = vunpack.c.0.s8 %v1304
        %v1306 = vlaneseq
        %v1307 = vshrl.u32 %v1306, 7
        %v1308 = vsub.s32 %v1305, %v1307
        %v1309 = vrot.slane %v1301, %v1308
        %v1311 = vunpack.c.l.s4 1983009808
        %v1312 = vunpack.c.0.s8 %v1311
        %v1313 = vlaneseq
        %v1314 = vshrl.u32 %v1313, 7
        %v1315 = vsub.s32 %v1312, %v1314
        %v1316 = vrot.slane %v1302, %v1315
        %v1317 = vcombine.low %v1293, %v1309
        %v1318 = vcombine.high %v1293, %v1309
        %v1320 = vunpack.c.l.s4 1934713408
        %v1321 = vunpack.c.0.s8 %v1320
        %v1322 = vlaneseq
        %v1323 = vshrl.u32 %v1322, 7
        %v1324 = vsub.s32 %v1321, %v1323
        %v1325 = vrot.slane %v1317, %v1324
        %v1327 = vunpack.c.l.s4 1934713408
        %v1328 = vunpack.c.0.s8 %v1327
        %v1329 = vlaneseq
        %v1330 = vshrl.u32 %v1329, 7
        %v1331 = vsub.s32 %v1328, %v1330
        %v1332 = vrot.slane %v1318, %v1331
        %v1333 = vcombine.low %v1300, %v1316
        %v1334 = vcombine.high %v1300, %v1316
        %v1336 = vunpack.c.l.s4 1934713408
        %v1337 = vunpack.c.0.s8 %v1336
        %v1338 = vlaneseq
        %v1339 = vshrl.u32 %v1338, 7
        %v1340 = vsub.s32 %v1337, %v1339
        %v1341 = vrot.slane %v1333, %v1340
        %v1343 = vunpack.c.l.s4 1934713408
        %v1344 = vunpack.c.0.s8 %v1343
        %v1345 = vlaneseq
        %v1346 = vshrl.u32 %v1345, 7
        %v1347 = vsub.s32 %v1344, %v1346
        %v1348 = vrot.slane %v1334, %v1347
        %v1349 = vcombine.high %v1325, 0.0
        %v1350 = vcombine.high %v1332, 0.0
        %v1351 = vcombine.high %v1341, 0.0
        %v1352 = vcombine.high %v1348, 0.0
        %v1353 = vcombine.low %v896, %v1276
        %v1354 = vcombine.high %v896, %v1276
        %v1356 = vunpack.c.l.s4 1983009808
        %v1357 = vunpack.c.0.s8 %v1356
        %v1358 = vlaneseq
        %v1359 = vshrl.u32 %v1358, 7
        %v1360 = vsub.s32 %v1357, %v1359
        %v1361 = vrot.slane %v1353, %v1360
        %v1363 = vunpack.c.l.s4 1983009808
        %v1364 = vunpack.c.0.s8 %v1363
        %v1365 = vlaneseq
        %v1366 = vshrl.u32 %v1365, 7
        %v1367 = vsub.s32 %v1364, %v1366
        %v1368 = vrot.slane %v1354, %v1367
        %v1369 = vcombine.low %v1270, %v1282
        %v1370 = vcombine.high %v1270, %v1282
        %v1372 = vunpack.c.l.s4 1983009808
        %v1373 = vunpack.c.0.s8 %v1372
        %v1374 = vlaneseq
        %v1375 = vshrl.u32 %v1374, 7
        %v1376 = vsub.s32 %v1373, %v1375
        %v1377 = vrot.slane %v1369, %v1376
        %v1379 = vunpack.c.l.s4 1983009808
        %v1380 = vunpack.c.0.s8 %v1379
        %v1381 = vlaneseq
        %v1382 = vshrl.u32 %v1381, 7
        %v1383 = vsub.s32 %v1380, %v1382
        %v1384 = vrot.slane %v1370, %v1383
        %v1385 = vcombine.low %v1361, %v1377
        %v1386 = vcombine.high %v1361, %v1377
        %v1388 = vunpack.c.l.s4 1934713408
        %v1389 = vunpack.c.0.s8 %v1388
        %v1390 = vlaneseq
        %v1391 = vshrl.u32 %v1390, 7
        %v1392 = vsub.s32 %v1389, %v1391
        %v1393 = vrot.slane %v1385, %v1392
        %v1395 = vunpack.c.l.s4 1934713408
        %v1396 = vunpack.c.0.s8 %v1395
        %v1397 = vlaneseq
        %v1398 = vshrl.u32 %v1397, 7
        %v1399 = vsub.s32 %v1396, %v1398
        %v1400 = vrot.slane %v1386, %v1399
        %v1401 = vcombine.low %v1368, %v1384
        %v1402 = vcombine.high %v1368, %v1384
        %v1404 = vunpack.c.l.s4 1934713408
        %v1405 = vunpack.c.0.s8 %v1404
        %v1406 = vlaneseq
        %v1407 = vshrl.u32 %v1406, 7
        %v1408 = vsub.s32 %v1405, %v1407
        %v1409 = vrot.slane %v1401, %v1408
        %v1411 = vunpack.c.l.s4 1934713408
        %v1412 = vunpack.c.0.s8 %v1411
        %v1413 = vlaneseq
        %v1414 = vshrl.u32 %v1413, 7
        %v1415 = vsub.s32 %v1412, %v1414
        %v1416 = vrot.slane %v1402, %v1415
        %v1417 = vcombine.high %v1393, 0.0
        %v1418 = vcombine.high %v1400, 0.0
        %v1419 = vcombine.high %v1409, 0.0
        %v1420 = vcombine.high %v1416, 0.0
        %v1421 = vcombine.low %v1325, %v1341
        %v1423 = vunpack.c.l.s4 1983009808
        %v1424 = vunpack.c.0.s8 %v1423
        %v1425 = vlaneseq
        %v1426 = vshrl.u32 %v1425, 7
        %v1427 = vsub.s32 %v1424, %v1426
        %v1428 = vrot.slane %v1421, %v1427
        %v1429 = vcombine.low %v1332, %v1348
        %v1431 = vunpack.c.l.s4 1983009808
        %v1432 = vunpack.c.0.s8 %v1431
        %v1433 = vlaneseq
        %v1434 = vshrl.u32 %v1433, 7
        %v1435 = vsub.s32 %v1432, %v1434
        %v1436 = vrot.slane %v1429, %v1435
        %v1437 = vcombine.low %v1393, %v1409
        %v1439 = vunpack.c.l.s4 1983009808
        %v1440 = vunpack.c.0.s8 %v1439
        %v1441 = vlaneseq
        %v1442 = vshrl.u32 %v1441, 7
        %v1443 = vsub.s32 %v1440, %v1442
        %v1444 = vrot.slane %v1437, %v1443
        %v1445 = vcombine.low %v1400, %v1416
        %v1447 = vunpack.c.l.s4 1983009808
        %v1448 = vunpack.c.0.s8 %v1447
        %v1449 = vlaneseq
        %v1450 = vshrl.u32 %v1449, 7
        %v1451 = vsub.s32 %v1448, %v1450
        %v1452 = vrot.slane %v1445, %v1451
        %v1453 = vcombine.low %v1428, %v1436
        %v1454 = vcombine.high %v1428, %v1436
        %v1456 = vunpack.c.l.s4 1934713408
        %v1457 = vunpack.c.0.s8 %v1456
        %v1458 = vlaneseq
        %v1459 = vshrl.u32 %v1458, 7
        %v1460 = vsub.s32 %v1457, %v1459
        %v1461 = vrot.slane %v1453, %v1460
        %v1463 = vunpack.c.l.s4 1934713408
        %v1464 = vunpack.c.0.s8 %v1463
        %v1465 = vlaneseq
        %v1466 = vshrl.u32 %v1465, 7
        %v1467 = vsub.s32 %v1464, %v1466
        %v1468 = vrot.slane %v1454, %v1467
        %v1469 = vcombine.low %v1444, %v1452
        %v1470 = vcombine.high %v1444, %v1452
        %v1472 = vunpack.c.l.s4 1934713408
        %v1473 = vunpack.c.0.s8 %v1472
        %v1474 = vlaneseq
        %v1475 = vshrl.u32 %v1474, 7
        %v1476 = vsub.s32 %v1473, %v1475
        %v1477 = vrot.slane %v1469, %v1476
        %v1479 = vunpack.c.l.s4 1934713408
        %v1480 = vunpack.c.0.s8 %v1479
        %v1481 = vlaneseq
        %v1482 = vshrl.u32 %v1481, 7
        %v1483 = vsub.s32 %v1480, %v1482
        %v1484 = vrot.slane %v1470, %v1483
        %v1485 = vcombine.low %v1461, %v1477
        %v1486 = vcombine.high %v1461, %v1477
        %v1487 = vcombine.low %v1468, %v1484
        %v1488 = vcombine.high %v1468, %v1484
        %v1489 = vcombine.low %v1349, %v1351
        %v1491 = vunpack.c.l.s4 1983009808
        %v1492 = vunpack.c.0.s8 %v1491
        %v1493 = vlaneseq
        %v1494 = vshrl.u32 %v1493, 7
        %v1495 = vsub.s32 %v1492, %v1494
        %v1496 = vrot.slane %v1489, %v1495
        %v1497 = vcombine.low %v1350, %v1352
        %v1499 = vunpack.c.l.s4 1983009808
        %v1500 = vunpack.c.0.s8 %v1499
        %v1501 = vlaneseq
        %v1502 = vshrl.u32 %v1501, 7
        %v1503 = vsub.s32 %v1500, %v1502
        %v1504 = vrot.slane %v1497, %v1503
        %v1505 = vcombine.low %v1417, %v1419
        %v1507 = vunpack.c.l.s4 1983009808
        %v1508 = vunpack.c.0.s8 %v1507
        %v1509 = vlaneseq
        %v1510 = vshrl.u32 %v1509, 7
        %v1511 = vsub.s32 %v1508, %v1510
        %v1512 = vrot.slane %v1505, %v1511
        %v1513 = vcombine.low %v1418, %v1420
        %v1515 = vunpack.c.l.s4 1983009808
        %v1516 = vunpack.c.0.s8 %v1515
        %v1517 = vlaneseq
        %v1518 = vshrl.u32 %v1517, 7
        %v1519 = vsub.s32 %v1516, %v1518
        %v1520 = vrot.slane %v1513, %v1519
        %v1521 = vcombine.low %v1496, %v1504
        %v1522 = vcombine.high %v1496, %v1504
        %v1524 = vunpack.c.l.s4 1934713408
        %v1525 = vunpack.c.0.s8 %v1524
        %v1526 = vlaneseq
        %v1527 = vshrl.u32 %v1526, 7
        %v1528 = vsub.s32 %v1525, %v1527
        %v1529 = vrot.slane %v1521, %v1528
        %v1531 = vunpack.c.l.s4 1934713408
        %v1532 = vunpack.c.0.s8 %v1531
        %v1533 = vlaneseq
        %v1534 = vshrl.u32 %v1533, 7
        %v1535 = vsub.s32 %v1532, %v1534
        %v1536 = vrot.slane %v1522, %v1535
        %v1537 = vcombine.low %v1512, %v1520
        %v1538 = vcombine.high %v1512, %v1520
        %v1540 = vunpack.c.l.s4 1934713408
        %v1541 = vunpack.c.0.s8 %v1540
        %v1542 = vlaneseq
        %v1543 = vshrl.u32 %v1542, 7
        %v1544 = vsub.s32 %v1541, %v1543
        %v1545 = vrot.slane %v1537, %v1544
        %v1547 = vunpack.c.l.s4 1934713408
        %v1548 = vunpack.c.0.s8 %v1547
        %v1549 = vlaneseq
        %v1550 = vshrl.u32 %v1549, 7
        %v1551 = vsub.s32 %v1548, %v1550
        %v1552 = vrot.slane %v1538, %v1551
        %v1553 = vcombine.low %v1529, %v1545
        %v1554 = vcombine.high %v1529, %v1545
        %v1555 = vcombine.low %v1536, %v1552
        %v1556 = vcombine.high %v1536, %v1552
        %1559 = vrot.lane.b32.xlu0 %v965, 120
        %v1560 = vpop.permute.xlu0 %1559
        %1561 = vrot.lane.b32.xlu0 %v970, 120
        %v1562 = vpop.permute.xlu0 %1561
        %1565 = vrot.lane.b32.xlu0 %v965, 112
        %v1566 = vpop.permute.xlu0 %1565
        %1567 = vrot.lane.b32.xlu0 %v970, 112
        %v1568 = vpop.permute.xlu0 %1567
        %1571 = vrot.lane.b32.xlu0 %v965, 104
        %v1572 = vpop.permute.xlu0 %1571
        %1573 = vrot.lane.b32.xlu0 %v970, 104
        %v1574 = vpop.permute.xlu0 %1573
        %v1577 = vcombine.low %v965, %v1566
        %v1578 = vcombine.high %v965, %v1566
        %v1580 = vunpack.c.l.s4 1983009808
        %v1581 = vunpack.c.0.s8 %v1580
        %v1582 = vlaneseq
        %v1583 = vshrl.u32 %v1582, 7
        %v1584 = vsub.s32 %v1581, %v1583
        %v1585 = vrot.slane %v1577, %v1584
        %v1587 = vunpack.c.l.s4 1983009808
        %v1588 = vunpack.c.0.s8 %v1587
        %v1589 = vlaneseq
        %v1590 = vshrl.u32 %v1589, 7
        %v1591 = vsub.s32 %v1588, %v1590
        %v1592 = vrot.slane %v1578, %v1591
        %v1593 = vcombine.low %v1560, %v1572
        %v1594 = vcombine.high %v1560, %v1572
        %v1596 = vunpack.c.l.s4 1983009808
        %v1597 = vunpack.c.0.s8 %v1596
        %v1598 = vlaneseq
        %v1599 = vshrl.u32 %v1598, 7
        %v1600 = vsub.s32 %v1597, %v1599
        %v1601 = vrot.slane %v1593, %v1600
        %v1603 = vunpack.c.l.s4 1983009808
        %v1604 = vunpack.c.0.s8 %v1603
        %v1605 = vlaneseq
        %v1606 = vshrl.u32 %v1605, 7
        %v1607 = vsub.s32 %v1604, %v1606
        %v1608 = vrot.slane %v1594, %v1607
        %v1609 = vcombine.low %v1585, %v1601
        %v1610 = vcombine.high %v1585, %v1601
        %v1612 = vunpack.c.l.s4 1934713408
        %v1613 = vunpack.c.0.s8 %v1612
        %v1614 = vlaneseq
        %v1615 = vshrl.u32 %v1614, 7
        %v1616 = vsub.s32 %v1613, %v1615
        %v1617 = vrot.slane %v1609, %v1616
        %v1619 = vunpack.c.l.s4 1934713408
        %v1620 = vunpack.c.0.s8 %v1619
        %v1621 = vlaneseq
        %v1622 = vshrl.u32 %v1621, 7
        %v1623 = vsub.s32 %v1620, %v1622
        %v1624 = vrot.slane %v1610, %v1623
        %v1625 = vcombine.low %v1592, %v1608
        %v1626 = vcombine.high %v1592, %v1608
        %v1628 = vunpack.c.l.s4 1934713408
        %v1629 = vunpack.c.0.s8 %v1628
        %v1630 = vlaneseq
        %v1631 = vshrl.u32 %v1630, 7
        %v1632 = vsub.s32 %v1629, %v1631
        %v1633 = vrot.slane %v1625, %v1632
        %v1635 = vunpack.c.l.s4 1934713408
        %v1636 = vunpack.c.0.s8 %v1635
        %v1637 = vlaneseq
        %v1638 = vshrl.u32 %v1637, 7
        %v1639 = vsub.s32 %v1636, %v1638
        %v1640 = vrot.slane %v1626, %v1639
        %v1641 = vcombine.high %v1617, 0.0
        %v1642 = vcombine.high %v1624, 0.0
        %v1643 = vcombine.high %v1633, 0.0
        %v1644 = vcombine.high %v1640, 0.0
        %v1645 = vcombine.low %v970, %v1568
        %v1646 = vcombine.high %v970, %v1568
        %v1648 = vunpack.c.l.s4 1983009808
        %v1649 = vunpack.c.0.s8 %v1648
        %v1650 = vlaneseq
        %v1651 = vshrl.u32 %v1650, 7
        %v1652 = vsub.s32 %v1649, %v1651
        %v1653 = vrot.slane %v1645, %v1652
        %v1655 = vunpack.c.l.s4 1983009808
        %v1656 = vunpack.c.0.s8 %v1655
        %v1657 = vlaneseq
        %v1658 = vshrl.u32 %v1657, 7
        %v1659 = vsub.s32 %v1656, %v1658
        %v1660 = vrot.slane %v1646, %v1659
        %v1661 = vcombine.low %v1562, %v1574
        %v1662 = vcombine.high %v1562, %v1574
        %v1664 = vunpack.c.l.s4 1983009808
        %v1665 = vunpack.c.0.s8 %v1664
        %v1666 = vlaneseq
        %v1667 = vshrl.u32 %v1666, 7
        %v1668 = vsub.s32 %v1665, %v1667
        %v1669 = vrot.slane %v1661, %v1668
        %v1671 = vunpack.c.l.s4 1983009808
        %v1672 = vunpack.c.0.s8 %v1671
        %v1673 = vlaneseq
        %v1674 = vshrl.u32 %v1673, 7
        %v1675 = vsub.s32 %v1672, %v1674
        %v1676 = vrot.slane %v1662, %v1675
        %v1677 = vcombine.low %v1653, %v1669
        %v1678 = vcombine.high %v1653, %v1669
        %v1680 = vunpack.c.l.s4 1934713408
        %v1681 = vunpack.c.0.s8 %v1680
        %v1682 = vlaneseq
        %v1683 = vshrl.u32 %v1682, 7
        %v1684 = vsub.s32 %v1681, %v1683
        %v1685 = vrot.slane %v1677, %v1684
        %v1687 = vunpack.c.l.s4 1934713408
        %v1688 = vunpack.c.0.s8 %v1687
        %v1689 = vlaneseq
        %v1690 = vshrl.u32 %v1689, 7
        %v1691 = vsub.s32 %v1688, %v1690
        %v1692 = vrot.slane %v1678, %v1691
        %v1693 = vcombine.low %v1660, %v1676
        %v1694 = vcombine.high %v1660, %v1676
        %v1696 = vunpack.c.l.s4 1934713408
        %v1697 = vunpack.c.0.s8 %v1696
        %v1698 = vlaneseq
        %v1699 = vshrl.u32 %v1698, 7
        %v1700 = vsub.s32 %v1697, %v1699
        %v1701 = vrot.slane %v1693, %v1700
        %v1703 = vunpack.c.l.s4 1934713408
        %v1704 = vunpack.c.0.s8 %v1703
        %v1705 = vlaneseq
        %v1706 = vshrl.u32 %v1705, 7
        %v1707 = vsub.s32 %v1704, %v1706
        %v1708 = vrot.slane %v1694, %v1707
        %v1709 = vcombine.high %v1685, 0.0
        %v1710 = vcombine.high %v1692, 0.0
        %v1711 = vcombine.high %v1701, 0.0
        %v1712 = vcombine.high %v1708, 0.0
        %v1713 = vcombine.low %v1617, %v1633
        %v1715 = vunpack.c.l.s4 1983009808
        %v1716 = vunpack.c.0.s8 %v1715
        %v1717 = vlaneseq
        %v1718 = vshrl.u32 %v1717, 7
        %v1719 = vsub.s32 %v1716, %v1718
        %v1720 = vrot.slane %v1713, %v1719
        %v1721 = vcombine.low %v1624, %v1640
        %v1723 = vunpack.c.l.s4 1983009808
        %v1724 = vunpack.c.0.s8 %v1723
        %v1725 = vlaneseq
        %v1726 = vshrl.u32 %v1725, 7
        %v1727 = vsub.s32 %v1724, %v1726
        %v1728 = vrot.slane %v1721, %v1727
        %v1729 = vcombine.low %v1685, %v1701
        %v1731 = vunpack.c.l.s4 1983009808
        %v1732 = vunpack.c.0.s8 %v1731
        %v1733 = vlaneseq
        %v1734 = vshrl.u32 %v1733, 7
        %v1735 = vsub.s32 %v1732, %v1734
        %v1736 = vrot.slane %v1729, %v1735
        %v1737 = vcombine.low %v1692, %v1708
        %v1739 = vunpack.c.l.s4 1983009808
        %v1740 = vunpack.c.0.s8 %v1739
        %v1741 = vlaneseq
        %v1742 = vshrl.u32 %v1741, 7
        %v1743 = vsub.s32 %v1740, %v1742
        %v1744 = vrot.slane %v1737, %v1743
        %v1745 = vcombine.low %v1720, %v1728
        %v1746 = vcombine.high %v1720, %v1728
        %v1748 = vunpack.c.l.s4 1934713408
        %v1749 = vunpack.c.0.s8 %v1748
        %v1750 = vlaneseq
        %v1751 = vshrl.u32 %v1750, 7
        %v1752 = vsub.s32 %v1749, %v1751
        %v1753 = vrot.slane %v1745, %v1752
        %v1755 = vunpack.c.l.s4 1934713408
        %v1756 = vunpack.c.0.s8 %v1755
        %v1757 = vlaneseq
        %v1758 = vshrl.u32 %v1757, 7
        %v1759 = vsub.s32 %v1756, %v1758
        %v1760 = vrot.slane %v1746, %v1759
        %v1761 = vcombine.low %v1736, %v1744
        %v1762 = vcombine.high %v1736, %v1744
        %v1764 = vunpack.c.l.s4 1934713408
        %v1765 = vunpack.c.0.s8 %v1764
        %v1766 = vlaneseq
        %v1767 = vshrl.u32 %v1766, 7
        %v1768 = vsub.s32 %v1765, %v1767
        %v1769 = vrot.slane %v1761, %v1768
        %v1771 = vunpack.c.l.s4 1934713408
        %v1772 = vunpack.c.0.s8 %v1771
        %v1773 = vlaneseq
        %v1774 = vshrl.u32 %v1773, 7
        %v1775 = vsub.s32 %v1772, %v1774
        %v1776 = vrot.slane %v1762, %v1775
        %v1777 = vcombine.low %v1753, %v1769
        %v1778 = vcombine.high %v1753, %v1769
        %v1779 = vcombine.low %v1760, %v1776
        %v1780 = vcombine.high %v1760, %v1776
        %v1781 = vcombine.low %v1641, %v1643
        %v1783 = vunpack.c.l.s4 1983009808
        %v1784 = vunpack.c.0.s8 %v1783
        %v1785 = vlaneseq
        %v1786 = vshrl.u32 %v1785, 7
        %v1787 = vsub.s32 %v1784, %v1786
        %v1788 = vrot.slane %v1781, %v1787
        %v1789 = vcombine.low %v1642, %v1644
        %v1791 = vunpack.c.l.s4 1983009808
        %v1792 = vunpack.c.0.s8 %v1791
        %v1793 = vlaneseq
        %v1794 = vshrl.u32 %v1793, 7
        %v1795 = vsub.s32 %v1792, %v1794
        %v1796 = vrot.slane %v1789, %v1795
        %v1797 = vcombine.low %v1709, %v1711
        %v1799 = vunpack.c.l.s4 1983009808
        %v1800 = vunpack.c.0.s8 %v1799
        %v1801 = vlaneseq
        %v1802 = vshrl.u32 %v1801, 7
        %v1803 = vsub.s32 %v1800, %v1802
        %v1804 = vrot.slane %v1797, %v1803
        %v1805 = vcombine.low %v1710, %v1712
        %v1807 = vunpack.c.l.s4 1983009808
        %v1808 = vunpack.c.0.s8 %v1807
        %v1809 = vlaneseq
        %v1810 = vshrl.u32 %v1809, 7
        %v1811 = vsub.s32 %v1808, %v1810
        %v1812 = vrot.slane %v1805, %v1811
        %v1813 = vcombine.low %v1788, %v1796
        %v1814 = vcombine.high %v1788, %v1796
        %v1816 = vunpack.c.l.s4 1934713408
        %v1817 = vunpack.c.0.s8 %v1816
        %v1818 = vlaneseq
        %v1819 = vshrl.u32 %v1818, 7
        %v1820 = vsub.s32 %v1817, %v1819
        %v1821 = vrot.slane %v1813, %v1820
        %v1823 = vunpack.c.l.s4 1934713408
        %v1824 = vunpack.c.0.s8 %v1823
        %v1825 = vlaneseq
        %v1826 = vshrl.u32 %v1825, 7
        %v1827 = vsub.s32 %v1824, %v1826
        %v1828 = vrot.slane %v1814, %v1827
        %v1829 = vcombine.low %v1804, %v1812
        %v1830 = vcombine.high %v1804, %v1812
        %v1832 = vunpack.c.l.s4 1934713408
        %v1833 = vunpack.c.0.s8 %v1832
        %v1834 = vlaneseq
        %v1835 = vshrl.u32 %v1834, 7
        %v1836 = vsub.s32 %v1833, %v1835
        %v1837 = vrot.slane %v1829, %v1836
        %v1839 = vunpack.c.l.s4 1934713408
        %v1840 = vunpack.c.0.s8 %v1839
        %v1841 = vlaneseq
        %v1842 = vshrl.u32 %v1841, 7
        %v1843 = vsub.s32 %v1840, %v1842
        %v1844 = vrot.slane %v1830, %v1843
        %v1845 = vcombine.low %v1821, %v1837
        %v1846 = vcombine.high %v1821, %v1837
        %v1847 = vcombine.low %v1828, %v1844
        %v1848 = vcombine.high %v1828, %v1844
        %vm1849 = vcmask 64512
        %v1851 = vsel %vm1849, %v1193, 0
        %v1854 = vsel %vm1849, %v1485, 0
        %1856 = vmatprep.subr.mxu0 0.0
        %1857 = vmatpush1.xpose.msra.mxu0 0.0
        %1858 = vmatprep.subr.mxu0 0.0
        %1859 = vmatpush1.xpose.msra.mxu0 0.0
        %1860 = vmatprep.subr.mxu0 0.0
        %1861 = vmatpush1.xpose.msra.mxu0 0.0
        %1862 = vmatprep.subr.mxu0 0.0
        %1863 = vmatpush1.xpose.msra.mxu0 0.0
        %1864 = vmatprep.subr.mxu0 0.0
        %1865 = vmatpush1.xpose.msra.mxu0 0.0
        %1866 = vmatprep.subr.mxu0 0.0
        %1867 = vmatpush1.xpose.msra.mxu0 0.0
        %1868 = vmatprep.subr.mxu0 0.0
        %1869 = vmatpush1.xpose.msra.mxu0 0.0
        %1870 = vmatprep.subr.mxu0 0.0
        %1871 = vmatpush1.xpose.msra.mxu0 0.0
        %1872 = vmatprep.subr.mxu0 0.0
        %1873 = vmatpush1.xpose.msra.mxu0 0.0
        %1874 = vmatprep.subr.mxu0 0.0
        %1875 = vmatpush1.xpose.msra.mxu0 0.0
        %1876 = vmatprep.subr.mxu0 0.0
        %1877 = vmatpush1.xpose.msra.mxu0 0.0
        %1878 = vmatprep.subr.mxu0 0.0
        %1879 = vmatpush1.xpose.msra.mxu0 0.0
        %1880 = vmatprep.subr.mxu0 0.0
        %1881 = vmatpush1.xpose.msra.mxu0 0.0
        %1882 = vmatprep.subr.mxu0 0.0
        %1883 = vmatpush1.xpose.msra.mxu0 0.0
        %1884 = vmatprep.subr.mxu0 0.0
        %1885 = vmatpush1.xpose.msra.mxu0 0.0
        %1886 = vmatprep.subr.mxu0 0.0
        %1887 = vmatpush1.xpose.msra.mxu0 %v1854
        %1888 = vmatprep.subr.mxu0 0.0
        %1889 = vmatpush2.xpose.msra.mxu0 0.0
        %1890 = vmatprep.subr.mxu0 0.0
        %1891 = vmatpush2.xpose.msra.mxu0 0.0
        %1892 = vmatprep.subr.mxu0 0.0
        %1893 = vmatpush2.xpose.msra.mxu0 0.0
        %1894 = vmatprep.subr.mxu0 0.0
        %1895 = vmatpush2.xpose.msra.mxu0 0.0
        %1896 = vmatprep.subr.mxu0 0.0
        %1897 = vmatpush2.xpose.msra.mxu0 0.0
        %1898 = vmatprep.subr.mxu0 0.0
        %1899 = vmatpush2.xpose.msra.mxu0 0.0
        %1900 = vmatprep.subr.mxu0 0.0
        %1901 = vmatpush2.xpose.msra.mxu0 0.0
        %1902 = vmatprep.subr.mxu0 0.0
        %1903 = vmatpush2.xpose.msra.mxu0 0.0
        %1904 = vmatprep.subr.mxu0 0.0
        %1905 = vmatpush2.xpose.msra.mxu0 0.0
        %1906 = vmatprep.subr.mxu0 0.0
        %1907 = vmatpush2.xpose.msra.mxu0 0.0
        %1908 = vmatprep.subr.mxu0 0.0
        %1909 = vmatpush2.xpose.msra.mxu0 0.0
        %1910 = vmatprep.subr.mxu0 0.0
        %1911 = vmatpush2.xpose.msra.mxu0 0.0
        %1912 = vmatprep.subr.mxu0 0.0
        %1913 = vmatpush2.xpose.msra.mxu0 0.0
        %1914 = vmatprep.subr.mxu0 0.0
        %1915 = vmatpush2.xpose.msra.mxu0 0.0
        %1916 = vmatprep.subr.mxu0 0.0
        %1917 = vmatpush2.xpose.msra.mxu0 0.0
        %1918 = vmatprep.subr.mxu0 0.0
        %1919 = vmatpush2.xpose.msra.mxu0 0.0
        %1920 = vmatprep.mubr.f32.mxu0 0.0
        %1921 = vmatmul.mubr.f32.gmra.mxu0 %v1851
        %v1922 = vpop.f32.mrf.mxu0
        %v1923 = vadd.f32 0.0, %v1922
        %v1924 = vpop.f32.mrf.mxu0
        %1925 = vdwg.mxu0
        %v1927 = vsel %vm1849, %v1194, 0
        %v1930 = vsel %vm1849, %v1486, 0
        %1932 = vmatprep.subr.mxu0 0.0
        %1933 = vmatpush1.xpose.msra.mxu0 0.0
        %1934 = vmatprep.subr.mxu0 0.0
        %1935 = vmatpush1.xpose.msra.mxu0 0.0
        %1936 = vmatprep.subr.mxu0 0.0
        %1937 = vmatpush1.xpose.msra.mxu0 0.0
        %1938 = vmatprep.subr.mxu0 0.0
        %1939 = vmatpush1.xpose.msra.mxu0 0.0
        %1940 = vmatprep.subr.mxu0 0.0
        %1941 = vmatpush1.xpose.msra.mxu0 0.0
        %1942 = vmatprep.subr.mxu0 0.0
        %1943 = vmatpush1.xpose.msra.mxu0 0.0
        %1944 = vmatprep.subr.mxu0 0.0
        %1945 = vmatpush1.xpose.msra.mxu0 0.0
        %1946 = vmatprep.subr.mxu0 0.0
        %1947 = vmatpush1.xpose.msra.mxu0 0.0
        %1948 = vmatprep.subr.mxu0 0.0
        %1949 = vmatpush1.xpose.msra.mxu0 0.0
        %1950 = vmatprep.subr.mxu0 0.0
        %1951 = vmatpush1.xpose.msra.mxu0 0.0
        %1952 = vmatprep.subr.mxu0 0.0
        %1953 = vmatpush1.xpose.msra.mxu0 0.0
        %1954 = vmatprep.subr.mxu0 0.0
        %1955 = vmatpush1.xpose.msra.mxu0 0.0
        %1956 = vmatprep.subr.mxu0 0.0
        %1957 = vmatpush1.xpose.msra.mxu0 0.0
        %1958 = vmatprep.subr.mxu0 0.0
        %1959 = vmatpush1.xpose.msra.mxu0 0.0
        %1960 = vmatprep.subr.mxu0 0.0
        %1961 = vmatpush1.xpose.msra.mxu0 0.0
        %1962 = vmatprep.subr.mxu0 0.0
        %1963 = vmatpush1.xpose.msra.mxu0 %v1930
        %1964 = vmatprep.subr.mxu0 0.0
        %1965 = vmatpush2.xpose.msra.mxu0 0.0
        %1966 = vmatprep.subr.mxu0 0.0
        %1967 = vmatpush2.xpose.msra.mxu0 0.0
        %1968 = vmatprep.subr.mxu0 0.0
        %1969 = vmatpush2.xpose.msra.mxu0 0.0
        %1970 = vmatprep.subr.mxu0 0.0
        %1971 = vmatpush2.xpose.msra.mxu0 0.0
        %1972 = vmatprep.subr.mxu0 0.0
        %1973 = vmatpush2.xpose.msra.mxu0 0.0
        %1974 = vmatprep.subr.mxu0 0.0
        %1975 = vmatpush2.xpose.msra.mxu0 0.0
        %1976 = vmatprep.subr.mxu0 0.0
        %1977 = vmatpush2.xpose.msra.mxu0 0.0
        %1978 = vmatprep.subr.mxu0 0.0
        %1979 = vmatpush2.xpose.msra.mxu0 0.0
        %1980 = vmatprep.subr.mxu0 0.0
        %1981 = vmatpush2.xpose.msra.mxu0 0.0
        %1982 = vmatprep.subr.mxu0 0.0
        %1983 = vmatpush2.xpose.msra.mxu0 0.0
        %1984 = vmatprep.subr.mxu0 0.0
        %1985 = vmatpush2.xpose.msra.mxu0 0.0
        %1986 = vmatprep.subr.mxu0 0.0
        %1987 = vmatpush2.xpose.msra.mxu0 0.0
        %1988 = vmatprep.subr.mxu0 0.0
        %1989 = vmatpush2.xpose.msra.mxu0 0.0
        %1990 = vmatprep.subr.mxu0 0.0
        %1991 = vmatpush2.xpose.msra.mxu0 0.0
        %1992 = vmatprep.subr.mxu0 0.0
        %1993 = vmatpush2.xpose.msra.mxu0 0.0
        %1994 = vmatprep.subr.mxu0 0.0
        %1995 = vmatpush2.xpose.msra.mxu0 0.0
        %1996 = vmatprep.mubr.f32.mxu0 0.0
        %1997 = vmatmul.mubr.f32.gmra.mxu0 %v1927
        %v1998 = vpop.f32.mrf.mxu0
        %v1999 = vadd.f32 0.0, %v1998
        %v2000 = vpop.f32.mrf.mxu0
        %2001 = vdwg.mxu0
        %v2003 = vsel %vm1849, %v1195, 0
        %v2006 = vsel %vm1849, %v1487, 0
        %2008 = vmatprep.subr.mxu0 0.0
        %2009 = vmatpush1.xpose.msra.mxu0 0.0
        %2010 = vmatprep.subr.mxu0 0.0
        %2011 = vmatpush1.xpose.msra.mxu0 0.0
        %2012 = vmatprep.subr.mxu0 0.0
        %2013 = vmatpush1.xpose.msra.mxu0 0.0
        %2014 = vmatprep.subr.mxu0 0.0
        %2015 = vmatpush1.xpose.msra.mxu0 0.0
        %2016 = vmatprep.subr.mxu0 0.0
        %2017 = vmatpush1.xpose.msra.mxu0 0.0
        %2018 = vmatprep.subr.mxu0 0.0
        %2019 = vmatpush1.xpose.msra.mxu0 0.0
        %2020 = vmatprep.subr.mxu0 0.0
        %2021 = vmatpush1.xpose.msra.mxu0 0.0
        %2022 = vmatprep.subr.mxu0 0.0
        %2023 = vmatpush1.xpose.msra.mxu0 0.0
        %2024 = vmatprep.subr.mxu0 0.0
        %2025 = vmatpush1.xpose.msra.mxu0 0.0
        %2026 = vmatprep.subr.mxu0 0.0
        %2027 = vmatpush1.xpose.msra.mxu0 0.0
        %2028 = vmatprep.subr.mxu0 0.0
        %2029 = vmatpush1.xpose.msra.mxu0 0.0
        %2030 = vmatprep.subr.mxu0 0.0
        %2031 = vmatpush1.xpose.msra.mxu0 0.0
        %2032 = vmatprep.subr.mxu0 0.0
        %2033 = vmatpush1.xpose.msra.mxu0 0.0
        %2034 = vmatprep.subr.mxu0 0.0
        %2035 = vmatpush1.xpose.msra.mxu0 0.0
        %2036 = vmatprep.subr.mxu0 0.0
        %2037 = vmatpush1.xpose.msra.mxu0 0.0
        %2038 = vmatprep.subr.mxu0 0.0
        %2039 = vmatpush1.xpose.msra.mxu0 %v2006
        %2040 = vmatprep.subr.mxu0 0.0
        %2041 = vmatpush2.xpose.msra.mxu0 0.0
        %2042 = vmatprep.subr.mxu0 0.0
        %2043 = vmatpush2.xpose.msra.mxu0 0.0
        %2044 = vmatprep.subr.mxu0 0.0
        %2045 = vmatpush2.xpose.msra.mxu0 0.0
        %2046 = vmatprep.subr.mxu0 0.0
        %2047 = vmatpush2.xpose.msra.mxu0 0.0
        %2048 = vmatprep.subr.mxu0 0.0
        %2049 = vmatpush2.xpose.msra.mxu0 0.0
        %2050 = vmatprep.subr.mxu0 0.0
        %2051 = vmatpush2.xpose.msra.mxu0 0.0
        %2052 = vmatprep.subr.mxu0 0.0
        %2053 = vmatpush2.xpose.msra.mxu0 0.0
        %2054 = vmatprep.subr.mxu0 0.0
        %2055 = vmatpush2.xpose.msra.mxu0 0.0
        %2056 = vmatprep.subr.mxu0 0.0
        %2057 = vmatpush2.xpose.msra.mxu0 0.0
        %2058 = vmatprep.subr.mxu0 0.0
        %2059 = vmatpush2.xpose.msra.mxu0 0.0
        %2060 = vmatprep.subr.mxu0 0.0
        %2061 = vmatpush2.xpose.msra.mxu0 0.0
        %2062 = vmatprep.subr.mxu0 0.0
        %2063 = vmatpush2.xpose.msra.mxu0 0.0
        %2064 = vmatprep.subr.mxu0 0.0
        %2065 = vmatpush2.xpose.msra.mxu0 0.0
        %2066 = vmatprep.subr.mxu0 0.0
        %2067 = vmatpush2.xpose.msra.mxu0 0.0
        %2068 = vmatprep.subr.mxu0 0.0
        %2069 = vmatpush2.xpose.msra.mxu0 0.0
        %2070 = vmatprep.subr.mxu0 0.0
        %2071 = vmatpush2.xpose.msra.mxu0 0.0
        %2072 = vmatprep.mubr.f32.mxu0 0.0
        %2073 = vmatmul.mubr.f32.gmra.mxu0 %v2003
        %v2074 = vpop.f32.mrf.mxu0
        %v2075 = vadd.f32 0.0, %v2074
        %v2076 = vpop.f32.mrf.mxu0
        %2077 = vdwg.mxu0
        %v2079 = vsel %vm1849, %v1196, 0
        %v2082 = vsel %vm1849, %v1488, 0
        %2084 = vmatprep.subr.mxu0 0.0
        %2085 = vmatpush1.xpose.msra.mxu0 0.0
        %2086 = vmatprep.subr.mxu0 0.0
        %2087 = vmatpush1.xpose.msra.mxu0 0.0
        %2088 = vmatprep.subr.mxu0 0.0
        %2089 = vmatpush1.xpose.msra.mxu0 0.0
        %2090 = vmatprep.subr.mxu0 0.0
        %2091 = vmatpush1.xpose.msra.mxu0 0.0
        %2092 = vmatprep.subr.mxu0 0.0
        %2093 = vmatpush1.xpose.msra.mxu0 0.0
        %2094 = vmatprep.subr.mxu0 0.0
        %2095 = vmatpush1.xpose.msra.mxu0 0.0
        %2096 = vmatprep.subr.mxu0 0.0
        %2097 = vmatpush1.xpose.msra.mxu0 0.0
        %2098 = vmatprep.subr.mxu0 0.0
        %2099 = vmatpush1.xpose.msra.mxu0 0.0
        %2100 = vmatprep.subr.mxu0 0.0
        %2101 = vmatpush1.xpose.msra.mxu0 0.0
        %2102 = vmatprep.subr.mxu0 0.0
        %2103 = vmatpush1.xpose.msra.mxu0 0.0
        %2104 = vmatprep.subr.mxu0 0.0
        %2105 = vmatpush1.xpose.msra.mxu0 0.0
        %2106 = vmatprep.subr.mxu0 0.0
        %2107 = vmatpush1.xpose.msra.mxu0 0.0
        %2108 = vmatprep.subr.mxu0 0.0
        %2109 = vmatpush1.xpose.msra.mxu0 0.0
        %2110 = vmatprep.subr.mxu0 0.0
        %2111 = vmatpush1.xpose.msra.mxu0 0.0
        %2112 = vmatprep.subr.mxu0 0.0
        %2113 = vmatpush1.xpose.msra.mxu0 0.0
        %2114 = vmatprep.subr.mxu0 0.0
        %2115 = vmatpush1.xpose.msra.mxu0 %v2082
        %2116 = vmatprep.subr.mxu0 0.0
        %2117 = vmatpush2.xpose.msra.mxu0 0.0
        %2118 = vmatprep.subr.mxu0 0.0
        %2119 = vmatpush2.xpose.msra.mxu0 0.0
        %2120 = vmatprep.subr.mxu0 0.0
        %2121 = vmatpush2.xpose.msra.mxu0 0.0
        %2122 = vmatprep.subr.mxu0 0.0
        %2123 = vmatpush2.xpose.msra.mxu0 0.0
        %2124 = vmatprep.subr.mxu0 0.0
        %2125 = vmatpush2.xpose.msra.mxu0 0.0
        %2126 = vmatprep.subr.mxu0 0.0
        %2127 = vmatpush2.xpose.msra.mxu0 0.0
        %2128 = vmatprep.subr.mxu0 0.0
        %2129 = vmatpush2.xpose.msra.mxu0 0.0
        %2130 = vmatprep.subr.mxu0 0.0
        %2131 = vmatpush2.xpose.msra.mxu0 0.0
        %2132 = vmatprep.subr.mxu0 0.0
        %2133 = vmatpush2.xpose.msra.mxu0 0.0
        %2134 = vmatprep.subr.mxu0 0.0
        %2135 = vmatpush2.xpose.msra.mxu0 0.0
        %2136 = vmatprep.subr.mxu0 0.0
        %2137 = vmatpush2.xpose.msra.mxu0 0.0
        %2138 = vmatprep.subr.mxu0 0.0
        %2139 = vmatpush2.xpose.msra.mxu0 0.0
        %2140 = vmatprep.subr.mxu0 0.0
        %2141 = vmatpush2.xpose.msra.mxu0 0.0
        %2142 = vmatprep.subr.mxu0 0.0
        %2143 = vmatpush2.xpose.msra.mxu0 0.0
        %2144 = vmatprep.subr.mxu0 0.0
        %2145 = vmatpush2.xpose.msra.mxu0 0.0
        %2146 = vmatprep.subr.mxu0 0.0
        %2147 = vmatpush2.xpose.msra.mxu0 0.0
        %2148 = vmatprep.mubr.f32.mxu0 0.0
        %2149 = vmatmul.mubr.f32.gmra.mxu0 %v2079
        %v2150 = vpop.f32.mrf.mxu0
        %v2151 = vadd.f32 0.0, %v2150
        %v2152 = vpop.f32.mrf.mxu0
        %2153 = vdwg.mxu0
        %v2155 = vsel %vm1849, %v1261, 0
        %v2158 = vsel %vm1849, %v1553, 0
        %2160 = vmatprep.subr.mxu0 0.0
        %2161 = vmatpush1.xpose.msra.mxu0 0.0
        %2162 = vmatprep.subr.mxu0 0.0
        %2163 = vmatpush1.xpose.msra.mxu0 0.0
        %2164 = vmatprep.subr.mxu0 0.0
        %2165 = vmatpush1.xpose.msra.mxu0 0.0
        %2166 = vmatprep.subr.mxu0 0.0
        %2167 = vmatpush1.xpose.msra.mxu0 0.0
        %2168 = vmatprep.subr.mxu0 0.0
        %2169 = vmatpush1.xpose.msra.mxu0 0.0
        %2170 = vmatprep.subr.mxu0 0.0
        %2171 = vmatpush1.xpose.msra.mxu0 0.0
        %2172 = vmatprep.subr.mxu0 0.0
        %2173 = vmatpush1.xpose.msra.mxu0 0.0
        %2174 = vmatprep.subr.mxu0 0.0
        %2175 = vmatpush1.xpose.msra.mxu0 0.0
        %2176 = vmatprep.subr.mxu0 0.0
        %2177 = vmatpush1.xpose.msra.mxu0 0.0
        %2178 = vmatprep.subr.mxu0 0.0
        %2179 = vmatpush1.xpose.msra.mxu0 0.0
        %2180 = vmatprep.subr.mxu0 0.0
        %2181 = vmatpush1.xpose.msra.mxu0 0.0
        %2182 = vmatprep.subr.mxu0 0.0
        %2183 = vmatpush1.xpose.msra.mxu0 0.0
        %2184 = vmatprep.subr.mxu0 0.0
        %2185 = vmatpush1.xpose.msra.mxu0 0.0
        %2186 = vmatprep.subr.mxu0 0.0
        %2187 = vmatpush1.xpose.msra.mxu0 0.0
        %2188 = vmatprep.subr.mxu0 0.0
        %2189 = vmatpush1.xpose.msra.mxu0 0.0
        %2190 = vmatprep.subr.mxu0 0.0
        %2191 = vmatpush1.xpose.msra.mxu0 %v2158
        %2192 = vmatprep.subr.mxu0 0.0
        %2193 = vmatpush2.xpose.msra.mxu0 0.0
        %2194 = vmatprep.subr.mxu0 0.0
        %2195 = vmatpush2.xpose.msra.mxu0 0.0
        %2196 = vmatprep.subr.mxu0 0.0
        %2197 = vmatpush2.xpose.msra.mxu0 0.0
        %2198 = vmatprep.subr.mxu0 0.0
        %2199 = vmatpush2.xpose.msra.mxu0 0.0
        %2200 = vmatprep.subr.mxu0 0.0
        %2201 = vmatpush2.xpose.msra.mxu0 0.0
        %2202 = vmatprep.subr.mxu0 0.0
        %2203 = vmatpush2.xpose.msra.mxu0 0.0
        %2204 = vmatprep.subr.mxu0 0.0
        %2205 = vmatpush2.xpose.msra.mxu0 0.0
        %2206 = vmatprep.subr.mxu0 0.0
        %2207 = vmatpush2.xpose.msra.mxu0 0.0
        %2208 = vmatprep.subr.mxu0 0.0
        %2209 = vmatpush2.xpose.msra.mxu0 0.0
        %2210 = vmatprep.subr.mxu0 0.0
        %2211 = vmatpush2.xpose.msra.mxu0 0.0
        %2212 = vmatprep.subr.mxu0 0.0
        %2213 = vmatpush2.xpose.msra.mxu0 0.0
        %2214 = vmatprep.subr.mxu0 0.0
        %2215 = vmatpush2.xpose.msra.mxu0 0.0
        %2216 = vmatprep.subr.mxu0 0.0
        %2217 = vmatpush2.xpose.msra.mxu0 0.0
        %2218 = vmatprep.subr.mxu0 0.0
        %2219 = vmatpush2.xpose.msra.mxu0 0.0
        %2220 = vmatprep.subr.mxu0 0.0
        %2221 = vmatpush2.xpose.msra.mxu0 0.0
        %2222 = vmatprep.subr.mxu0 0.0
        %2223 = vmatpush2.xpose.msra.mxu0 0.0
        %2224 = vmatprep.mubr.f32.mxu0 0.0
        %2225 = vmatmul.mubr.f32.gmra.mxu0 %v2155
        %v2226 = vpop.f32.mrf.mxu0
        %v2227 = vadd.f32 0.0, %v2226
        %v2228 = vpop.f32.mrf.mxu0
        %2229 = vdwg.mxu0
        %v2231 = vsel %vm1849, %v1262, 0
        %v2234 = vsel %vm1849, %v1554, 0
        %2236 = vmatprep.subr.mxu0 0.0
        %2237 = vmatpush1.xpose.msra.mxu0 0.0
        %2238 = vmatprep.subr.mxu0 0.0
        %2239 = vmatpush1.xpose.msra.mxu0 0.0
        %2240 = vmatprep.subr.mxu0 0.0
        %2241 = vmatpush1.xpose.msra.mxu0 0.0
        %2242 = vmatprep.subr.mxu0 0.0
        %2243 = vmatpush1.xpose.msra.mxu0 0.0
        %2244 = vmatprep.subr.mxu0 0.0
        %2245 = vmatpush1.xpose.msra.mxu0 0.0
        %2246 = vmatprep.subr.mxu0 0.0
        %2247 = vmatpush1.xpose.msra.mxu0 0.0
        %2248 = vmatprep.subr.mxu0 0.0
        %2249 = vmatpush1.xpose.msra.mxu0 0.0
        %2250 = vmatprep.subr.mxu0 0.0
        %2251 = vmatpush1.xpose.msra.mxu0 0.0
        %2252 = vmatprep.subr.mxu0 0.0
        %2253 = vmatpush1.xpose.msra.mxu0 0.0
        %2254 = vmatprep.subr.mxu0 0.0
        %2255 = vmatpush1.xpose.msra.mxu0 0.0
        %2256 = vmatprep.subr.mxu0 0.0
        %2257 = vmatpush1.xpose.msra.mxu0 0.0
        %2258 = vmatprep.subr.mxu0 0.0
        %2259 = vmatpush1.xpose.msra.mxu0 0.0
        %2260 = vmatprep.subr.mxu0 0.0
        %2261 = vmatpush1.xpose.msra.mxu0 0.0
        %2262 = vmatprep.subr.mxu0 0.0
        %2263 = vmatpush1.xpose.msra.mxu0 0.0
        %2264 = vmatprep.subr.mxu0 0.0
        %2265 = vmatpush1.xpose.msra.mxu0 0.0
        %2266 = vmatprep.subr.mxu0 0.0
        %2267 = vmatpush1.xpose.msra.mxu0 %v2234
        %2268 = vmatprep.subr.mxu0 0.0
        %2269 = vmatpush2.xpose.msra.mxu0 0.0
        %2270 = vmatprep.subr.mxu0 0.0
        %2271 = vmatpush2.xpose.msra.mxu0 0.0
        %2272 = vmatprep.subr.mxu0 0.0
        %2273 = vmatpush2.xpose.msra.mxu0 0.0
        %2274 = vmatprep.subr.mxu0 0.0
        %2275 = vmatpush2.xpose.msra.mxu0 0.0
        %2276 = vmatprep.subr.mxu0 0.0
        %2277 = vmatpush2.xpose.msra.mxu0 0.0
        %2278 = vmatprep.subr.mxu0 0.0
        %2279 = vmatpush2.xpose.msra.mxu0 0.0
        %2280 = vmatprep.subr.mxu0 0.0
        %2281 = vmatpush2.xpose.msra.mxu0 0.0
        %2282 = vmatprep.subr.mxu0 0.0
        %2283 = vmatpush2.xpose.msra.mxu0 0.0
        %2284 = vmatprep.subr.mxu0 0.0
        %2285 = vmatpush2.xpose.msra.mxu0 0.0
        %2286 = vmatprep.subr.mxu0 0.0
        %2287 = vmatpush2.xpose.msra.mxu0 0.0
        %2288 = vmatprep.subr.mxu0 0.0
        %2289 = vmatpush2.xpose.msra.mxu0 0.0
        %2290 = vmatprep.subr.mxu0 0.0
        %2291 = vmatpush2.xpose.msra.mxu0 0.0
        %2292 = vmatprep.subr.mxu0 0.0
        %2293 = vmatpush2.xpose.msra.mxu0 0.0
        %2294 = vmatprep.subr.mxu0 0.0
        %2295 = vmatpush2.xpose.msra.mxu0 0.0
        %2296 = vmatprep.subr.mxu0 0.0
        %2297 = vmatpush2.xpose.msra.mxu0 0.0
        %2298 = vmatprep.subr.mxu0 0.0
        %2299 = vmatpush2.xpose.msra.mxu0 0.0
        %2300 = vmatprep.mubr.f32.mxu0 0.0
        %2301 = vmatmul.mubr.f32.gmra.mxu0 %v2231
        %v2302 = vpop.f32.mrf.mxu0
        %v2303 = vadd.f32 0.0, %v2302
        %v2304 = vpop.f32.mrf.mxu0
        %2305 = vdwg.mxu0
        %v2307 = vsel %vm1849, %v1263, 0
        %v2310 = vsel %vm1849, %v1555, 0
        %2312 = vmatprep.subr.mxu0 0.0
        %2313 = vmatpush1.xpose.msra.mxu0 0.0
        %2314 = vmatprep.subr.mxu0 0.0
        %2315 = vmatpush1.xpose.msra.mxu0 0.0
        %2316 = vmatprep.subr.mxu0 0.0
        %2317 = vmatpush1.xpose.msra.mxu0 0.0
        %2318 = vmatprep.subr.mxu0 0.0
        %2319 = vmatpush1.xpose.msra.mxu0 0.0
        %2320 = vmatprep.subr.mxu0 0.0
        %2321 = vmatpush1.xpose.msra.mxu0 0.0
        %2322 = vmatprep.subr.mxu0 0.0
        %2323 = vmatpush1.xpose.msra.mxu0 0.0
        %2324 = vmatprep.subr.mxu0 0.0
        %2325 = vmatpush1.xpose.msra.mxu0 0.0
        %2326 = vmatprep.subr.mxu0 0.0
        %2327 = vmatpush1.xpose.msra.mxu0 0.0
        %2328 = vmatprep.subr.mxu0 0.0
        %2329 = vmatpush1.xpose.msra.mxu0 0.0
        %2330 = vmatprep.subr.mxu0 0.0
        %2331 = vmatpush1.xpose.msra.mxu0 0.0
        %2332 = vmatprep.subr.mxu0 0.0
        %2333 = vmatpush1.xpose.msra.mxu0 0.0
        %2334 = vmatprep.subr.mxu0 0.0
        %2335 = vmatpush1.xpose.msra.mxu0 0.0
        %2336 = vmatprep.subr.mxu0 0.0
        %2337 = vmatpush1.xpose.msra.mxu0 0.0
        %2338 = vmatprep.subr.mxu0 0.0
        %2339 = vmatpush1.xpose.msra.mxu0 0.0
        %2340 = vmatprep.subr.mxu0 0.0
        %2341 = vmatpush1.xpose.msra.mxu0 0.0
        %2342 = vmatprep.subr.mxu0 0.0
        %2343 = vmatpush1.xpose.msra.mxu0 %v2310
        %2344 = vmatprep.subr.mxu0 0.0
        %2345 = vmatpush2.xpose.msra.mxu0 0.0
        %2346 = vmatprep.subr.mxu0 0.0
        %2347 = vmatpush2.xpose.msra.mxu0 0.0
        %2348 = vmatprep.subr.mxu0 0.0
        %2349 = vmatpush2.xpose.msra.mxu0 0.0
        %2350 = vmatprep.subr.mxu0 0.0
        %2351 = vmatpush2.xpose.msra.mxu0 0.0
        %2352 = vmatprep.subr.mxu0 0.0
        %2353 = vmatpush2.xpose.msra.mxu0 0.0
        %2354 = vmatprep.subr.mxu0 0.0
        %2355 = vmatpush2.xpose.msra.mxu0 0.0
        %2356 = vmatprep.subr.mxu0 0.0
        %2357 = vmatpush2.xpose.msra.mxu0 0.0
        %2358 = vmatprep.subr.mxu0 0.0
        %2359 = vmatpush2.xpose.msra.mxu0 0.0
        %2360 = vmatprep.subr.mxu0 0.0
        %2361 = vmatpush2.xpose.msra.mxu0 0.0
        %2362 = vmatprep.subr.mxu0 0.0
        %2363 = vmatpush2.xpose.msra.mxu0 0.0
        %2364 = vmatprep.subr.mxu0 0.0
        %2365 = vmatpush2.xpose.msra.mxu0 0.0
        %2366 = vmatprep.subr.mxu0 0.0
        %2367 = vmatpush2.xpose.msra.mxu0 0.0
        %2368 = vmatprep.subr.mxu0 0.0
        %2369 = vmatpush2.xpose.msra.mxu0 0.0
        %2370 = vmatprep.subr.mxu0 0.0
        %2371 = vmatpush2.xpose.msra.mxu0 0.0
        %2372 = vmatprep.subr.mxu0 0.0
        %2373 = vmatpush2.xpose.msra.mxu0 0.0
        %2374 = vmatprep.subr.mxu0 0.0
        %2375 = vmatpush2.xpose.msra.mxu0 0.0
        %2376 = vmatprep.mubr.f32.mxu0 0.0
        %2377 = vmatmul.mubr.f32.gmra.mxu0 %v2307
        %v2378 = vpop.f32.mrf.mxu0
        %v2379 = vadd.f32 0.0, %v2378
        %v2380 = vpop.f32.mrf.mxu0
        %2381 = vdwg.mxu0
        %v2383 = vsel %vm1849, %v1264, 0
        %v2386 = vsel %vm1849, %v1556, 0
        %2388 = vmatprep.subr.mxu0 0.0
        %2389 = vmatpush1.xpose.msra.mxu0 0.0
        %2390 = vmatprep.subr.mxu0 0.0
        %2391 = vmatpush1.xpose.msra.mxu0 0.0
        %2392 = vmatprep.subr.mxu0 0.0
        %2393 = vmatpush1.xpose.msra.mxu0 0.0
        %2394 = vmatprep.subr.mxu0 0.0
        %2395 = vmatpush1.xpose.msra.mxu0 0.0
        %2396 = vmatprep.subr.mxu0 0.0
        %2397 = vmatpush1.xpose.msra.mxu0 0.0
        %2398 = vmatprep.subr.mxu0 0.0
        %2399 = vmatpush1.xpose.msra.mxu0 0.0
        %2400 = vmatprep.subr.mxu0 0.0
        %2401 = vmatpush1.xpose.msra.mxu0 0.0
        %2402 = vmatprep.subr.mxu0 0.0
        %2403 = vmatpush1.xpose.msra.mxu0 0.0
        %2404 = vmatprep.subr.mxu0 0.0
        %2405 = vmatpush1.xpose.msra.mxu0 0.0
        %2406 = vmatprep.subr.mxu0 0.0
        %2407 = vmatpush1.xpose.msra.mxu0 0.0
        %2408 = vmatprep.subr.mxu0 0.0
        %2409 = vmatpush1.xpose.msra.mxu0 0.0
        %2410 = vmatprep.subr.mxu0 0.0
        %2411 = vmatpush1.xpose.msra.mxu0 0.0
        %2412 = vmatprep.subr.mxu0 0.0
        %2413 = vmatpush1.xpose.msra.mxu0 0.0
        %2414 = vmatprep.subr.mxu0 0.0
        %2415 = vmatpush1.xpose.msra.mxu0 0.0
        %2416 = vmatprep.subr.mxu0 0.0
        %2417 = vmatpush1.xpose.msra.mxu0 0.0
        %2418 = vmatprep.subr.mxu0 0.0
        %2419 = vmatpush1.xpose.msra.mxu0 %v2386
        %2420 = vmatprep.subr.mxu0 0.0
        %2421 = vmatpush2.xpose.msra.mxu0 0.0
        %2422 = vmatprep.subr.mxu0 0.0
        %2423 = vmatpush2.xpose.msra.mxu0 0.0
        %2424 = vmatprep.subr.mxu0 0.0
        %2425 = vmatpush2.xpose.msra.mxu0 0.0
        %2426 = vmatprep.subr.mxu0 0.0
        %2427 = vmatpush2.xpose.msra.mxu0 0.0
        %2428 = vmatprep.subr.mxu0 0.0
        %2429 = vmatpush2.xpose.msra.mxu0 0.0
        %2430 = vmatprep.subr.mxu0 0.0
        %2431 = vmatpush2.xpose.msra.mxu0 0.0
        %2432 = vmatprep.subr.mxu0 0.0
        %2433 = vmatpush2.xpose.msra.mxu0 0.0
        %2434 = vmatprep.subr.mxu0 0.0
        %2435 = vmatpush2.xpose.msra.mxu0 0.0
        %2436 = vmatprep.subr.mxu0 0.0
        %2437 = vmatpush2.xpose.msra.mxu0 0.0
        %2438 = vmatprep.subr.mxu0 0.0
        %2439 = vmatpush2.xpose.msra.mxu0 0.0
        %2440 = vmatprep.subr.mxu0 0.0
        %2441 = vmatpush2.xpose.msra.mxu0 0.0
        %2442 = vmatprep.subr.mxu0 0.0
        %2443 = vmatpush2.xpose.msra.mxu0 0.0
        %2444 = vmatprep.subr.mxu0 0.0
        %2445 = vmatpush2.xpose.msra.mxu0 0.0
        %2446 = vmatprep.subr.mxu0 0.0
        %2447 = vmatpush2.xpose.msra.mxu0 0.0
        %2448 = vmatprep.subr.mxu0 0.0
        %2449 = vmatpush2.xpose.msra.mxu0 0.0
        %2450 = vmatprep.subr.mxu0 0.0
        %2451 = vmatpush2.xpose.msra.mxu0 0.0
        %2452 = vmatprep.mubr.f32.mxu0 0.0
        %2453 = vmatmul.mubr.f32.gmra.mxu0 %v2383
        %v2454 = vpop.f32.mrf.mxu0
        %v2455 = vadd.f32 0.0, %v2454
        %v2456 = vpop.f32.mrf.mxu0
        %2457 = vdwg.mxu0
        %v2458 = vmul.f32 %v1923, 0.35355338
        %v2459 = vmul.f32 %v1999, 0.35355338
        %v2460 = vmul.f32 %v2075, 0.35355338
        %v2461 = vmul.f32 %v2151, 0.35355338
        %v2462 = vmul.f32 %v2227, 0.35355338
        %v2463 = vmul.f32 %v2303, 0.35355338
        %v2464 = vmul.f32 %v2379, 0.35355338
        %v2465 = vmul.f32 %v2455, 0.35355338
        %v2466 = vld [vmem:[#allocation6] sm:$0xff]
        %v2467 = vadd.f32 %v2458, %v2466
        %v2468 = vadd.f32 %v2459, %v2466
        %v2469 = vadd.f32 %v2460, %v2466
        %v2470 = vadd.f32 %v2461, %v2466
        %v2471 = vadd.f32 %v2462, %v2466
        %v2472 = vadd.f32 %v2463, %v2466
        %v2473 = vadd.f32 %v2464, %v2466
        %v2474 = vadd.f32 %v2465, %v2466
        %v2475 = vsel %vm1849, %v2467, -inf
        %2476 = vmax.xlane.f32.xlu0 %v2475
        %v2477 = vpop.xlane.xlu0 %2476
        %v2478 = vsel %vm1849, %v2468, -inf
        %2479 = vmax.xlane.f32.xlu0 %v2478
        %v2480 = vpop.xlane.xlu0 %2479
        %v2481 = vsel %vm1849, %v2469, -inf
        %2482 = vmax.xlane.f32.xlu0 %v2481
        %v2483 = vpop.xlane.xlu0 %2482
        %v2484 = vsel %vm1849, %v2470, -inf
        %2485 = vmax.xlane.f32.xlu0 %v2484
        %v2486 = vpop.xlane.xlu0 %2485
        %v2487 = vsel %vm1849, %v2471, -inf
        %2488 = vmax.xlane.f32.xlu0 %v2487
        %v2489 = vpop.xlane.xlu0 %2488
        %v2490 = vsel %vm1849, %v2472, -inf
        %2491 = vmax.xlane.f32.xlu0 %v2490
        %v2492 = vpop.xlane.xlu0 %2491
        %v2493 = vsel %vm1849, %v2473, -inf
        %2494 = vmax.xlane.f32.xlu0 %v2493
        %v2495 = vpop.xlane.xlu0 %2494
        %v2496 = vsel %vm1849, %v2474, -inf
        %2497 = vmax.xlane.f32.xlu0 %v2496
        %v2498 = vpop.xlane.xlu0 %2497
        %v2499 = vsub.f32 %v2467, %v2477
        %v2500 = vsub.f32 %v2468, %v2480
        %v2501 = vsub.f32 %v2469, %v2483
        %v2502 = vsub.f32 %v2470, %v2486
        %v2503 = vsub.f32 %v2471, %v2489
        %v2504 = vsub.f32 %v2472, %v2492
        %v2505 = vsub.f32 %v2473, %v2495
        %v2506 = vsub.f32 %v2474, %v2498
        %v2507 = vmul.f32 %v2499, 1.442695
        %v2508 = vpow.pop %v2507
        %v2509 = vmul.f32 %v2500, 1.442695
        %v2510 = vpow.pop %v2509
        %v2511 = vmul.f32 %v2501, 1.442695
        %v2512 = vpow.pop %v2511
        %v2513 = vmul.f32 %v2502, 1.442695
        %v2514 = vpow.pop %v2513
        %v2515 = vmul.f32 %v2503, 1.442695
        %v2516 = vpow.pop %v2515
        %v2517 = vmul.f32 %v2504, 1.442695
        %v2518 = vpow.pop %v2517
        %v2519 = vmul.f32 %v2505, 1.442695
        %v2520 = vpow.pop %v2519
        %v2521 = vmul.f32 %v2506, 1.442695
        %v2522 = vpow.pop %v2521
        %v2523 = vsel %vm1849, %v2508, 0.0
        %2524 = vadd.xlane.f32.xlu0 %v2523
        %v2525 = vpop.xlane.xlu0 %2524
        %v2526 = vsel %vm1849, %v2510, 0.0
        %2527 = vadd.xlane.f32.xlu0 %v2526
        %v2528 = vpop.xlane.xlu0 %2527
        %v2529 = vsel %vm1849, %v2512, 0.0
        %2530 = vadd.xlane.f32.xlu0 %v2529
        %v2531 = vpop.xlane.xlu0 %2530
        %v2532 = vsel %vm1849, %v2514, 0.0
        %2533 = vadd.xlane.f32.xlu0 %v2532
        %v2534 = vpop.xlane.xlu0 %2533
        %v2535 = vsel %vm1849, %v2516, 0.0
        %2536 = vadd.xlane.f32.xlu0 %v2535
        %v2537 = vpop.xlane.xlu0 %2536
        %v2538 = vsel %vm1849, %v2518, 0.0
        %2539 = vadd.xlane.f32.xlu0 %v2538
        %v2540 = vpop.xlane.xlu0 %2539
        %v2541 = vsel %vm1849, %v2520, 0.0
        %2542 = vadd.xlane.f32.xlu0 %v2541
        %v2543 = vpop.xlane.xlu0 %2542
        %v2544 = vsel %vm1849, %v2522, 0.0
        %2545 = vadd.xlane.f32.xlu0 %v2544
        %v2546 = vpop.xlane.xlu0 %2545
        %v2547 = vrcp.pop %v2525
        %v2548 = vrcp.pop %v2528
        %v2549 = vrcp.pop %v2531
        %v2550 = vrcp.pop %v2534
        %v2551 = vrcp.pop %v2537
        %v2552 = vrcp.pop %v2540
        %v2553 = vrcp.pop %v2543
        %v2554 = vrcp.pop %v2546
        %v2555 = vmul.f32 %v2525, %v2547
        %v2556 = vmul.f32 %v2528, %v2548
        %v2557 = vmul.f32 %v2531, %v2549
        %v2558 = vmul.f32 %v2534, %v2550
        %v2559 = vmul.f32 %v2537, %v2551
        %v2560 = vmul.f32 %v2540, %v2552
        %v2561 = vmul.f32 %v2543, %v2553
        %v2562 = vmul.f32 %v2546, %v2554
        %v2563 = vsub.f32 2.0, %v2555
        %v2564 = vsub.f32 2.0, %v2556
        %v2565 = vsub.f32 2.0, %v2557
        %v2566 = vsub.f32 2.0, %v2558
        %v2567 = vsub.f32 2.0, %v2559
        %v2568 = vsub.f32 2.0, %v2560
        %v2569 = vsub.f32 2.0, %v2561
        %v2570 = vsub.f32 2.0, %v2562
        %v2571 = vmul.f32 %v2547, %v2563
        %v2572 = vmul.f32 %v2548, %v2564
        %v2573 = vmul.f32 %v2549, %v2565
        %v2574 = vmul.f32 %v2550, %v2566
        %v2575 = vmul.f32 %v2551, %v2567
        %v2576 = vmul.f32 %v2552, %v2568
        %v2577 = vmul.f32 %v2553, %v2569
        %v2578 = vmul.f32 %v2554, %v2570
        %v2579 = vmul.f32 %v2508, %v2571
        %v2580 = vmul.f32 %v2510, %v2572
        %v2581 = vmul.f32 %v2512, %v2573
        %v2582 = vmul.f32 %v2514, %v2574
        %v2583 = vmul.f32 %v2516, %v2575
        %v2584 = vmul.f32 %v2518, %v2576
        %v2585 = vmul.f32 %v2520, %v2577
        %v2586 = vmul.f32 %v2522, %v2578
        %v2588 = vsel %vm1849, %v2579, 0
        %2590 = vmatprep.subr.mxu0 0.0
        %2591 = vmatpush1.msra.mxu0 0.0
        %2592 = vmatprep.subr.mxu0 0.0
        %2593 = vmatpush1.msra.mxu0 0.0
        %2594 = vmatprep.subr.mxu0 0.0
        %2595 = vmatpush1.msra.mxu0 0.0
        %2596 = vmatprep.subr.mxu0 0.0
        %2597 = vmatpush1.msra.mxu0 0.0
        %2598 = vmatprep.subr.mxu0 0.0
        %2599 = vmatpush1.msra.mxu0 0.0
        %2600 = vmatprep.subr.mxu0 0.0
        %2601 = vmatpush1.msra.mxu0 0.0
        %2602 = vmatprep.subr.mxu0 0.0
        %2603 = vmatpush1.msra.mxu0 0.0
        %2604 = vmatprep.subr.mxu0 0.0
        %2605 = vmatpush1.msra.mxu0 0.0
        %2606 = vmatprep.subr.mxu0 0.0
        %2607 = vmatpush1.msra.mxu0 0.0
        %2608 = vmatprep.subr.mxu0 0.0
        %2609 = vmatpush1.msra.mxu0 0.0
        %2610 = vmatprep.subr.mxu0 0.0
        %2611 = vmatpush1.msra.mxu0 0.0
        %2612 = vmatprep.subr.mxu0 0.0
        %2613 = vmatpush1.msra.mxu0 0.0
        %2614 = vmatprep.subr.mxu0 0.0
        %2615 = vmatpush1.msra.mxu0 0.0
        %2616 = vmatprep.subr.mxu0 0.0
        %2617 = vmatpush1.msra.mxu0 0.0
        %2618 = vmatprep.subr.mxu0 0.0
        %2619 = vmatpush1.msra.mxu0 0.0
        %2620 = vmatprep.subr.mxu0 0.0
        %2621 = vmatpush1.msra.mxu0 %v1777
        %2622 = vmatprep.subr.mxu0 0.0
        %2623 = vmatpush2.msra.mxu0 0.0
        %2624 = vmatprep.subr.mxu0 0.0
        %2625 = vmatpush2.msra.mxu0 0.0
        %2626 = vmatprep.subr.mxu0 0.0
        %2627 = vmatpush2.msra.mxu0 0.0
        %2628 = vmatprep.subr.mxu0 0.0
        %2629 = vmatpush2.msra.mxu0 0.0
        %2630 = vmatprep.subr.mxu0 0.0
        %2631 = vmatpush2.msra.mxu0 0.0
        %2632 = vmatprep.subr.mxu0 0.0
        %2633 = vmatpush2.msra.mxu0 0.0
        %2634 = vmatprep.subr.mxu0 0.0
        %2635 = vmatpush2.msra.mxu0 0.0
        %2636 = vmatprep.subr.mxu0 0.0
        %2637 = vmatpush2.msra.mxu0 0.0
        %2638 = vmatprep.subr.mxu0 0.0
        %2639 = vmatpush2.msra.mxu0 0.0
        %2640 = vmatprep.subr.mxu0 0.0
        %2641 = vmatpush2.msra.mxu0 0.0
        %2642 = vmatprep.subr.mxu0 0.0
        %2643 = vmatpush2.msra.mxu0 0.0
        %2644 = vmatprep.subr.mxu0 0.0
        %2645 = vmatpush2.msra.mxu0 0.0
        %2646 = vmatprep.subr.mxu0 0.0
        %2647 = vmatpush2.msra.mxu0 0.0
        %2648 = vmatprep.subr.mxu0 0.0
        %2649 = vmatpush2.msra.mxu0 0.0
        %2650 = vmatprep.subr.mxu0 0.0
        %2651 = vmatpush2.msra.mxu0 0.0
        %2652 = vmatprep.subr.mxu0 0.0
        %2653 = vmatpush2.msra.mxu0 0.0
        %2654 = vmatprep.mubr.f32.mxu0 0.0
        %2655 = vmatmul.mubr.f32.gmra.mxu0 %v2588
        %v2656 = vpop.f32.mrf.mxu0
        %v2657 = vadd.f32 0.0, %v2656
        %v2658 = vpop.f32.mrf.mxu0
        %2659 = vdwg.mxu0
        %v2661 = vsel %vm1849, %v2580, 0
        %2663 = vmatprep.subr.mxu0 0.0
        %2664 = vmatpush1.msra.mxu0 0.0
        %2665 = vmatprep.subr.mxu0 0.0
        %2666 = vmatpush1.msra.mxu0 0.0
        %2667 = vmatprep.subr.mxu0 0.0
        %2668 = vmatpush1.msra.mxu0 0.0
        %2669 = vmatprep.subr.mxu0 0.0
        %2670 = vmatpush1.msra.mxu0 0.0
        %2671 = vmatprep.subr.mxu0 0.0
        %2672 = vmatpush1.msra.mxu0 0.0
        %2673 = vmatprep.subr.mxu0 0.0
        %2674 = vmatpush1.msra.mxu0 0.0
        %2675 = vmatprep.subr.mxu0 0.0
        %2676 = vmatpush1.msra.mxu0 0.0
        %2677 = vmatprep.subr.mxu0 0.0
        %2678 = vmatpush1.msra.mxu0 0.0
        %2679 = vmatprep.subr.mxu0 0.0
        %2680 = vmatpush1.msra.mxu0 0.0
        %2681 = vmatprep.subr.mxu0 0.0
        %2682 = vmatpush1.msra.mxu0 0.0
        %2683 = vmatprep.subr.mxu0 0.0
        %2684 = vmatpush1.msra.mxu0 0.0
        %2685 = vmatprep.subr.mxu0 0.0
        %2686 = vmatpush1.msra.mxu0 0.0
        %2687 = vmatprep.subr.mxu0 0.0
        %2688 = vmatpush1.msra.mxu0 0.0
        %2689 = vmatprep.subr.mxu0 0.0
        %2690 = vmatpush1.msra.mxu0 0.0
        %2691 = vmatprep.subr.mxu0 0.0
        %2692 = vmatpush1.msra.mxu0 0.0
        %2693 = vmatprep.subr.mxu0 0.0
        %2694 = vmatpush1.msra.mxu0 %v1778
        %2695 = vmatprep.subr.mxu0 0.0
        %2696 = vmatpush2.msra.mxu0 0.0
        %2697 = vmatprep.subr.mxu0 0.0
        %2698 = vmatpush2.msra.mxu0 0.0
        %2699 = vmatprep.subr.mxu0 0.0
        %2700 = vmatpush2.msra.mxu0 0.0
        %2701 = vmatprep.subr.mxu0 0.0
        %2702 = vmatpush2.msra.mxu0 0.0
        %2703 = vmatprep.subr.mxu0 0.0
        %2704 = vmatpush2.msra.mxu0 0.0
        %2705 = vmatprep.subr.mxu0 0.0
        %2706 = vmatpush2.msra.mxu0 0.0
        %2707 = vmatprep.subr.mxu0 0.0
        %2708 = vmatpush2.msra.mxu0 0.0
        %2709 = vmatprep.subr.mxu0 0.0
        %2710 = vmatpush2.msra.mxu0 0.0
        %2711 = vmatprep.subr.mxu0 0.0
        %2712 = vmatpush2.msra.mxu0 0.0
        %2713 = vmatprep.subr.mxu0 0.0
        %2714 = vmatpush2.msra.mxu0 0.0
        %2715 = vmatprep.subr.mxu0 0.0
        %2716 = vmatpush2.msra.mxu0 0.0
        %2717 = vmatprep.subr.mxu0 0.0
        %2718 = vmatpush2.msra.mxu0 0.0
        %2719 = vmatprep.subr.mxu0 0.0
        %2720 = vmatpush2.msra.mxu0 0.0
        %2721 = vmatprep.subr.mxu0 0.0
        %2722 = vmatpush2.msra.mxu0 0.0
        %2723 = vmatprep.subr.mxu0 0.0
        %2724 = vmatpush2.msra.mxu0 0.0
        %2725 = vmatprep.subr.mxu0 0.0
        %2726 = vmatpush2.msra.mxu0 0.0
        %2727 = vmatprep.mubr.f32.mxu0 0.0
        %2728 = vmatmul.mubr.f32.gmra.mxu0 %v2661
        %v2729 = vpop.f32.mrf.mxu0
        %v2730 = vadd.f32 0.0, %v2729
        %v2731 = vpop.f32.mrf.mxu0
        %2732 = vdwg.mxu0
        %v2734 = vsel %vm1849, %v2581, 0
        %2736 = vmatprep.subr.mxu0 0.0
        %2737 = vmatpush1.msra.mxu0 0.0
        %2738 = vmatprep.subr.mxu0 0.0
        %2739 = vmatpush1.msra.mxu0 0.0
        %2740 = vmatprep.subr.mxu0 0.0
        %2741 = vmatpush1.msra.mxu0 0.0
        %2742 = vmatprep.subr.mxu0 0.0
        %2743 = vmatpush1.msra.mxu0 0.0
        %2744 = vmatprep.subr.mxu0 0.0
        %2745 = vmatpush1.msra.mxu0 0.0
        %2746 = vmatprep.subr.mxu0 0.0
        %2747 = vmatpush1.msra.mxu0 0.0
        %2748 = vmatprep.subr.mxu0 0.0
        %2749 = vmatpush1.msra.mxu0 0.0
        %2750 = vmatprep.subr.mxu0 0.0
        %2751 = vmatpush1.msra.mxu0 0.0
        %2752 = vmatprep.subr.mxu0 0.0
        %2753 = vmatpush1.msra.mxu0 0.0
        %2754 = vmatprep.subr.mxu0 0.0
        %2755 = vmatpush1.msra.mxu0 0.0
        %2756 = vmatprep.subr.mxu0 0.0
        %2757 = vmatpush1.msra.mxu0 0.0
        %2758 = vmatprep.subr.mxu0 0.0
        %2759 = vmatpush1.msra.mxu0 0.0
        %2760 = vmatprep.subr.mxu0 0.0
        %2761 = vmatpush1.msra.mxu0 0.0
        %2762 = vmatprep.subr.mxu0 0.0
        %2763 = vmatpush1.msra.mxu0 0.0
        %2764 = vmatprep.subr.mxu0 0.0
        %2765 = vmatpush1.msra.mxu0 0.0
        %2766 = vmatprep.subr.mxu0 0.0
        %2767 = vmatpush1.msra.mxu0 %v1779
        %2768 = vmatprep.subr.mxu0 0.0
        %2769 = vmatpush2.msra.mxu0 0.0
        %2770 = vmatprep.subr.mxu0 0.0
        %2771 = vmatpush2.msra.mxu0 0.0
        %2772 = vmatprep.subr.mxu0 0.0
        %2773 = vmatpush2.msra.mxu0 0.0
        %2774 = vmatprep.subr.mxu0 0.0
        %2775 = vmatpush2.msra.mxu0 0.0
        %2776 = vmatprep.subr.mxu0 0.0
        %2777 = vmatpush2.msra.mxu0 0.0
        %2778 = vmatprep.subr.mxu0 0.0
        %2779 = vmatpush2.msra.mxu0 0.0
        %2780 = vmatprep.subr.mxu0 0.0
        %2781 = vmatpush2.msra.mxu0 0.0
        %2782 = vmatprep.subr.mxu0 0.0
        %2783 = vmatpush2.msra.mxu0 0.0
        %2784 = vmatprep.subr.mxu0 0.0
        %2785 = vmatpush2.msra.mxu0 0.0
        %2786 = vmatprep.subr.mxu0 0.0
        %2787 = vmatpush2.msra.mxu0 0.0
        %2788 = vmatprep.subr.mxu0 0.0
        %2789 = vmatpush2.msra.mxu0 0.0
        %2790 = vmatprep.subr.mxu0 0.0
        %2791 = vmatpush2.msra.mxu0 0.0
        %2792 = vmatprep.subr.mxu0 0.0
        %2793 = vmatpush2.msra.mxu0 0.0
        %2794 = vmatprep.subr.mxu0 0.0
        %2795 = vmatpush2.msra.mxu0 0.0
        %2796 = vmatprep.subr.mxu0 0.0
        %2797 = vmatpush2.msra.mxu0 0.0
        %2798 = vmatprep.subr.mxu0 0.0
        %2799 = vmatpush2.msra.mxu0 0.0
        %2800 = vmatprep.mubr.f32.mxu0 0.0
        %2801 = vmatmul.mubr.f32.gmra.mxu0 %v2734
        %v2802 = vpop.f32.mrf.mxu0
        %v2803 = vadd.f32 0.0, %v2802
        %v2804 = vpop.f32.mrf.mxu0
        %2805 = vdwg.mxu0
        %v2807 = vsel %vm1849, %v2582, 0
        %2809 = vmatprep.subr.mxu0 0.0
        %2810 = vmatpush1.msra.mxu0 0.0
        %2811 = vmatprep.subr.mxu0 0.0
        %2812 = vmatpush1.msra.mxu0 0.0
        %2813 = vmatprep.subr.mxu0 0.0
        %2814 = vmatpush1.msra.mxu0 0.0
        %2815 = vmatprep.subr.mxu0 0.0
        %2816 = vmatpush1.msra.mxu0 0.0
        %2817 = vmatprep.subr.mxu0 0.0
        %2818 = vmatpush1.msra.mxu0 0.0
        %2819 = vmatprep.subr.mxu0 0.0
        %2820 = vmatpush1.msra.mxu0 0.0
        %2821 = vmatprep.subr.mxu0 0.0
        %2822 = vmatpush1.msra.mxu0 0.0
        %2823 = vmatprep.subr.mxu0 0.0
        %2824 = vmatpush1.msra.mxu0 0.0
        %2825 = vmatprep.subr.mxu0 0.0
        %2826 = vmatpush1.msra.mxu0 0.0
        %2827 = vmatprep.subr.mxu0 0.0
        %2828 = vmatpush1.msra.mxu0 0.0
        %2829 = vmatprep.subr.mxu0 0.0
        %2830 = vmatpush1.msra.mxu0 0.0
        %2831 = vmatprep.subr.mxu0 0.0
        %2832 = vmatpush1.msra.mxu0 0.0
        %2833 = vmatprep.subr.mxu0 0.0
        %2834 = vmatpush1.msra.mxu0 0.0
        %2835 = vmatprep.subr.mxu0 0.0
        %2836 = vmatpush1.msra.mxu0 0.0
        %2837 = vmatprep.subr.mxu0 0.0
        %2838 = vmatpush1.msra.mxu0 0.0
        %2839 = vmatprep.subr.mxu0 0.0
        %2840 = vmatpush1.msra.mxu0 %v1780
        %2841 = vmatprep.subr.mxu0 0.0
        %2842 = vmatpush2.msra.mxu0 0.0
        %2843 = vmatprep.subr.mxu0 0.0
        %2844 = vmatpush2.msra.mxu0 0.0
        %2845 = vmatprep.subr.mxu0 0.0
        %2846 = vmatpush2.msra.mxu0 0.0
        %2847 = vmatprep.subr.mxu0 0.0
        %2848 = vmatpush2.msra.mxu0 0.0
        %2849 = vmatprep.subr.mxu0 0.0
        %2850 = vmatpush2.msra.mxu0 0.0
        %2851 = vmatprep.subr.mxu0 0.0
        %2852 = vmatpush2.msra.mxu0 0.0
        %2853 = vmatprep.subr.mxu0 0.0
        %2854 = vmatpush2.msra.mxu0 0.0
        %2855 = vmatprep.subr.mxu0 0.0
        %2856 = vmatpush2.msra.mxu0 0.0
        %2857 = vmatprep.subr.mxu0 0.0
        %2858 = vmatpush2.msra.mxu0 0.0
        %2859 = vmatprep.subr.mxu0 0.0
        %2860 = vmatpush2.msra.mxu0 0.0
        %2861 = vmatprep.subr.mxu0 0.0
        %2862 = vmatpush2.msra.mxu0 0.0
        %2863 = vmatprep.subr.mxu0 0.0
        %2864 = vmatpush2.msra.mxu0 0.0
        %2865 = vmatprep.subr.mxu0 0.0
        %2866 = vmatpush2.msra.mxu0 0.0
        %2867 = vmatprep.subr.mxu0 0.0
        %2868 = vmatpush2.msra.mxu0 0.0
        %2869 = vmatprep.subr.mxu0 0.0
        %2870 = vmatpush2.msra.mxu0 0.0
        %2871 = vmatprep.subr.mxu0 0.0
        %2872 = vmatpush2.msra.mxu0 0.0
        %2873 = vmatprep.mubr.f32.mxu0 0.0
        %2874 = vmatmul.mubr.f32.gmra.mxu0 %v2807
        %v2875 = vpop.f32.mrf.mxu0
        %v2876 = vadd.f32 0.0, %v2875
        %v2877 = vpop.f32.mrf.mxu0
        %2878 = vdwg.mxu0
        %v2880 = vsel %vm1849, %v2583, 0
        %2882 = vmatprep.subr.mxu0 0.0
        %2883 = vmatpush1.msra.mxu0 0.0
        %2884 = vmatprep.subr.mxu0 0.0
        %2885 = vmatpush1.msra.mxu0 0.0
        %2886 = vmatprep.subr.mxu0 0.0
        %2887 = vmatpush1.msra.mxu0 0.0
        %2888 = vmatprep.subr.mxu0 0.0
        %2889 = vmatpush1.msra.mxu0 0.0
        %2890 = vmatprep.subr.mxu0 0.0
        %2891 = vmatpush1.msra.mxu0 0.0
        %2892 = vmatprep.subr.mxu0 0.0
        %2893 = vmatpush1.msra.mxu0 0.0
        %2894 = vmatprep.subr.mxu0 0.0
        %2895 = vmatpush1.msra.mxu0 0.0
        %2896 = vmatprep.subr.mxu0 0.0
        %2897 = vmatpush1.msra.mxu0 0.0
        %2898 = vmatprep.subr.mxu0 0.0
        %2899 = vmatpush1.msra.mxu0 0.0
        %2900 = vmatprep.subr.mxu0 0.0
        %2901 = vmatpush1.msra.mxu0 0.0
        %2902 = vmatprep.subr.mxu0 0.0
        %2903 = vmatpush1.msra.mxu0 0.0
        %2904 = vmatprep.subr.mxu0 0.0
        %2905 = vmatpush1.msra.mxu0 0.0
        %2906 = vmatprep.subr.mxu0 0.0
        %2907 = vmatpush1.msra.mxu0 0.0
        %2908 = vmatprep.subr.mxu0 0.0
        %2909 = vmatpush1.msra.mxu0 0.0
        %2910 = vmatprep.subr.mxu0 0.0
        %2911 = vmatpush1.msra.mxu0 0.0
        %2912 = vmatprep.subr.mxu0 0.0
        %2913 = vmatpush1.msra.mxu0 %v1845
        %2914 = vmatprep.subr.mxu0 0.0
        %2915 = vmatpush2.msra.mxu0 0.0
        %2916 = vmatprep.subr.mxu0 0.0
        %2917 = vmatpush2.msra.mxu0 0.0
        %2918 = vmatprep.subr.mxu0 0.0
        %2919 = vmatpush2.msra.mxu0 0.0
        %2920 = vmatprep.subr.mxu0 0.0
        %2921 = vmatpush2.msra.mxu0 0.0
        %2922 = vmatprep.subr.mxu0 0.0
        %2923 = vmatpush2.msra.mxu0 0.0
        %2924 = vmatprep.subr.mxu0 0.0
        %2925 = vmatpush2.msra.mxu0 0.0
        %2926 = vmatprep.subr.mxu0 0.0
        %2927 = vmatpush2.msra.mxu0 0.0
        %2928 = vmatprep.subr.mxu0 0.0
        %2929 = vmatpush2.msra.mxu0 0.0
        %2930 = vmatprep.subr.mxu0 0.0
        %2931 = vmatpush2.msra.mxu0 0.0
        %2932 = vmatprep.subr.mxu0 0.0
        %2933 = vmatpush2.msra.mxu0 0.0
        %2934 = vmatprep.subr.mxu0 0.0
        %2935 = vmatpush2.msra.mxu0 0.0
        %2936 = vmatprep.subr.mxu0 0.0
        %2937 = vmatpush2.msra.mxu0 0.0
        %2938 = vmatprep.subr.mxu0 0.0
        %2939 = vmatpush2.msra.mxu0 0.0
        %2940 = vmatprep.subr.mxu0 0.0
        %2941 = vmatpush2.msra.mxu0 0.0
        %2942 = vmatprep.subr.mxu0 0.0
        %2943 = vmatpush2.msra.mxu0 0.0
        %2944 = vmatprep.subr.mxu0 0.0
        %2945 = vmatpush2.msra.mxu0 0.0
        %2946 = vmatprep.mubr.f32.mxu0 0.0
        %2947 = vmatmul.mubr.f32.gmra.mxu0 %v2880
        %v2948 = vpop.f32.mrf.mxu0
        %v2949 = vadd.f32 0.0, %v2948
        %v2950 = vpop.f32.mrf.mxu0
        %2951 = vdwg.mxu0
        %v2953 = vsel %vm1849, %v2584, 0
        %2955 = vmatprep.subr.mxu0 0.0
        %2956 = vmatpush1.msra.mxu0 0.0
        %2957 = vmatprep.subr.mxu0 0.0
        %2958 = vmatpush1.msra.mxu0 0.0
        %2959 = vmatprep.subr.mxu0 0.0
        %2960 = vmatpush1.msra.mxu0 0.0
        %2961 = vmatprep.subr.mxu0 0.0
        %2962 = vmatpush1.msra.mxu0 0.0
        %2963 = vmatprep.subr.mxu0 0.0
        %2964 = vmatpush1.msra.mxu0 0.0
        %2965 = vmatprep.subr.mxu0 0.0
        %2966 = vmatpush1.msra.mxu0 0.0
        %2967 = vmatprep.subr.mxu0 0.0
        %2968 = vmatpush1.msra.mxu0 0.0
        %2969 = vmatprep.subr.mxu0 0.0
        %2970 = vmatpush1.msra.mxu0 0.0
        %2971 = vmatprep.subr.mxu0 0.0
        %2972 = vmatpush1.msra.mxu0 0.0
        %2973 = vmatprep.subr.mxu0 0.0
        %2974 = vmatpush1.msra.mxu0 0.0
        %2975 = vmatprep.subr.mxu0 0.0
        %2976 = vmatpush1.msra.mxu0 0.0
        %2977 = vmatprep.subr.mxu0 0.0
        %2978 = vmatpush1.msra.mxu0 0.0
        %2979 = vmatprep.subr.mxu0 0.0
        %2980 = vmatpush1.msra.mxu0 0.0
        %2981 = vmatprep.subr.mxu0 0.0
        %2982 = vmatpush1.msra.mxu0 0.0
        %2983 = vmatprep.subr.mxu0 0.0
        %2984 = vmatpush1.msra.mxu0 0.0
        %2985 = vmatprep.subr.mxu0 0.0
        %2986 = vmatpush1.msra.mxu0 %v1846
        %2987 = vmatprep.subr.mxu0 0.0
        %2988 = vmatpush2.msra.mxu0 0.0
        %2989 = vmatprep.subr.mxu0 0.0
        %2990 = vmatpush2.msra.mxu0 0.0
        %2991 = vmatprep.subr.mxu0 0.0
        %2992 = vmatpush2.msra.mxu0 0.0
        %2993 = vmatprep.subr.mxu0 0.0
        %2994 = vmatpush2.msra.mxu0 0.0
        %2995 = vmatprep.subr.mxu0 0.0
        %2996 = vmatpush2.msra.mxu0 0.0
        %2997 = vmatprep.subr.mxu0 0.0
        %2998 = vmatpush2.msra.mxu0 0.0
        %2999 = vmatprep.subr.mxu0 0.0
        %3000 = vmatpush2.msra.mxu0 0.0
        %3001 = vmatprep.subr.mxu0 0.0
        %3002 = vmatpush2.msra.mxu0 0.0
        %3003 = vmatprep.subr.mxu0 0.0
        %3004 = vmatpush2.msra.mxu0 0.0
        %3005 = vmatprep.subr.mxu0 0.0
        %3006 = vmatpush2.msra.mxu0 0.0
        %3007 = vmatprep.subr.mxu0 0.0
        %3008 = vmatpush2.msra.mxu0 0.0
        %3009 = vmatprep.subr.mxu0 0.0
        %3010 = vmatpush2.msra.mxu0 0.0
        %3011 = vmatprep.subr.mxu0 0.0
        %3012 = vmatpush2.msra.mxu0 0.0
        %3013 = vmatprep.subr.mxu0 0.0
        %3014 = vmatpush2.msra.mxu0 0.0
        %3015 = vmatprep.subr.mxu0 0.0
        %3016 = vmatpush2.msra.mxu0 0.0
        %3017 = vmatprep.subr.mxu0 0.0
        %3018 = vmatpush2.msra.mxu0 0.0
        %3019 = vmatprep.mubr.f32.mxu0 0.0
        %3020 = vmatmul.mubr.f32.gmra.mxu0 %v2953
        %v3021 = vpop.f32.mrf.mxu0
        %v3022 = vadd.f32 0.0, %v3021
        %v3023 = vpop.f32.mrf.mxu0
        %3024 = vdwg.mxu0
        %v3026 = vsel %vm1849, %v2585, 0
        %3028 = vmatprep.subr.mxu0 0.0
        %3029 = vmatpush1.msra.mxu0 0.0
        %3030 = vmatprep.subr.mxu0 0.0
        %3031 = vmatpush1.msra.mxu0 0.0
        %3032 = vmatprep.subr.mxu0 0.0
        %3033 = vmatpush1.msra.mxu0 0.0
        %3034 = vmatprep.subr.mxu0 0.0
        %3035 = vmatpush1.msra.mxu0 0.0
        %3036 = vmatprep.subr.mxu0 0.0
        %3037 = vmatpush1.msra.mxu0 0.0
        %3038 = vmatprep.subr.mxu0 0.0
        %3039 = vmatpush1.msra.mxu0 0.0
        %3040 = vmatprep.subr.mxu0 0.0
        %3041 = vmatpush1.msra.mxu0 0.0
        %3042 = vmatprep.subr.mxu0 0.0
        %3043 = vmatpush1.msra.mxu0 0.0
        %3044 = vmatprep.subr.mxu0 0.0
        %3045 = vmatpush1.msra.mxu0 0.0
        %3046 = vmatprep.subr.mxu0 0.0
        %3047 = vmatpush1.msra.mxu0 0.0
        %3048 = vmatprep.subr.mxu0 0.0
        %3049 = vmatpush1.msra.mxu0 0.0
        %3050 = vmatprep.subr.mxu0 0.0
        %3051 = vmatpush1.msra.mxu0 0.0
        %3052 = vmatprep.subr.mxu0 0.0
        %3053 = vmatpush1.msra.mxu0 0.0
        %3054 = vmatprep.subr.mxu0 0.0
        %3055 = vmatpush1.msra.mxu0 0.0
        %3056 = vmatprep.subr.mxu0 0.0
        %3057 = vmatpush1.msra.mxu0 0.0
        %3058 = vmatprep.subr.mxu0 0.0
        %3059 = vmatpush1.msra.mxu0 %v1847
        %3060 = vmatprep.subr.mxu0 0.0
        %3061 = vmatpush2.msra.mxu0 0.0
        %3062 = vmatprep.subr.mxu0 0.0
        %3063 = vmatpush2.msra.mxu0 0.0
        %3064 = vmatprep.subr.mxu0 0.0
        %3065 = vmatpush2.msra.mxu0 0.0
        %3066 = vmatprep.subr.mxu0 0.0
        %3067 = vmatpush2.msra.mxu0 0.0
        %3068 = vmatprep.subr.mxu0 0.0
        %3069 = vmatpush2.msra.mxu0 0.0
        %3070 = vmatprep.subr.mxu0 0.0
        %3071 = vmatpush2.msra.mxu0 0.0
        %3072 = vmatprep.subr.mxu0 0.0
        %3073 = vmatpush2.msra.mxu0 0.0
        %3074 = vmatprep.subr.mxu0 0.0
        %3075 = vmatpush2.msra.mxu0 0.0
        %3076 = vmatprep.subr.mxu0 0.0
        %3077 = vmatpush2.msra.mxu0 0.0
        %3078 = vmatprep.subr.mxu0 0.0
        %3079 = vmatpush2.msra.mxu0 0.0
        %3080 = vmatprep.subr.mxu0 0.0
        %3081 = vmatpush2.msra.mxu0 0.0
        %3082 = vmatprep.subr.mxu0 0.0
        %3083 = vmatpush2.msra.mxu0 0.0
        %3084 = vmatprep.subr.mxu0 0.0
        %3085 = vmatpush2.msra.mxu0 0.0
        %3086 = vmatprep.subr.mxu0 0.0
        %3087 = vmatpush2.msra.mxu0 0.0
        %3088 = vmatprep.subr.mxu0 0.0
        %3089 = vmatpush2.msra.mxu0 0.0
        %3090 = vmatprep.subr.mxu0 0.0
        %3091 = vmatpush2.msra.mxu0 0.0
        %3092 = vmatprep.mubr.f32.mxu0 0.0
        %3093 = vmatmul.mubr.f32.gmra.mxu0 %v3026
        %v3094 = vpop.f32.mrf.mxu0
        %v3095 = vadd.f32 0.0, %v3094
        %v3096 = vpop.f32.mrf.mxu0
        %3097 = vdwg.mxu0
        %v3099 = vsel %vm1849, %v2586, 0
        %3101 = vmatprep.subr.mxu0 0.0
        %3102 = vmatpush1.msra.mxu0 0.0
        %3103 = vmatprep.subr.mxu0 0.0
        %3104 = vmatpush1.msra.mxu0 0.0
        %3105 = vmatprep.subr.mxu0 0.0
        %3106 = vmatpush1.msra.mxu0 0.0
        %3107 = vmatprep.subr.mxu0 0.0
        %3108 = vmatpush1.msra.mxu0 0.0
        %3109 = vmatprep.subr.mxu0 0.0
        %3110 = vmatpush1.msra.mxu0 0.0
        %3111 = vmatprep.subr.mxu0 0.0
        %3112 = vmatpush1.msra.mxu0 0.0
        %3113 = vmatprep.subr.mxu0 0.0
        %3114 = vmatpush1.msra.mxu0 0.0
        %3115 = vmatprep.subr.mxu0 0.0
        %3116 = vmatpush1.msra.mxu0 0.0
        %3117 = vmatprep.subr.mxu0 0.0
        %3118 = vmatpush1.msra.mxu0 0.0
        %3119 = vmatprep.subr.mxu0 0.0
        %3120 = vmatpush1.msra.mxu0 0.0
        %3121 = vmatprep.subr.mxu0 0.0
        %3122 = vmatpush1.msra.mxu0 0.0
        %3123 = vmatprep.subr.mxu0 0.0
        %3124 = vmatpush1.msra.mxu0 0.0
        %3125 = vmatprep.subr.mxu0 0.0
        %3126 = vmatpush1.msra.mxu0 0.0
        %3127 = vmatprep.subr.mxu0 0.0
        %3128 = vmatpush1.msra.mxu0 0.0
        %3129 = vmatprep.subr.mxu0 0.0
        %3130 = vmatpush1.msra.mxu0 0.0
        %3131 = vmatprep.subr.mxu0 0.0
        %3132 = vmatpush1.msra.mxu0 %v1848
        %3133 = vmatprep.subr.mxu0 0.0
        %3134 = vmatpush2.msra.mxu0 0.0
        %3135 = vmatprep.subr.mxu0 0.0
        %3136 = vmatpush2.msra.mxu0 0.0
        %3137 = vmatprep.subr.mxu0 0.0
        %3138 = vmatpush2.msra.mxu0 0.0
        %3139 = vmatprep.subr.mxu0 0.0
        %3140 = vmatpush2.msra.mxu0 0.0
        %3141 = vmatprep.subr.mxu0 0.0
        %3142 = vmatpush2.msra.mxu0 0.0
        %3143 = vmatprep.subr.mxu0 0.0
        %3144 = vmatpush2.msra.mxu0 0.0
        %3145 = vmatprep.subr.mxu0 0.0
        %3146 = vmatpush2.msra.mxu0 0.0
        %3147 = vmatprep.subr.mxu0 0.0
        %3148 = vmatpush2.msra.mxu0 0.0
        %3149 = vmatprep.subr.mxu0 0.0
        %3150 = vmatpush2.msra.mxu0 0.0
        %3151 = vmatprep.subr.mxu0 0.0
        %3152 = vmatpush2.msra.mxu0 0.0
        %3153 = vmatprep.subr.mxu0 0.0
        %3154 = vmatpush2.msra.mxu0 0.0
        %3155 = vmatprep.subr.mxu0 0.0
        %3156 = vmatpush2.msra.mxu0 0.0
        %3157 = vmatprep.subr.mxu0 0.0
        %3158 = vmatpush2.msra.mxu0 0.0
        %3159 = vmatprep.subr.mxu0 0.0
        %3160 = vmatpush2.msra.mxu0 0.0
        %3161 = vmatprep.subr.mxu0 0.0
        %3162 = vmatpush2.msra.mxu0 0.0
        %3163 = vmatprep.subr.mxu0 0.0
        %3164 = vmatpush2.msra.mxu0 0.0
        %3165 = vmatprep.mubr.f32.mxu0 0.0
        %3166 = vmatmul.mubr.f32.gmra.mxu0 %v3099
        %v3167 = vpop.f32.mrf.mxu0
        %v3168 = vadd.f32 0.0, %v3167
        %v3169 = vpop.f32.mrf.mxu0
        %3170 = vdwg.mxu0
        %v3171 = vcombine.low %v2657, %v2803
        %v3172 = vcombine.high %v2657, %v2803
        %v3174 = vunpack.c.l.s4 1983009808
        %v3175 = vunpack.c.0.s8 %v3174
        %v3176 = vlaneseq
        %v3177 = vshrl.u32 %v3176, 7
        %v3178 = vsub.s32 %v3175, %v3177
        %v3179 = vrot.slane %v3171, %v3178
        %v3181 = vunpack.c.l.s4 1983009808
        %v3182 = vunpack.c.0.s8 %v3181
        %v3183 = vlaneseq
        %v3184 = vshrl.u32 %v3183, 7
        %v3185 = vsub.s32 %v3182, %v3184
        %v3186 = vrot.slane %v3172, %v3185
        %v3187 = vcombine.low %v2730, %v2876
        %v3188 = vcombine.high %v2730, %v2876
        %v3190 = vunpack.c.l.s4 1983009808
        %v3191 = vunpack.c.0.s8 %v3190
        %v3192 = vlaneseq
        %v3193 = vshrl.u32 %v3192, 7
        %v3194 = vsub.s32 %v3191, %v3193
        %v3195 = vrot.slane %v3187, %v3194
        %v3197 = vunpack.c.l.s4 1983009808
        %v3198 = vunpack.c.0.s8 %v3197
        %v3199 = vlaneseq
        %v3200 = vshrl.u32 %v3199, 7
        %v3201 = vsub.s32 %v3198, %v3200
        %v3202 = vrot.slane %v3188, %v3201
        %v3203 = vcombine.low %v3179, %v3195
        %v3204 = vcombine.high %v3179, %v3195
        %v3206 = vunpack.c.l.s4 1934713408
        %v3207 = vunpack.c.0.s8 %v3206
        %v3208 = vlaneseq
        %v3209 = vshrl.u32 %v3208, 7
        %v3210 = vsub.s32 %v3207, %v3209
        %v3211 = vrot.slane %v3203, %v3210
        %v3213 = vunpack.c.l.s4 1934713408
        %v3214 = vunpack.c.0.s8 %v3213
        %v3215 = vlaneseq
        %v3216 = vshrl.u32 %v3215, 7
        %v3217 = vsub.s32 %v3214, %v3216
        %v3218 = vrot.slane %v3204, %v3217
        %v3219 = vcombine.low %v3186, %v3202
        %v3220 = vcombine.high %v3186, %v3202
        %v3222 = vunpack.c.l.s4 1934713408
        %v3223 = vunpack.c.0.s8 %v3222
        %v3224 = vlaneseq
        %v3225 = vshrl.u32 %v3224, 7
        %v3226 = vsub.s32 %v3223, %v3225
        %v3227 = vrot.slane %v3219, %v3226
        %v3229 = vunpack.c.l.s4 1934713408
        %v3230 = vunpack.c.0.s8 %v3229
        %v3231 = vlaneseq
        %v3232 = vshrl.u32 %v3231, 7
        %v3233 = vsub.s32 %v3230, %v3232
        %v3234 = vrot.slane %v3220, %v3233
        %v3235 = vcombine.high %v3211, 0.0
        %v3236 = vcombine.high %v3218, 0.0
        %v3237 = vcombine.high %v3227, 0.0
        %v3238 = vcombine.high %v3234, 0.0
        %v3239 = vcombine.low %v2949, %v3095
        %v3240 = vcombine.high %v2949, %v3095
        %v3242 = vunpack.c.l.s4 1983009808
        %v3243 = vunpack.c.0.s8 %v3242
        %v3244 = vlaneseq
        %v3245 = vshrl.u32 %v3244, 7
        %v3246 = vsub.s32 %v3243, %v3245
        %v3247 = vrot.slane %v3239, %v3246
        %v3249 = vunpack.c.l.s4 1983009808
        %v3250 = vunpack.c.0.s8 %v3249
        %v3251 = vlaneseq
        %v3252 = vshrl.u32 %v3251, 7
        %v3253 = vsub.s32 %v3250, %v3252
        %v3254 = vrot.slane %v3240, %v3253
        %v3255 = vcombine.low %v3022, %v3168
        %v3256 = vcombine.high %v3022, %v3168
        %v3258 = vunpack.c.l.s4 1983009808
        %v3259 = vunpack.c.0.s8 %v3258
        %v3260 = vlaneseq
        %v3261 = vshrl.u32 %v3260, 7
        %v3262 = vsub.s32 %v3259, %v3261
        %v3263 = vrot.slane %v3255, %v3262
        %v3265 = vunpack.c.l.s4 1983009808
        %v3266 = vunpack.c.0.s8 %v3265
        %v3267 = vlaneseq
        %v3268 = vshrl.u32 %v3267, 7
        %v3269 = vsub.s32 %v3266, %v3268
        %v3270 = vrot.slane %v3256, %v3269
        %v3271 = vcombine.low %v3247, %v3263
        %v3272 = vcombine.high %v3247, %v3263
        %v3274 = vunpack.c.l.s4 1934713408
        %v3275 = vunpack.c.0.s8 %v3274
        %v3276 = vlaneseq
        %v3277 = vshrl.u32 %v3276, 7
        %v3278 = vsub.s32 %v3275, %v3277
        %v3279 = vrot.slane %v3271, %v3278
        %v3281 = vunpack.c.l.s4 1934713408
        %v3282 = vunpack.c.0.s8 %v3281
        %v3283 = vlaneseq
        %v3284 = vshrl.u32 %v3283, 7
        %v3285 = vsub.s32 %v3282, %v3284
        %v3286 = vrot.slane %v3272, %v3285
        %v3287 = vcombine.low %v3254, %v3270
        %v3288 = vcombine.high %v3254, %v3270
        %v3290 = vunpack.c.l.s4 1934713408
        %v3291 = vunpack.c.0.s8 %v3290
        %v3292 = vlaneseq
        %v3293 = vshrl.u32 %v3292, 7
        %v3294 = vsub.s32 %v3291, %v3293
        %v3295 = vrot.slane %v3287, %v3294
        %v3297 = vunpack.c.l.s4 1934713408
        %v3298 = vunpack.c.0.s8 %v3297
        %v3299 = vlaneseq
        %v3300 = vshrl.u32 %v3299, 7
        %v3301 = vsub.s32 %v3298, %v3300
        %v3302 = vrot.slane %v3288, %v3301
        %v3303 = vcombine.high %v3279, 0.0
        %v3304 = vcombine.high %v3286, 0.0
        %v3305 = vcombine.high %v3295, 0.0
        %v3306 = vcombine.high %v3302, 0.0
        %v3307 = vcombine.low %v3211, %v3235
        %v3309 = vunpack.c.l.s4 1983009808
        %v3310 = vunpack.c.0.s8 %v3309
        %v3311 = vlaneseq
        %v3312 = vshrl.u32 %v3311, 7
        %v3313 = vsub.s32 %v3310, %v3312
        %v3314 = vrot.slane %v3307, %v3313
        %v3315 = vcombine.low %v3279, %v3303
        %v3317 = vunpack.c.l.s4 1983009808
        %v3318 = vunpack.c.0.s8 %v3317
        %v3319 = vlaneseq
        %v3320 = vshrl.u32 %v3319, 7
        %v3321 = vsub.s32 %v3318, %v3320
        %v3322 = vrot.slane %v3315, %v3321
        %v3323 = vcombine.low %v3218, %v3236
        %v3325 = vunpack.c.l.s4 1983009808
        %v3326 = vunpack.c.0.s8 %v3325
        %v3327 = vlaneseq
        %v3328 = vshrl.u32 %v3327, 7
        %v3329 = vsub.s32 %v3326, %v3328
        %v3330 = vrot.slane %v3323, %v3329
        %v3331 = vcombine.low %v3286, %v3304
        %v3333 = vunpack.c.l.s4 1983009808
        %v3334 = vunpack.c.0.s8 %v3333
        %v3335 = vlaneseq
        %v3336 = vshrl.u32 %v3335, 7
        %v3337 = vsub.s32 %v3334, %v3336
        %v3338 = vrot.slane %v3331, %v3337
        %v3339 = vcombine.low %v3314, %v3322
        %v3340 = vcombine.high %v3314, %v3322
        %v3342 = vunpack.c.l.s4 1934713408
        %v3343 = vunpack.c.0.s8 %v3342
        %v3344 = vlaneseq
        %v3345 = vshrl.u32 %v3344, 7
        %v3346 = vsub.s32 %v3343, %v3345
        %v3347 = vrot.slane %v3339, %v3346
        %v3349 = vunpack.c.l.s4 1934713408
        %v3350 = vunpack.c.0.s8 %v3349
        %v3351 = vlaneseq
        %v3352 = vshrl.u32 %v3351, 7
        %v3353 = vsub.s32 %v3350, %v3352
        %v3354 = vrot.slane %v3340, %v3353
        %v3355 = vcombine.low %v3330, %v3338
        %v3356 = vcombine.high %v3330, %v3338
        %v3358 = vunpack.c.l.s4 1934713408
        %v3359 = vunpack.c.0.s8 %v3358
        %v3360 = vlaneseq
        %v3361 = vshrl.u32 %v3360, 7
        %v3362 = vsub.s32 %v3359, %v3361
        %v3363 = vrot.slane %v3355, %v3362
        %v3365 = vunpack.c.l.s4 1934713408
        %v3366 = vunpack.c.0.s8 %v3365
        %v3367 = vlaneseq
        %v3368 = vshrl.u32 %v3367, 7
        %v3369 = vsub.s32 %v3366, %v3368
        %v3370 = vrot.slane %v3356, %v3369
        %v3371 = vcombine.low %v3347, %v3363
        %v3372 = vcombine.high %v3347, %v3363
        %v3373 = vcombine.low %v3354, %v3370
        %v3374 = vcombine.high %v3354, %v3370
        %v3375 = vcombine.low %v3227, %v3237
        %v3377 = vunpack.c.l.s4 1983009808
        %v3378 = vunpack.c.0.s8 %v3377
        %v3379 = vlaneseq
        %v3380 = vshrl.u32 %v3379, 7
        %v3381 = vsub.s32 %v3378, %v3380
        %v3382 = vrot.slane %v3375, %v3381
        %v3383 = vcombine.low %v3295, %v3305
        %v3385 = vunpack.c.l.s4 1983009808
        %v3386 = vunpack.c.0.s8 %v3385
        %v3387 = vlaneseq
        %v3388 = vshrl.u32 %v3387, 7
        %v3389 = vsub.s32 %v3386, %v3388
        %v3390 = vrot.slane %v3383, %v3389
        %v3391 = vcombine.low %v3234, %v3238
        %v3393 = vunpack.c.l.s4 1983009808
        %v3394 = vunpack.c.0.s8 %v3393
        %v3395 = vlaneseq
        %v3396 = vshrl.u32 %v3395, 7
        %v3397 = vsub.s32 %v3394, %v3396
        %v3398 = vrot.slane %v3391, %v3397
        %v3399 = vcombine.low %v3302, %v3306
        %v3401 = vunpack.c.l.s4 1983009808
        %v3402 = vunpack.c.0.s8 %v3401
        %v3403 = vlaneseq
        %v3404 = vshrl.u32 %v3403, 7
        %v3405 = vsub.s32 %v3402, %v3404
        %v3406 = vrot.slane %v3399, %v3405
        %v3407 = vcombine.low %v3382, %v3390
        %v3408 = vcombine.high %v3382, %v3390
        %v3410 = vunpack.c.l.s4 1934713408
        %v3411 = vunpack.c.0.s8 %v3410
        %v3412 = vlaneseq
        %v3413 = vshrl.u32 %v3412, 7
        %v3414 = vsub.s32 %v3411, %v3413
        %v3415 = vrot.slane %v3407, %v3414
        %v3417 = vunpack.c.l.s4 1934713408
        %v3418 = vunpack.c.0.s8 %v3417
        %v3419 = vlaneseq
        %v3420 = vshrl.u32 %v3419, 7
        %v3421 = vsub.s32 %v3418, %v3420
        %v3422 = vrot.slane %v3408, %v3421
        %v3423 = vcombine.low %v3398, %v3406
        %v3424 = vcombine.high %v3398, %v3406
        %v3426 = vunpack.c.l.s4 1934713408
        %v3427 = vunpack.c.0.s8 %v3426
        %v3428 = vlaneseq
        %v3429 = vshrl.u32 %v3428, 7
        %v3430 = vsub.s32 %v3427, %v3429
        %v3431 = vrot.slane %v3423, %v3430
        %v3433 = vunpack.c.l.s4 1934713408
        %v3434 = vunpack.c.0.s8 %v3433
        %v3435 = vlaneseq
        %v3436 = vshrl.u32 %v3435, 7
        %v3437 = vsub.s32 %v3434, %v3436
        %v3438 = vrot.slane %v3424, %v3437
        %v3439 = vcombine.low %v3415, %v3431
        %v3440 = vcombine.high %v3415, %v3431
        %v3441 = vcombine.low %v3422, %v3438
        %v3442 = vcombine.high %v3422, %v3438
        %3445 = vrot.lane.b32.xlu0 %v3372, 8
        %v3446 = vpop.permute.xlu0 %3445
        %3447 = vrot.lane.b32.xlu0 %v3440, 8
        %v3448 = vpop.permute.xlu0 %3447
        %3453 = vrot.lane.b32.xlu0 %v3373, 16
        %v3454 = vpop.permute.xlu0 %3453
        %3455 = vrot.lane.b32.xlu0 %v3441, 16
        %v3456 = vpop.permute.xlu0 %3455
        %3461 = vrot.lane.b32.xlu0 %v3374, 24
        %v3462 = vpop.permute.xlu0 %3461
        %3463 = vrot.lane.b32.xlu0 %v3442, 24
        %v3464 = vpop.permute.xlu0 %3463
        %v3467 = vsel %vm1849, %v3371, %v3446
        %v3468 = vsel %vm1849, %v3439, %v3448
        %vm3469 = vcmask 130048
        %v3470 = vsel %vm3469, %v3467, %v3454
        %v3471 = vsel %vm3469, %v3468, %v3456
        %vm3472 = vcmask 195584
        %v3473 = vsel %vm3472, %v3470, %v3462
        %v3474 = vsel %vm3472, %v3471, %v3464
        %v3475 = vld [vmem:[%s623] sm:$0xff]
        %v3476 = vld [vmem:[%s623 + $0x8] sm:$0xff]
        %v3477 = vld [vmem:[%s623 + $0x10] sm:$0xff]
        %v3478 = vld [vmem:[%s623 + $0x18] sm:$0xff]
        %v3479 = vld [vmem:[%s724] sm:$0x1]
        %v3481 = vlaneseq
        %v3482 = vshrl.u32 %v3481, 7
        %v3483 = vsub.s32 0, %v3482
        %v3484 = vrot.slane %v3479, %v3483
        %vm3486 = vcmask 261120
        %v3488 = vsel %vm3486, %v3473, 0
        %v3491 = vsel %vm3486, %v3474, 0
        %3493 = vmatprep.subr.mxu0 0.0
        %3494 = vmatpush1.msra.mxu0 0.0
        %3495 = vmatprep.subr.mxu0 0.0
        %3496 = vmatpush1.msra.mxu0 0.0
        %3497 = vmatprep.subr.mxu0 0.0
        %3498 = vmatpush1.msra.mxu0 0.0
        %3499 = vmatprep.subr.mxu0 0.0
        %3500 = vmatpush1.msra.mxu0 0.0
        %3501 = vmatprep.subr.mxu0 0.0
        %3502 = vmatpush1.msra.mxu0 0.0
        %3503 = vmatprep.subr.mxu0 0.0
        %3504 = vmatpush1.msra.mxu0 0.0
        %3505 = vmatprep.subr.mxu0 0.0
        %3506 = vmatpush1.msra.mxu0 0.0
        %3507 = vmatprep.subr.mxu0 0.0
        %3508 = vmatpush1.msra.mxu0 0.0
        %3509 = vmatprep.subr.mxu0 0.0
        %3510 = vmatpush1.msra.mxu0 0.0
        %3511 = vmatprep.subr.mxu0 0.0
        %3512 = vmatpush1.msra.mxu0 0.0
        %3513 = vmatprep.subr.mxu0 0.0
        %3514 = vmatpush1.msra.mxu0 0.0
        %3515 = vmatprep.subr.mxu0 0.0
        %3516 = vmatpush1.msra.mxu0 0.0
        %3517 = vmatprep.subr.mxu0 0.0
        %3518 = vmatpush1.msra.mxu0 %v3478
        %3519 = vmatprep.subr.mxu0 0.0
        %3520 = vmatpush1.msra.mxu0 %v3477
        %3521 = vmatprep.subr.mxu0 0.0
        %3522 = vmatpush1.msra.mxu0 %v3476
        %3523 = vmatprep.subr.mxu0 0.0
        %3524 = vmatpush1.msra.mxu0 %v3475
        %3525 = vmatprep.subr.mxu0 0.0
        %3526 = vmatpush2.msra.mxu0 0.0
        %3527 = vmatprep.subr.mxu0 0.0
        %3528 = vmatpush2.msra.mxu0 0.0
        %3529 = vmatprep.subr.mxu0 0.0
        %3530 = vmatpush2.msra.mxu0 0.0
        %3531 = vmatprep.subr.mxu0 0.0
        %3532 = vmatpush2.msra.mxu0 0.0
        %3533 = vmatprep.subr.mxu0 0.0
        %3534 = vmatpush2.msra.mxu0 0.0
        %3535 = vmatprep.subr.mxu0 0.0
        %3536 = vmatpush2.msra.mxu0 0.0
        %3537 = vmatprep.subr.mxu0 0.0
        %3538 = vmatpush2.msra.mxu0 0.0
        %3539 = vmatprep.subr.mxu0 0.0
        %3540 = vmatpush2.msra.mxu0 0.0
        %3541 = vmatprep.subr.mxu0 0.0
        %3542 = vmatpush2.msra.mxu0 0.0
        %3543 = vmatprep.subr.mxu0 0.0
        %3544 = vmatpush2.msra.mxu0 0.0
        %3545 = vmatprep.subr.mxu0 0.0
        %3546 = vmatpush2.msra.mxu0 0.0
        %3547 = vmatprep.subr.mxu0 0.0
        %3548 = vmatpush2.msra.mxu0 0.0
        %3549 = vmatprep.subr.mxu0 0.0
        %3550 = vmatpush2.msra.mxu0 0.0
        %3551 = vmatprep.subr.mxu0 0.0
        %3552 = vmatpush2.msra.mxu0 0.0
        %3553 = vmatprep.subr.mxu0 0.0
        %3554 = vmatpush2.msra.mxu0 0.0
        %3555 = vmatprep.subr.mxu0 0.0
        %3556 = vmatpush2.msra.mxu0 0.0
        %3557 = vmatprep.mubr.f32.mxu0 0.0
        %3558 = vmatmul.mubr.f32.gmra.mxu0 %v3488
        %v3559 = vpop.f32.mrf.mxu0
        %v3560 = vadd.f32 %v3484, %v3559
        %v3561 = vpop.f32.mrf.mxu0
        %3562 = vmatprep.mubr.f32.mxu0 0.0
        %3563 = vmatmul.mubr.f32.gmra.mxu0 %v3491
        %v3564 = vpop.f32.mrf.mxu0
        %v3565 = vadd.f32 %v3484, %v3564
        %v3566 = vpop.f32.mrf.mxu0
        %3567 = vdwg.mxu0
        %v3568 = vadd.f32 %v751, %v3560
        %v3569 = vadd.f32 %v752, %v3565
        %v3570 = vld [vmem:[%s727] sm:$0x1]
        %v3571 = vld [vmem:[%s730] sm:$0x1]
        %3572 = vadd.xlane.f32.xlu0 %v3568
        %v3573 = vpop.xlane.xlu0 %3572
        %3574 = vadd.xlane.f32.xlu0 %v3569
        %v3575 = vpop.xlane.xlu0 %3574
        %v3576 = vmul.f32 %v3573, 0.03125
        %v3577 = vmul.f32 %v3575, 0.03125
        %v3578 = vsub.f32 %v3568, %v3576
        %v3579 = vsub.f32 %v3569, %v3577
        %v3580 = vsel %vm755, 1, 0
        %vm3581 = vcmp.eq.s32.totalorder %v3580, 1
        %v3582 = vsel %vm3581, %v3578, 0.0
        %v3583 = vsel %vm3581, %v3579, 0.0
        %v3584 = vmul.f32 %v3582, %v3582
        %v3585 = vmul.f32 %v3583, %v3583
        %3586 = vadd.xlane.f32.xlu0 %v3584
        %v3587 = vpop.xlane.xlu0 %3586
        %3588 = vadd.xlane.f32.xlu0 %v3585
        %v3589 = vpop.xlane.xlu0 %3588
        %v3590 = vmul.f32 %v3587, 0.03125
        %v3591 = vmul.f32 %v3589, 0.03125
        %v3592 = vadd.f32 %v3590, 1e-05
        %v3593 = vadd.f32 %v3591, 1e-05
        %v3594 = vrsqrt.pop %v3592
        %v3595 = vrsqrt.pop %v3593
        %v3596 = vmul.f32 %v3582, %v3594
        %v3597 = vmul.f32 %v3583, %v3595
        %v3599 = vlaneseq
        %v3600 = vshrl.u32 %v3599, 7
        %v3601 = vsub.s32 0, %v3600
        %v3602 = vrot.slane %v3570, %v3601
        %v3604 = vmul.f32 %v3596, %v3602
        %v3605 = vmul.f32 %v3597, %v3602
        %v3607 = vlaneseq
        %v3608 = vshrl.u32 %v3607, 7
        %v3609 = vsub.s32 0, %v3608
        %v3610 = vrot.slane %v3571, %v3609
        %v3612 = vadd.f32 %v3604, %v3610
        %v3613 = vadd.f32 %v3605, %v3610
        %v3614 = vld [vmem:[%s632] sm:$0xff]
        %v3615 = vld [vmem:[%s632 + $0x8] sm:$0xff]
        %v3616 = vld [vmem:[%s632 + $0x10] sm:$0xff]
        %v3617 = vld [vmem:[%s632 + $0x18] sm:$0xff]
        %v3618 = vld [vmem:[%s632 + $0x20] sm:$0xff]
        %v3619 = vld [vmem:[%s632 + $0x28] sm:$0xff]
        %v3620 = vld [vmem:[%s632 + $0x30] sm:$0xff]
        %v3621 = vld [vmem:[%s632 + $0x38] sm:$0xff]
        %v3622 = vld [vmem:[%s632 + $0x40] sm:$0xff]
        %v3623 = vld [vmem:[%s632 + $0x48] sm:$0xff]
        %v3624 = vld [vmem:[%s632 + $0x50] sm:$0xff]
        %v3625 = vld [vmem:[%s632 + $0x58] sm:$0xff]
        %v3626 = vld [vmem:[%s632 + $0x60] sm:$0xff]
        %v3627 = vld [vmem:[%s632 + $0x68] sm:$0xff]
        %v3628 = vld [vmem:[%s632 + $0x70] sm:$0xff]
        %v3629 = vld [vmem:[%s632 + $0x78] sm:$0xff]
        %v3630 = vld [vmem:[%s733] sm:$0x1]
        %v3632 = vlaneseq
        %v3633 = vshrl.u32 %v3632, 7
        %v3634 = vsub.s32 0, %v3633
        %v3635 = vrot.slane %v3630, %v3634
        %3637 = vmatprep.subr.mxu0 0.0
        %3638 = vmatpush1.msra.mxu0 %v3629
        %3639 = vmatprep.subr.mxu0 0.0
        %3640 = vmatpush1.msra.mxu0 %v3628
        %3641 = vmatprep.subr.mxu0 0.0
        %3642 = vmatpush1.msra.mxu0 %v3627
        %3643 = vmatprep.subr.mxu0 0.0
        %3644 = vmatpush1.msra.mxu0 %v3626
        %3645 = vmatprep.subr.mxu0 0.0
        %3646 = vmatpush1.msra.mxu0 %v3625
        %3647 = vmatprep.subr.mxu0 0.0
        %3648 = vmatpush1.msra.mxu0 %v3624
        %3649 = vmatprep.subr.mxu0 0.0
        %3650 = vmatpush1.msra.mxu0 %v3623
        %3651 = vmatprep.subr.mxu0 0.0
        %3652 = vmatpush1.msra.mxu0 %v3622
        %3653 = vmatprep.subr.mxu0 0.0
        %3654 = vmatpush1.msra.mxu0 %v3621
        %3655 = vmatprep.subr.mxu0 0.0
        %3656 = vmatpush1.msra.mxu0 %v3620
        %3657 = vmatprep.subr.mxu0 0.0
        %3658 = vmatpush1.msra.mxu0 %v3619
        %3659 = vmatprep.subr.mxu0 0.0
        %3660 = vmatpush1.msra.mxu0 %v3618
        %3661 = vmatprep.subr.mxu0 0.0
        %3662 = vmatpush1.msra.mxu0 %v3617
        %3663 = vmatprep.subr.mxu0 0.0
        %3664 = vmatpush1.msra.mxu0 %v3616
        %3665 = vmatprep.subr.mxu0 0.0
        %3666 = vmatpush1.msra.mxu0 %v3615
        %3667 = vmatprep.subr.mxu0 0.0
        %3668 = vmatpush1.msra.mxu0 %v3614
        %3669 = vmatprep.subr.mxu0 0.0
        %3670 = vmatpush2.msra.mxu0 0.0
        %3671 = vmatprep.subr.mxu0 0.0
        %3672 = vmatpush2.msra.mxu0 0.0
        %3673 = vmatprep.subr.mxu0 0.0
        %3674 = vmatpush2.msra.mxu0 0.0
        %3675 = vmatprep.subr.mxu0 0.0
        %3676 = vmatpush2.msra.mxu0 0.0
        %3677 = vmatprep.subr.mxu0 0.0
        %3678 = vmatpush2.msra.mxu0 0.0
        %3679 = vmatprep.subr.mxu0 0.0
        %3680 = vmatpush2.msra.mxu0 0.0
        %3681 = vmatprep.subr.mxu0 0.0
        %3682 = vmatpush2.msra.mxu0 0.0
        %3683 = vmatprep.subr.mxu0 0.0
        %3684 = vmatpush2.msra.mxu0 0.0
        %3685 = vmatprep.subr.mxu0 0.0
        %3686 = vmatpush2.msra.mxu0 0.0
        %3687 = vmatprep.subr.mxu0 0.0
        %3688 = vmatpush2.msra.mxu0 0.0
        %3689 = vmatprep.subr.mxu0 0.0
        %3690 = vmatpush2.msra.mxu0 0.0
        %3691 = vmatprep.subr.mxu0 0.0
        %3692 = vmatpush2.msra.mxu0 0.0
        %3693 = vmatprep.subr.mxu0 0.0
        %3694 = vmatpush2.msra.mxu0 0.0
        %3695 = vmatprep.subr.mxu0 0.0
        %3696 = vmatpush2.msra.mxu0 0.0
        %3697 = vmatprep.subr.mxu0 0.0
        %3698 = vmatpush2.msra.mxu0 0.0
        %3699 = vmatprep.subr.mxu0 0.0
        %3700 = vmatpush2.msra.mxu0 0.0
        %3701 = vmatprep.mubr.f32.mxu0 0.0
        %3702 = vmatmul.mubr.f32.gmra.mxu0 %v3612
        %v3703 = vpop.f32.mrf.mxu0
        %v3704 = vadd.f32 %v3635, %v3703
        %v3705 = vpop.f32.mrf.mxu0
        %3706 = vmatprep.mubr.f32.mxu0 0.0
        %3707 = vmatmul.mubr.f32.gmra.mxu0 %v3613
        %v3708 = vpop.f32.mrf.mxu0
        %v3709 = vadd.f32 %v3635, %v3708
        %v3710 = vpop.f32.mrf.mxu0
        %3711 = vdwg.mxu0
        %v3712 = vmax.f32 %v3704, 0.0
        %v3713 = vmax.f32 %v3709, 0.0
        %v3714 = vld [vmem:[%s641] sm:$0xff]
        %v3715 = vld [vmem:[%s641 + $0x8] sm:$0xff]
        %v3716 = vld [vmem:[%s641 + $0x10] sm:$0xff]
        %v3717 = vld [vmem:[%s641 + $0x18] sm:$0xff]
        %v3718 = vld [vmem:[%s641 + $0x20] sm:$0xff]
        %v3719 = vld [vmem:[%s641 + $0x28] sm:$0xff]
        %v3720 = vld [vmem:[%s641 + $0x30] sm:$0xff]
        %v3721 = vld [vmem:[%s641 + $0x38] sm:$0xff]
        %v3722 = vld [vmem:[%s641 + $0x40] sm:$0xff]
        %v3723 = vld [vmem:[%s641 + $0x48] sm:$0xff]
        %v3724 = vld [vmem:[%s641 + $0x50] sm:$0xff]
        %v3725 = vld [vmem:[%s641 + $0x58] sm:$0xff]
        %v3726 = vld [vmem:[%s641 + $0x60] sm:$0xff]
        %v3727 = vld [vmem:[%s641 + $0x68] sm:$0xff]
        %v3728 = vld [vmem:[%s641 + $0x70] sm:$0xff]
        %v3729 = vld [vmem:[%s641 + $0x78] sm:$0xff]
        %v3730 = vld [vmem:[%s736] sm:$0x1]
        %v3732 = vlaneseq
        %v3733 = vshrl.u32 %v3732, 7
        %v3734 = vsub.s32 0, %v3733
        %v3735 = vrot.slane %v3730, %v3734
        %3737 = vmatprep.subr.mxu0 0.0
        %3738 = vmatpush1.msra.mxu0 %v3729
        %3739 = vmatprep.subr.mxu0 0.0
        %3740 = vmatpush1.msra.mxu0 %v3728
        %3741 = vmatprep.subr.mxu0 0.0
        %3742 = vmatpush1.msra.mxu0 %v3727
        %3743 = vmatprep.subr.mxu0 0.0
        %3744 = vmatpush1.msra.mxu0 %v3726
        %3745 = vmatprep.subr.mxu0 0.0
        %3746 = vmatpush1.msra.mxu0 %v3725
        %3747 = vmatprep.subr.mxu0 0.0
        %3748 = vmatpush1.msra.mxu0 %v3724
        %3749 = vmatprep.subr.mxu0 0.0
        %3750 = vmatpush1.msra.mxu0 %v3723
        %3751 = vmatprep.subr.mxu0 0.0
        %3752 = vmatpush1.msra.mxu0 %v3722
        %3753 = vmatprep.subr.mxu0 0.0
        %3754 = vmatpush1.msra.mxu0 %v3721
        %3755 = vmatprep.subr.mxu0 0.0
        %3756 = vmatpush1.msra.mxu0 %v3720
        %3757 = vmatprep.subr.mxu0 0.0
        %3758 = vmatpush1.msra.mxu0 %v3719
        %3759 = vmatprep.subr.mxu0 0.0
        %3760 = vmatpush1.msra.mxu0 %v3718
        %3761 = vmatprep.subr.mxu0 0.0
        %3762 = vmatpush1.msra.mxu0 %v3717
        %3763 = vmatprep.subr.mxu0 0.0
        %3764 = vmatpush1.msra.mxu0 %v3716
        %3765 = vmatprep.subr.mxu0 0.0
        %3766 = vmatpush1.msra.mxu0 %v3715
        %3767 = vmatprep.subr.mxu0 0.0
        %3768 = vmatpush1.msra.mxu0 %v3714
        %3769 = vmatprep.subr.mxu0 0.0
        %3770 = vmatpush2.msra.mxu0 0.0
        %3771 = vmatprep.subr.mxu0 0.0
        %3772 = vmatpush2.msra.mxu0 0.0
        %3773 = vmatprep.subr.mxu0 0.0
        %3774 = vmatpush2.msra.mxu0 0.0
        %3775 = vmatprep.subr.mxu0 0.0
        %3776 = vmatpush2.msra.mxu0 0.0
        %3777 = vmatprep.subr.mxu0 0.0
        %3778 = vmatpush2.msra.mxu0 0.0
        %3779 = vmatprep.subr.mxu0 0.0
        %3780 = vmatpush2.msra.mxu0 0.0
        %3781 = vmatprep.subr.mxu0 0.0
        %3782 = vmatpush2.msra.mxu0 0.0
        %3783 = vmatprep.subr.mxu0 0.0
        %3784 = vmatpush2.msra.mxu0 0.0
        %3785 = vmatprep.subr.mxu0 0.0
        %3786 = vmatpush2.msra.mxu0 0.0
        %3787 = vmatprep.subr.mxu0 0.0
        %3788 = vmatpush2.msra.mxu0 0.0
        %3789 = vmatprep.subr.mxu0 0.0
        %3790 = vmatpush2.msra.mxu0 0.0
        %3791 = vmatprep.subr.mxu0 0.0
        %3792 = vmatpush2.msra.mxu0 0.0
        %3793 = vmatprep.subr.mxu0 0.0
        %3794 = vmatpush2.msra.mxu0 0.0
        %3795 = vmatprep.subr.mxu0 0.0
        %3796 = vmatpush2.msra.mxu0 0.0
        %3797 = vmatprep.subr.mxu0 0.0
        %3798 = vmatpush2.msra.mxu0 0.0
        %3799 = vmatprep.subr.mxu0 0.0
        %3800 = vmatpush2.msra.mxu0 0.0
        %3801 = vmatprep.mubr.f32.mxu0 0.0
        %3802 = vmatmul.mubr.f32.gmra.mxu0 %v3712
        %v3803 = vpop.f32.mrf.mxu0
        %v3804 = vadd.f32 %v3735, %v3803
        %v3805 = vpop.f32.mrf.mxu0
        %3806 = vmatprep.mubr.f32.mxu0 0.0
        %3807 = vmatmul.mubr.f32.gmra.mxu0 %v3713
        %v3808 = vpop.f32.mrf.mxu0
        %v3809 = vadd.f32 %v3735, %v3808
        %v3810 = vpop.f32.mrf.mxu0
        %3811 = vdwg.mxu0
        %v3812 = vadd.f32 %v3612, %v3804
        %v3813 = vadd.f32 %v3613, %v3809
        %v3814 = vld [vmem:[%s739] sm:$0x1]
        %v3815 = vld [vmem:[%s742] sm:$0x1]
        %3816 = vadd.xlane.f32.xlu0 %v3812
        %v3817 = vpop.xlane.xlu0 %3816
        %3818 = vadd.xlane.f32.xlu0 %v3813
        %v3819 = vpop.xlane.xlu0 %3818
        %v3820 = vmul.f32 %v3817, 0.03125
        %v3821 = vmul.f32 %v3819, 0.03125
        %v3822 = vsub.f32 %v3812, %v3820
        %v3823 = vsub.f32 %v3813, %v3821
        %v3824 = vsel %vm3581, %v3822, 0.0
        %v3825 = vsel %vm3581, %v3823, 0.0
        %v3826 = vmul.f32 %v3824, %v3824
        %v3827 = vmul.f32 %v3825, %v3825
        %3828 = vadd.xlane.f32.xlu0 %v3826
        %v3829 = vpop.xlane.xlu0 %3828
        %3830 = vadd.xlane.f32.xlu0 %v3827
        %v3831 = vpop.xlane.xlu0 %3830
        %v3832 = vmul.f32 %v3829, 0.03125
        %v3833 = vmul.f32 %v3831, 0.03125
        %v3834 = vadd.f32 %v3832, 1e-05
        %v3835 = vadd.f32 %v3833, 1e-05
        %v3836 = vrsqrt.pop %v3834
        %v3837 = vrsqrt.pop %v3835
        %v3838 = vmul.f32 %v3824, %v3836
        %v3839 = vmul.f32 %v3825, %v3837
        %v3841 = vlaneseq
        %v3842 = vshrl.u32 %v3841, 7
        %v3843 = vsub.s32 0, %v3842
        %v3844 = vrot.slane %v3814, %v3843
        %v3846 = vmul.f32 %v3838, %v3844
        %v3847 = vmul.f32 %v3839, %v3844
        %v3849 = vlaneseq
        %v3850 = vshrl.u32 %v3849, 7
        %v3851 = vsub.s32 0, %v3850
        %v3852 = vrot.slane %v3815, %v3851
        %v3854 = vadd.f32 %v3846, %v3852
        %v3855 = vadd.f32 %v3847, %v3852
        %3856 = vst [vmem:[#allocation2] sm:$0xff] %v3854
        %3857 = vst [vmem:[#allocation2 + $0x8] sm:$0xff] %v3855
        %p3858 = scmp.eq.s32.totalorder %s28, 1
        // Predicated region
        $region109: #{tpu_custom_call.1} parent=75 // pred_check
          %p3859 = pneg %p3858
        $region110: #{tpu_custom_call.1} parent=75 // pred_check_branch
          %3861 = sbr.rel (%p3859) target = $region112
        $region111: #{tpu_custom_call.1} parent=75 // pred_region
          %3862 = vst [vmem:[#allocation13] sm:$0xff] %v3854
          %3863 = vst [vmem:[#allocation13 + $0x8] sm:$0xff] %v3855
        $region112: #{tpu_custom_call.1} parent=75 // pred_fallthru
          _
        // Predicated region
        $region113: #{tpu_custom_call.1} parent=75 // pred_check
          %p3864 = pneg %p395
        $region114: #{tpu_custom_call.1} parent=75 // pred_check_branch
          %3866 = sbr.rel (%p3864) target = $region116
        $region115: #{tpu_custom_call.1} parent=75 // pred_region
          %s3868 = ssub.s32 256, 256
          %3869 = vsyncadd [#allocation5], %s3868
          %s3870 = sshll.u32 [#allocation13], 4
          %s3871 = int_to_ptr.vmem [resolvable:$true] %s3870
          %3876 = dma.vmem_to_hbm [thread:$0]  %s3871, 256, %s14, [#allocation5], 128, 128, 8
        $region116: #{tpu_custom_call.1} parent=75 // pred_fallthru
          _
        // Predicated region
        $region117: #{tpu_custom_call.1} parent=75 // pred_check
          %p3877 = pneg %p395
        $region118: #{tpu_custom_call.1} parent=75 // pred_check_branch
          %3879 = sbr.rel (%p3877) target = $region120
        $region119: #{tpu_custom_call.1} parent=75 // pred_region
          %3880 = dma.done [#allocation5], 256
        $region120: #{tpu_custom_call.1} parent=75 // pred_fallthru
          _
      $region76: #{tpu_custom_call.1} parent=5 // pred_fallthru
        _
      %p3881 = scmp.le.s32.totalorder 2, %s23
      // Predicated region
      $region121: #{tpu_custom_call.1} parent=5 // pred_check
        %p3882 = pneg %p3881
      $region122: #{tpu_custom_call.1} parent=5 // pred_check_branch
        %3884 = sbr.rel (%p3882) target = $region124
      $region123: #{tpu_custom_call.1} parent=5 // pred_region
        %s3885 = ssub.s32 %s23, 2
      $region124: #{tpu_custom_call.1} parent=5 // pred_fallthru
        _
    $region6: #{tpu_custom_call.1} parent=1 // loop_footer
      %s27 = sadd.s32 1, %s23
    $region7: #{tpu_custom_call.1} parent=1 // loop_footer_branch
      %22 = sbr.rel target = $region3
    $region8: #{tpu_custom_call.1} parent=1 // loop_exit
      _
    %3886 = vsyncpa [#allocation4], 1
    %s3887 = scalar_lea.sflag [#allocation4], 1
    %3888 = vsyncpa %s3887, 1
    %3889 = vsyncpa [#allocation7], 1
    %3890 = vsyncpa [#allocation5], 1
    %s3891 = scalar_lea.sflag [#allocation5], 1
    %3892 = vsyncpa %s3891, 1

</llo_original>
